<compile_context>
chip_gen: v7x
topology: tpu7x:2x2x1
jax: 0.10.0
libtpu: 0.0.40
codegen_flags: <defaults>
</compile_context>

<pallas_src>
import math
import functools

import jax
import jax.numpy as jnp
from jax import lax
from jax.experimental import pallas as pl
from jax.experimental.pallas import tpu as pltpu

DIM = 128                 # model dim (torch default 512; small demo shape)
HEADS = 8                 # the torch forward hard-codes nh=8
LAYER_NUM = 1
RMS_EPS = 1e-6


def lambda_init_fn(depth):
    return 0.8 - 0.6 * math.exp(-0.3 * depth)


L_INIT = lambda_init_fn(LAYER_NUM)


# ------------------------------ Pallas kernel -------------------------------

def _fused_diff_attn_kernel(x_ref, wqkv_ref, wo_ref, o_ref, *,
                            bt, seq, dim, nh, hd, lmbda, eps):
    """One block of `bt` batch elements per grid step; everything fused.

    x_ref   : (bt*S, D)  f32   input tokens (rows = flattened batch*seq)
    wqkv_ref: (D, 5*D)   bf16  fused [wq/sqrt(hd) | wk | wv] projection
    wo_ref  : (D, D)     bf16  output projection, pre-scaled by (1 - l_init)
    o_ref   : (bt*S, D)  f32   lane-dense output block
    """
    d2 = 2 * dim
    rows = bt * seq

    # Fused QKV projection: one MXU matmul with M = bt*S rows (bf16 operands,
    # f32 accumulation), x read from HBM exactly once per block.
    x_b = x_ref[...].astype(jnp.bfloat16)
    qkv = jnp.dot(x_b, wqkv_ref[...],
                  preferred_element_type=jnp.float32)            # (rows, 5D)
    qkv = qkv.astype(jnp.bfloat16)                               # MXU operands

    # Causal mask built once, reused by all bt * 2*nh softmaxes.
    # TODO(synk): for production S/D switch to flash-style KV tiling (online
    # softmax, tile-local mask) and set vmem_limit_bytes explicitly — the
    # materialized (S,S) f32 score tiles won't fit v7x's 64 MiB VMEM at scale.
    row_i = lax.broadcasted_iota(jnp.int32, (seq, seq), 0)
    col_i = lax.broadcasted_iota(jnp.int32, (seq, seq), 1)
    neg_mask = jnp.where(col_i > row_i, -jnp.inf, 0.0).astype(jnp.float32)

    def masked_softmax(q, k, lam):
        # q, k: (S, hd) bf16; 1/sqrt(hd) is already baked into wq.
        s = lax.dot_general(q, k, (((1,), (1,)), ((), ())),
                            preferred_element_type=jnp.float32)   # (S, S) f32
        s = s + neg_mask
        m = jnp.max(s, axis=-1, keepdims=True)
        # bf16 exp argument: ~2x EUP rate on v6e/v7x, auto-promoted on v5e.
        e = jnp.exp((s - m).astype(jnp.bfloat16)).astype(jnp.float32)
        denom = jnp.sum(e, axis=-1, keepdims=True)
        recip = pl.reciprocal(denom, approx=True)      # EUP, not a VALU divide
        if lam != 1.0:
            recip = recip * lam     # fold lambda into the (S,1) recip, not (S,S)
        return e * recip

    # Differential attention. (nh n)-ordered head i lives at lanes
    # [i*hd, (i+1)*hd) of the q / k projection outputs; output head h pairs
    # (nh n)-indices h and h+nh — exactly torch's attn[:, :nh] - attn[:, nh:].
    # TODO(synk): for production S replace the statically-unrolled batch/head
    # loops + concatenates with a head-batched dot_general (or a grid axis
    # writing into a VMEM scratch slab) to bound live (S,S) intermediates and
    # improve MXU K/N utilization (hd=16 uses a sliver of the 256-wide MXU).
    out_rows = []
    for b in range(bt):
        blk = qkv[b * seq:(b + 1) * seq, :]            # (S, 5D) bf16
        outs = []
        for h in range(nh):
            qa = blk[:, h * hd:(h + 1) * hd]
            qb = blk[:, (h + nh) * hd:(h + nh + 1) * hd]
            ka = blk[:, d2 + h * hd:d2 + (h + 1) * hd]
            kb = blk[:, d2 + (h + nh) * hd:d2 + (h + nh + 1) * hd]
            vh = blk[:, 2 * d2 + h * hd:2 * d2 + (h + 1) * hd]
            attn = masked_softmax(qa, ka, 1.0) - masked_softmax(qb, kb, lmbda)
            outs.append(jnp.dot(attn.astype(jnp.bfloat16), vh,
                                preferred_element_type=jnp.float32))
        out_rows.append(jnp.concatenate(outs, axis=-1))   # (S, D) f32
    o = jnp.concatenate(out_rows, axis=0)                 # (rows, D) f32

    # GroupRMSNorm, num_groups=heads applied to the hd-sized head dim, so
    # group size gs = hd // nh. Packed lanes keep the group structure, so the
    # group mean is a log2(gs) XLU roll-and-add butterfly (no MXU, no D x D
    # ones matrix) — works for any power-of-two gs (gs=2 at DIM=128, gs=8 at
    # the torch-default DIM=512).
    gs = hd // nh
    sq = o * o
    grp = sq
    lane = lax.broadcasted_iota(jnp.int32, (rows, dim), 1)
    shift = 1
    while shift < gs:
        from_next = pltpu.roll(grp, dim - shift, 1)    # value from lane i+shift
        from_prev = pltpu.roll(grp, shift, 1)          # value from lane i-shift
        grp = grp + jnp.where((lane % (2 * shift)) < shift, from_next, from_prev)
        shift *= 2
    grp_mean = grp * (1.0 / gs)
    # (1 - l_init) is baked into wo, so no extra (rows, D) multiply here.
    y = (o * lax.rsqrt(grp_mean + eps)).astype(jnp.bfloat16)

    # Fused output projection + one full-width (128-lane) store per step.
    out = jnp.dot(y, wo_ref[...], preferred_element_type=jnp.float32)
    o_ref[...] = out.astype(o_ref.dtype)


def diff_attention_forward(x, params, *, block_b=None):
    B, S, D = x.shape
    nh = HEADS
    hd = D // nh
    gs = hd // nh
    assert D % nh == 0 and hd % nh == 0 and (gs & (gs - 1)) == 0
    assert D % 128 == 0 and S % 8 == 0

    if block_b is None:
        # Fill the MXU M dimension (target >= 256 rows on v6e/v7x) by packing
        # several batch elements into one grid step.
        block_b = min(B, max(1, pl.cdiv(256, S)))
    while B % block_b:
        block_b -= 1
    rows_blk = block_b * S

    kern = functools.partial(
        _fused_diff_attn_kernel,
        bt=block_b, seq=S, dim=D, nh=nh, hd=hd,
        lmbda=float(L_INIT),                 # uniform lambda -> constant
        eps=RMS_EPS)

    # Free (contiguous) flatten so the kernel sees lane-dense 2-D row blocks.
    x2d = x.reshape(B * S, D)

    # TODO(synk): add a second 'parallel' grid axis (q-tiles or head groups)
    # so both v7x TensorCores stay busy when B // block_b == 1.
    out2d = pl.pallas_call(
        kern,
        out_shape=jax.ShapeDtypeStruct((B * S, D), jnp.float32),
        grid=(B // block_b,),
        in_specs=[
            pl.BlockSpec((rows_blk, D), lambda b: (b, 0)),        # x rows
            pl.BlockSpec((D, 5 * D), lambda b: (0, 0)),           # wqkv (bf16)
            pl.BlockSpec((D, D), lambda b: (0, 0)),               # wo   (bf16)
        ],
        out_specs=pl.BlockSpec((rows_blk, D), lambda b: (b, 0)),
        compiler_params=pltpu.CompilerParams(
            dimension_semantics=("parallel",)),
    )(x2d, params["wqkv"], params["wo"])
    return out2d.reshape(B, S, D)


# ------------------------------- params init --------------------------------

def init_module_params(key):
    """Module-equivalent (torch-like) f32 weights, stored transposed (in, out)."""
    ks = jax.random.split(key, 4)

    def lin(k, fan_in, fan_out):
        bound = 1.0 / math.sqrt(fan_in)
        return jax.random.uniform(k, (fan_in, fan_out), jnp.float32,
                                  -bound, bound)

    return {"wq": lin(ks[0], DIM, 2 * DIM),
            "wk": lin(ks[1], DIM, 2 * DIM),
            "wv": lin(ks[2], DIM, DIM),
            "wo": lin(ks[3], DIM, DIM)}


def prepare_kernel_params(p):
    """Kernel-ready params: fused, constant-folded, bf16 in HBM."""
    hd = DIM // HEADS
    wq = p["wq"] * (1.0 / math.sqrt(hd))            # bake attention scale
    wqkv = jnp.concatenate([wq, p["wk"], p["wv"]], axis=1)      # (D, 5D)
    wo = p["wo"] * (1.0 - L_INIT)                    # bake post-norm scale
    return {"wqkv": wqkv.astype(jnp.bfloat16),
            "wo": wo.astype(jnp.bfloat16)}


# ------------------------- pure-JAX reference (check) ------------------------

def ref_forward(x, p):
    B, S, D = x.shape
    nh, hd = HEADS, D // HEADS
    q = (x @ p["wq"]).reshape(B, S, nh, 2 * hd).transpose(0, 2, 1, 3)
    k = (x @ p["wk"]).reshape(B, S, nh, 2 * hd).transpose(0, 2, 1, 3)
    v = (x @ p["wv"]).reshape(B, S, nh, hd).transpose(0, 2, 1, 3)

    def prep(t):   # b nh seq (2 d) -> b (nh 2) seq d
        return t.reshape(B, nh, S, 2, hd).transpose(0, 1, 3, 2, 4).reshape(
            B, 2 * nh, S, hd)

    q2, k2 = prep(q), prep(k)
    scores = jnp.einsum("bhqd,bhkd->bhqk", q2, k2) / math.sqrt(hd)
    mask = jnp.where(jnp.triu(jnp.ones((S, S), bool), 1), -jnp.inf, 0.0)
    attn = jax.nn.softmax((scores + mask).astype(jnp.float32), axis=-1)
    attn = attn[:, :nh] - attn[:, nh:] * L_INIT
    out = jnp.einsum("bhqk,bhkd->bhqd", attn, v)
    g = out.reshape(B, nh, S, HEADS, hd // HEADS)
    g = g * lax.rsqrt(jnp.mean(g * g, axis=-1, keepdims=True) + RMS_EPS)
    out = g.reshape(B, nh, S, hd) * (1.0 - L_INIT)
    out = out.transpose(0, 2, 1, 3).reshape(B, S, D)
    return out @ p["wo"]


if __name__ == "__main__":
    key = jax.random.PRNGKey(0)
    kp, kx = jax.random.split(key)
    module_params = init_module_params(kp)
    kernel_params = prepare_kernel_params(module_params)
    x = jax.random.normal(kx, (2, 16, DIM), jnp.float32)

    y = jax.jit(diff_attention_forward)(x, kernel_params)
    y = jax.block_until_ready(y)

    y_ref = ref_forward(x, module_params)
    # bf16 MXU operands / bf16 exp / approx reciprocal widen the error vs the
    # f32 reference; structural bugs would give O(1) relative error.
    rel = float(jnp.linalg.norm(y - y_ref) / jnp.linalg.norm(y_ref))
    assert rel < 5e-2, f"mismatch vs reference: rel={rel}"
    print("KERNEL_OK")
</pallas_src>

<mosaic_0001>
module attributes {stable_mosaic.version = 11 : i64} {
  func.func @_fused_diff_attn_kernel(%arg0: i32, %arg1: memref<32x128xf32, #tpu.memory_space<vmem>>, %arg2: memref<128x640xbf16, #tpu.memory_space<vmem>>, %arg3: memref<128x128xbf16, #tpu.memory_space<vmem>>, %arg4: memref<32x128xf32, #tpu.memory_space<vmem>>) attributes {dimension_semantics = [#tpu.dimension_semantics<parallel>], iteration_bounds = array<i64: 1>, scalar_prefetch = 0 : i64, scratch_operands = 0 : i64, tpu.core_type = #tpu.core_type<tc>, window_params = [{transform_indices = @transform_0, window_bounds = array<i64: 32, 128>}, {pipeline_mode = #tpu.pipeline_mode<synchronous>, transform_indices = @transform_1, window_bounds = array<i64: 128, 640>}, {pipeline_mode = #tpu.pipeline_mode<synchronous>, transform_indices = @transform_2, window_bounds = array<i64: 128, 128>}, {transform_indices = @transform_3, window_bounds = array<i64: 32, 128>}]} {
    %c0 = arith.constant 0 : index
    %c0_0 = arith.constant 0 : index
    %0 = vector.load %arg1[%c0, %c0_0] : memref<32x128xf32, #tpu.memory_space<vmem>>, vector<32x128xf32>
    %1 = arith.truncf %0 : vector<32x128xf32> to vector<32x128xbf16>
    %c0_1 = arith.constant 0 : index
    %c0_2 = arith.constant 0 : index
    %2 = vector.load %arg2[%c0_1, %c0_2] : memref<128x640xbf16, #tpu.memory_space<vmem>>, vector<128x640xbf16>
    %cst = arith.constant dense<0.000000e+00> : vector<32x640xf32>
    %3 = tpu.matmul %1, %2, %cst {dimension_numbers = #tpu.dot_dimension_numbers<[1], [0], [0], [1], [0, 0, 1, 1], [], []>} : vector<32x128xbf16>, vector<128x640xbf16>, vector<32x640xf32> -> vector<32x640xf32>
    %4 = arith.truncf %3 : vector<32x640xf32> to vector<32x640xbf16>
    %5 = tpu.iota {dimensions = array<i32: 0>} : vector<16x16xi32>
    %6 = tpu.iota {dimensions = array<i32: 1>} : vector<16x16xi32>
    %7 = arith.cmpi sgt, %6, %5 : vector<16x16xi32>
    %cst_3 = arith.constant 0xFF800000 : f32
    %cst_4 = arith.constant 0.000000e+00 : f32
    %8 = vector.broadcast %cst_3 : f32 to vector<16x16xf32>
    %9 = vector.broadcast %cst_4 : f32 to vector<16x16xf32>
    %10 = arith.select %7, %8, %9 : vector<16x16xi1>, vector<16x16xf32>
    %11 = vector.extract_strided_slice %4 {offsets = [0, 0], sizes = [16, 640], strides = [1, 1]} : vector<32x640xbf16> to vector<16x640xbf16>
    %12 = vector.extract_strided_slice %11 {offsets = [0, 0], sizes = [16, 16], strides = [1, 1]} : vector<16x640xbf16> to vector<16x16xbf16>
    %13 = vector.extract_strided_slice %11 {offsets = [0, 128], sizes = [16, 16], strides = [1, 1]} : vector<16x640xbf16> to vector<16x16xbf16>
    %14 = vector.extract_strided_slice %11 {offsets = [0, 256], sizes = [16, 16], strides = [1, 1]} : vector<16x640xbf16> to vector<16x16xbf16>
    %15 = vector.extract_strided_slice %11 {offsets = [0, 384], sizes = [16, 16], strides = [1, 1]} : vector<16x640xbf16> to vector<16x16xbf16>
    %16 = vector.extract_strided_slice %11 {offsets = [0, 512], sizes = [16, 16], strides = [1, 1]} : vector<16x640xbf16> to vector<16x16xbf16>
    %cst_5 = arith.constant dense<0.000000e+00> : vector<16x16xf32>
    %17 = tpu.matmul %12, %14, %cst_5 {dimension_numbers = #tpu.dot_dimension_numbers<[1], [1], [0], [0], [0, 0, 1, 0], [], []>} : vector<16x16xbf16>, vector<16x16xbf16>, vector<16x16xf32> -> vector<16x16xf32>
    %18 = arith.addf %17, %10 : vector<16x16xf32>
    %cst_6 = arith.constant dense<0xFF800000> : vector<16xf32>
    %19 = vector.multi_reduction <maximumf>, %18, %cst_6 [1] : vector<16x16xf32> to vector<16xf32>
    %20 = vector.shape_cast %19 : vector<16xf32> to vector<16x1xf32>
    %21 = vector.broadcast %20 : vector<16x1xf32> to vector<16x16xf32>
    %22 = arith.subf %18, %21 : vector<16x16xf32>
    %23 = arith.truncf %22 : vector<16x16xf32> to vector<16x16xbf16>
    %24 = math.exp %23 : vector<16x16xbf16>
    %25 = arith.extf %24 : vector<16x16xbf16> to vector<16x16xf32>
    %cst_7 = arith.constant dense<0.000000e+00> : vector<16xf32>
    %26 = vector.multi_reduction <add>, %25, %cst_7 [1] : vector<16x16xf32> to vector<16xf32>
    %27 = vector.shape_cast %26 : vector<16xf32> to vector<16x1xf32>
    %28 = tpu.reciprocal %27 {approx = true} : vector<16x1xf32> -> vector<16x1xf32>
    %29 = vector.broadcast %28 : vector<16x1xf32> to vector<16x16xf32>
    %30 = arith.mulf %25, %29 : vector<16x16xf32>
    %cst_8 = arith.constant dense<0.000000e+00> : vector<16x16xf32>
    %31 = tpu.matmul %13, %15, %cst_8 {dimension_numbers = #tpu.dot_dimension_numbers<[1], [1], [0], [0], [0, 0, 1, 0], [], []>} : vector<16x16xbf16>, vector<16x16xbf16>, vector<16x16xf32> -> vector<16x16xf32>
    %32 = arith.addf %31, %10 : vector<16x16xf32>
    %cst_9 = arith.constant dense<0xFF800000> : vector<16xf32>
    %33 = vector.multi_reduction <maximumf>, %32, %cst_9 [1] : vector<16x16xf32> to vector<16xf32>
    %34 = vector.shape_cast %33 : vector<16xf32> to vector<16x1xf32>
    %35 = vector.broadcast %34 : vector<16x1xf32> to vector<16x16xf32>
    %36 = arith.subf %32, %35 : vector<16x16xf32>
    %37 = arith.truncf %36 : vector<16x16xf32> to vector<16x16xbf16>
    %38 = math.exp %37 : vector<16x16xbf16>
    %39 = arith.extf %38 : vector<16x16xbf16> to vector<16x16xf32>
    %cst_10 = arith.constant dense<0.000000e+00> : vector<16xf32>
    %40 = vector.multi_reduction <add>, %39, %cst_10 [1] : vector<16x16xf32> to vector<16xf32>
    %41 = vector.shape_cast %40 : vector<16xf32> to vector<16x1xf32>
    %42 = tpu.reciprocal %41 {approx = true} : vector<16x1xf32> -> vector<16x1xf32>
    %cst_11 = arith.constant 0.355509073 : f32
    %43 = vector.broadcast %cst_11 : f32 to vector<16x1xf32>
    %44 = arith.mulf %42, %43 : vector<16x1xf32>
    %45 = vector.broadcast %44 : vector<16x1xf32> to vector<16x16xf32>
    %46 = arith.mulf %39, %45 : vector<16x16xf32>
    %47 = arith.subf %30, %46 : vector<16x16xf32>
    %48 = arith.truncf %47 : vector<16x16xf32> to vector<16x16xbf16>
    %cst_12 = arith.constant dense<0.000000e+00> : vector<16x16xf32>
    %49 = tpu.matmul %48, %16, %cst_12 {dimension_numbers = #tpu.dot_dimension_numbers<[1], [0], [0], [1], [0, 0, 1, 1], [], []>} : vector<16x16xbf16>, vector<16x16xbf16>, vector<16x16xf32> -> vector<16x16xf32>
    %50 = vector.extract_strided_slice %11 {offsets = [0, 16], sizes = [16, 16], strides = [1, 1]} : vector<16x640xbf16> to vector<16x16xbf16>
    %51 = vector.extract_strided_slice %11 {offsets = [0, 144], sizes = [16, 16], strides = [1, 1]} : vector<16x640xbf16> to vector<16x16xbf16>
    %52 = vector.extract_strided_slice %11 {offsets = [0, 272], sizes = [16, 16], strides = [1, 1]} : vector<16x640xbf16> to vector<16x16xbf16>
    %53 = vector.extract_strided_slice %11 {offsets = [0, 400], sizes = [16, 16], strides = [1, 1]} : vector<16x640xbf16> to vector<16x16xbf16>
    %54 = vector.extract_strided_slice %11 {offsets = [0, 528], sizes = [16, 16], strides = [1, 1]} : vector<16x640xbf16> to vector<16x16xbf16>
    %cst_13 = arith.constant dense<0.000000e+00> : vector<16x16xf32>
    %55 = tpu.matmul %50, %52, %cst_13 {dimension_numbers = #tpu.dot_dimension_numbers<[1], [1], [0], [0], [0, 0, 1, 0], [], []>} : vector<16x16xbf16>, vector<16x16xbf16>, vector<16x16xf32> -> vector<16x16xf32>
    %56 = arith.addf %55, %10 : vector<16x16xf32>
    %cst_14 = arith.constant dense<0xFF800000> : vector<16xf32>
    %57 = vector.multi_reduction <maximumf>, %56, %cst_14 [1] : vector<16x16xf32> to vector<16xf32>
    %58 = vector.shape_cast %57 : vector<16xf32> to vector<16x1xf32>
    %59 = vector.broadcast %58 : vector<16x1xf32> to vector<16x16xf32>
    %60 = arith.subf %56, %59 : vector<16x16xf32>
    %61 = arith.truncf %60 : vector<16x16xf32> to vector<16x16xbf16>
    %62 = math.exp %61 : vector<16x16xbf16>
    %63 = arith.extf %62 : vector<16x16xbf16> to vector<16x16xf32>
    %cst_15 = arith.constant dense<0.000000e+00> : vector<16xf32>
    %64 = vector.multi_reduction <add>, %63, %cst_15 [1] : vector<16x16xf32> to vector<16xf32>
    %65 = vector.shape_cast %64 : vector<16xf32> to vector<16x1xf32>
    %66 = tpu.reciprocal %65 {approx = true} : vector<16x1xf32> -> vector<16x1xf32>
    %67 = vector.broadcast %66 : vector<16x1xf32> to vector<16x16xf32>
    %68 = arith.mulf %63, %67 : vector<16x16xf32>
    %cst_16 = arith.constant dense<0.000000e+00> : vector<16x16xf32>
    %69 = tpu.matmul %51, %53, %cst_16 {dimension_numbers = #tpu.dot_dimension_numbers<[1], [1], [0], [0], [0, 0, 1, 0], [], []>} : vector<16x16xbf16>, vector<16x16xbf16>, vector<16x16xf32> -> vector<16x16xf32>
    %70 = arith.addf %69, %10 : vector<16x16xf32>
    %cst_17 = arith.constant dense<0xFF800000> : vector<16xf32>
    %71 = vector.multi_reduction <maximumf>, %70, %cst_17 [1] : vector<16x16xf32> to vector<16xf32>
    %72 = vector.shape_cast %71 : vector<16xf32> to vector<16x1xf32>
    %73 = vector.broadcast %72 : vector<16x1xf32> to vector<16x16xf32>
    %74 = arith.subf %70, %73 : vector<16x16xf32>
    %75 = arith.truncf %74 : vector<16x16xf32> to vector<16x16xbf16>
    %76 = math.exp %75 : vector<16x16xbf16>
    %77 = arith.extf %76 : vector<16x16xbf16> to vector<16x16xf32>
    %cst_18 = arith.constant dense<0.000000e+00> : vector<16xf32>
    %78 = vector.multi_reduction <add>, %77, %cst_18 [1] : vector<16x16xf32> to vector<16xf32>
    %79 = vector.shape_cast %78 : vector<16xf32> to vector<16x1xf32>
    %80 = tpu.reciprocal %79 {approx = true} : vector<16x1xf32> -> vector<16x1xf32>
    %cst_19 = arith.constant 0.355509073 : f32
    %81 = vector.broadcast %cst_19 : f32 to vector<16x1xf32>
    %82 = arith.mulf %80, %81 : vector<16x1xf32>
    %83 = vector.broadcast %82 : vector<16x1xf32> to vector<16x16xf32>
    %84 = arith.mulf %77, %83 : vector<16x16xf32>
    %85 = arith.subf %68, %84 : vector<16x16xf32>
    %86 = arith.truncf %85 : vector<16x16xf32> to vector<16x16xbf16>
    %cst_20 = arith.constant dense<0.000000e+00> : vector<16x16xf32>
    %87 = tpu.matmul %86, %54, %cst_20 {dimension_numbers = #tpu.dot_dimension_numbers<[1], [0], [0], [1], [0, 0, 1, 1], [], []>} : vector<16x16xbf16>, vector<16x16xbf16>, vector<16x16xf32> -> vector<16x16xf32>
    %88 = vector.extract_strided_slice %11 {offsets = [0, 32], sizes = [16, 16], strides = [1, 1]} : vector<16x640xbf16> to vector<16x16xbf16>
    %89 = vector.extract_strided_slice %11 {offsets = [0, 160], sizes = [16, 16], strides = [1, 1]} : vector<16x640xbf16> to vector<16x16xbf16>
    %90 = vector.extract_strided_slice %11 {offsets = [0, 288], sizes = [16, 16], strides = [1, 1]} : vector<16x640xbf16> to vector<16x16xbf16>
    %91 = vector.extract_strided_slice %11 {offsets = [0, 416], sizes = [16, 16], strides = [1, 1]} : vector<16x640xbf16> to vector<16x16xbf16>
    %92 = vector.extract_strided_slice %11 {offsets = [0, 544], sizes = [16, 16], strides = [1, 1]} : vector<16x640xbf16> to vector<16x16xbf16>
    %cst_21 = arith.constant dense<0.000000e+00> : vector<16x16xf32>
    %93 = tpu.matmul %88, %90, %cst_21 {dimension_numbers = #tpu.dot_dimension_numbers<[1], [1], [0], [0], [0, 0, 1, 0], [], []>} : vector<16x16xbf16>, vector<16x16xbf16>, vector<16x16xf32> -> vector<16x16xf32>
    %94 = arith.addf %93, %10 : vector<16x16xf32>
    %cst_22 = arith.constant dense<0xFF800000> : vector<16xf32>
    %95 = vector.multi_reduction <maximumf>, %94, %cst_22 [1] : vector<16x16xf32> to vector<16xf32>
    %96 = vector.shape_cast %95 : vector<16xf32> to vector<16x1xf32>
    %97 = vector.broadcast %96 : vector<16x1xf32> to vector<16x16xf32>
    %98 = arith.subf %94, %97 : vector<16x16xf32>
    %99 = arith.truncf %98 : vector<16x16xf32> to vector<16x16xbf16>
    %100 = math.exp %99 : vector<16x16xbf16>
    %101 = arith.extf %100 : vector<16x16xbf16> to vector<16x16xf32>
    %cst_23 = arith.constant dense<0.000000e+00> : vector<16xf32>
    %102 = vector.multi_reduction <add>, %101, %cst_23 [1] : vector<16x16xf32> to vector<16xf32>
    %103 = vector.shape_cast %102 : vector<16xf32> to vector<16x1xf32>
    %104 = tpu.reciprocal %103 {approx = true} : vector<16x1xf32> -> vector<16x1xf32>
    %105 = vector.broadcast %104 : vector<16x1xf32> to vector<16x16xf32>
    %106 = arith.mulf %101, %105 : vector<16x16xf32>
    %cst_24 = arith.constant dense<0.000000e+00> : vector<16x16xf32>
    %107 = tpu.matmul %89, %91, %cst_24 {dimension_numbers = #tpu.dot_dimension_numbers<[1], [1], [0], [0], [0, 0, 1, 0], [], []>} : vector<16x16xbf16>, vector<16x16xbf16>, vector<16x16xf32> -> vector<16x16xf32>
    %108 = arith.addf %107, %10 : vector<16x16xf32>
    %cst_25 = arith.constant dense<0xFF800000> : vector<16xf32>
    %109 = vector.multi_reduction <maximumf>, %108, %cst_25 [1] : vector<16x16xf32> to vector<16xf32>
    %110 = vector.shape_cast %109 : vector<16xf32> to vector<16x1xf32>
    %111 = vector.broadcast %110 : vector<16x1xf32> to vector<16x16xf32>
    %112 = arith.subf %108, %111 : vector<16x16xf32>
    %113 = arith.truncf %112 : vector<16x16xf32> to vector<16x16xbf16>
    %114 = math.exp %113 : vector<16x16xbf16>
    %115 = arith.extf %114 : vector<16x16xbf16> to vector<16x16xf32>
    %cst_26 = arith.constant dense<0.000000e+00> : vector<16xf32>
    %116 = vector.multi_reduction <add>, %115, %cst_26 [1] : vector<16x16xf32> to vector<16xf32>
    %117 = vector.shape_cast %116 : vector<16xf32> to vector<16x1xf32>
    %118 = tpu.reciprocal %117 {approx = true} : vector<16x1xf32> -> vector<16x1xf32>
    %cst_27 = arith.constant 0.355509073 : f32
    %119 = vector.broadcast %cst_27 : f32 to vector<16x1xf32>
    %120 = arith.mulf %118, %119 : vector<16x1xf32>
    %121 = vector.broadcast %120 : vector<16x1xf32> to vector<16x16xf32>
    %122 = arith.mulf %115, %121 : vector<16x16xf32>
    %123 = arith.subf %106, %122 : vector<16x16xf32>
    %124 = arith.truncf %123 : vector<16x16xf32> to vector<16x16xbf16>
    %cst_28 = arith.constant dense<0.000000e+00> : vector<16x16xf32>
    %125 = tpu.matmul %124, %92, %cst_28 {dimension_numbers = #tpu.dot_dimension_numbers<[1], [0], [0], [1], [0, 0, 1, 1], [], []>} : vector<16x16xbf16>, vector<16x16xbf16>, vector<16x16xf32> -> vector<16x16xf32>
    %126 = vector.extract_strided_slice %11 {offsets = [0, 48], sizes = [16, 16], strides = [1, 1]} : vector<16x640xbf16> to vector<16x16xbf16>
    %127 = vector.extract_strided_slice %11 {offsets = [0, 176], sizes = [16, 16], strides = [1, 1]} : vector<16x640xbf16> to vector<16x16xbf16>
    %128 = vector.extract_strided_slice %11 {offsets = [0, 304], sizes = [16, 16], strides = [1, 1]} : vector<16x640xbf16> to vector<16x16xbf16>
    %129 = vector.extract_strided_slice %11 {offsets = [0, 432], sizes = [16, 16], strides = [1, 1]} : vector<16x640xbf16> to vector<16x16xbf16>
    %130 = vector.extract_strided_slice %11 {offsets = [0, 560], sizes = [16, 16], strides = [1, 1]} : vector<16x640xbf16> to vector<16x16xbf16>
    %cst_29 = arith.constant dense<0.000000e+00> : vector<16x16xf32>
    %131 = tpu.matmul %126, %128, %cst_29 {dimension_numbers = #tpu.dot_dimension_numbers<[1], [1], [0], [0], [0, 0, 1, 0], [], []>} : vector<16x16xbf16>, vector<16x16xbf16>, vector<16x16xf32> -> vector<16x16xf32>
    %132 = arith.addf %131, %10 : vector<16x16xf32>
    %cst_30 = arith.constant dense<0xFF800000> : vector<16xf32>
    %133 = vector.multi_reduction <maximumf>, %132, %cst_30 [1] : vector<16x16xf32> to vector<16xf32>
    %134 = vector.shape_cast %133 : vector<16xf32> to vector<16x1xf32>
    %135 = vector.broadcast %134 : vector<16x1xf32> to vector<16x16xf32>
    %136 = arith.subf %132, %135 : vector<16x16xf32>
    %137 = arith.truncf %136 : vector<16x16xf32> to vector<16x16xbf16>
    %138 = math.exp %137 : vector<16x16xbf16>
    %139 = arith.extf %138 : vector<16x16xbf16> to vector<16x16xf32>
    %cst_31 = arith.constant dense<0.000000e+00> : vector<16xf32>
    %140 = vector.multi_reduction <add>, %139, %cst_31 [1] : vector<16x16xf32> to vector<16xf32>
    %141 = vector.shape_cast %140 : vector<16xf32> to vector<16x1xf32>
    %142 = tpu.reciprocal %141 {approx = true} : vector<16x1xf32> -> vector<16x1xf32>
    %143 = vector.broadcast %142 : vector<16x1xf32> to vector<16x16xf32>
    %144 = arith.mulf %139, %143 : vector<16x16xf32>
    %cst_32 = arith.constant dense<0.000000e+00> : vector<16x16xf32>
    %145 = tpu.matmul %127, %129, %cst_32 {dimension_numbers = #tpu.dot_dimension_numbers<[1], [1], [0], [0], [0, 0, 1, 0], [], []>} : vector<16x16xbf16>, vector<16x16xbf16>, vector<16x16xf32> -> vector<16x16xf32>
    %146 = arith.addf %145, %10 : vector<16x16xf32>
    %cst_33 = arith.constant dense<0xFF800000> : vector<16xf32>
    %147 = vector.multi_reduction <maximumf>, %146, %cst_33 [1] : vector<16x16xf32> to vector<16xf32>
    %148 = vector.shape_cast %147 : vector<16xf32> to vector<16x1xf32>
    %149 = vector.broadcast %148 : vector<16x1xf32> to vector<16x16xf32>
    %150 = arith.subf %146, %149 : vector<16x16xf32>
    %151 = arith.truncf %150 : vector<16x16xf32> to vector<16x16xbf16>
    %152 = math.exp %151 : vector<16x16xbf16>
    %153 = arith.extf %152 : vector<16x16xbf16> to vector<16x16xf32>
    %cst_34 = arith.constant dense<0.000000e+00> : vector<16xf32>
    %154 = vector.multi_reduction <add>, %153, %cst_34 [1] : vector<16x16xf32> to vector<16xf32>
    %155 = vector.shape_cast %154 : vector<16xf32> to vector<16x1xf32>
    %156 = tpu.reciprocal %155 {approx = true} : vector<16x1xf32> -> vector<16x1xf32>
    %cst_35 = arith.constant 0.355509073 : f32
    %157 = vector.broadcast %cst_35 : f32 to vector<16x1xf32>
    %158 = arith.mulf %156, %157 : vector<16x1xf32>
    %159 = vector.broadcast %158 : vector<16x1xf32> to vector<16x16xf32>
    %160 = arith.mulf %153, %159 : vector<16x16xf32>
    %161 = arith.subf %144, %160 : vector<16x16xf32>
    %162 = arith.truncf %161 : vector<16x16xf32> to vector<16x16xbf16>
    %cst_36 = arith.constant dense<0.000000e+00> : vector<16x16xf32>
    %163 = tpu.matmul %162, %130, %cst_36 {dimension_numbers = #tpu.dot_dimension_numbers<[1], [0], [0], [1], [0, 0, 1, 1], [], []>} : vector<16x16xbf16>, vector<16x16xbf16>, vector<16x16xf32> -> vector<16x16xf32>
    %164 = vector.extract_strided_slice %11 {offsets = [0, 64], sizes = [16, 16], strides = [1, 1]} : vector<16x640xbf16> to vector<16x16xbf16>
    %165 = vector.extract_strided_slice %11 {offsets = [0, 192], sizes = [16, 16], strides = [1, 1]} : vector<16x640xbf16> to vector<16x16xbf16>
    %166 = vector.extract_strided_slice %11 {offsets = [0, 320], sizes = [16, 16], strides = [1, 1]} : vector<16x640xbf16> to vector<16x16xbf16>
    %167 = vector.extract_strided_slice %11 {offsets = [0, 448], sizes = [16, 16], strides = [1, 1]} : vector<16x640xbf16> to vector<16x16xbf16>
    %168 = vector.extract_strided_slice %11 {offsets = [0, 576], sizes = [16, 16], strides = [1, 1]} : vector<16x640xbf16> to vector<16x16xbf16>
    %cst_37 = arith.constant dense<0.000000e+00> : vector<16x16xf32>
    %169 = tpu.matmul %164, %166, %cst_37 {dimension_numbers = #tpu.dot_dimension_numbers<[1], [1], [0], [0], [0, 0, 1, 0], [], []>} : vector<16x16xbf16>, vector<16x16xbf16>, vector<16x16xf32> -> vector<16x16xf32>
    %170 = arith.addf %169, %10 : vector<16x16xf32>
    %cst_38 = arith.constant dense<0xFF800000> : vector<16xf32>
    %171 = vector.multi_reduction <maximumf>, %170, %cst_38 [1] : vector<16x16xf32> to vector<16xf32>
    %172 = vector.shape_cast %171 : vector<16xf32> to vector<16x1xf32>
    %173 = vector.broadcast %172 : vector<16x1xf32> to vector<16x16xf32>
    %174 = arith.subf %170, %173 : vector<16x16xf32>
    %175 = arith.truncf %174 : vector<16x16xf32> to vector<16x16xbf16>
    %176 = math.exp %175 : vector<16x16xbf16>
    %177 = arith.extf %176 : vector<16x16xbf16> to vector<16x16xf32>
    %cst_39 = arith.constant dense<0.000000e+00> : vector<16xf32>
    %178 = vector.multi_reduction <add>, %177, %cst_39 [1] : vector<16x16xf32> to vector<16xf32>
    %179 = vector.shape_cast %178 : vector<16xf32> to vector<16x1xf32>
    %180 = tpu.reciprocal %179 {approx = true} : vector<16x1xf32> -> vector<16x1xf32>
    %181 = vector.broadcast %180 : vector<16x1xf32> to vector<16x16xf32>
    %182 = arith.mulf %177, %181 : vector<16x16xf32>
    %cst_40 = arith.constant dense<0.000000e+00> : vector<16x16xf32>
    %183 = tpu.matmul %165, %167, %cst_40 {dimension_numbers = #tpu.dot_dimension_numbers<[1], [1], [0], [0], [0, 0, 1, 0], [], []>} : vector<16x16xbf16>, vector<16x16xbf16>, vector<16x16xf32> -> vector<16x16xf32>
    %184 = arith.addf %183, %10 : vector<16x16xf32>
    %cst_41 = arith.constant dense<0xFF800000> : vector<16xf32>
    %185 = vector.multi_reduction <maximumf>, %184, %cst_41 [1] : vector<16x16xf32> to vector<16xf32>
    %186 = vector.shape_cast %185 : vector<16xf32> to vector<16x1xf32>
    %187 = vector.broadcast %186 : vector<16x1xf32> to vector<16x16xf32>
    %188 = arith.subf %184, %187 : vector<16x16xf32>
    %189 = arith.truncf %188 : vector<16x16xf32> to vector<16x16xbf16>
    %190 = math.exp %189 : vector<16x16xbf16>
    %191 = arith.extf %190 : vector<16x16xbf16> to vector<16x16xf32>
    %cst_42 = arith.constant dense<0.000000e+00> : vector<16xf32>
    %192 = vector.multi_reduction <add>, %191, %cst_42 [1] : vector<16x16xf32> to vector<16xf32>
    %193 = vector.shape_cast %192 : vector<16xf32> to vector<16x1xf32>
    %194 = tpu.reciprocal %193 {approx = true} : vector<16x1xf32> -> vector<16x1xf32>
    %cst_43 = arith.constant 0.355509073 : f32
    %195 = vector.broadcast %cst_43 : f32 to vector<16x1xf32>
    %196 = arith.mulf %194, %195 : vector<16x1xf32>
    %197 = vector.broadcast %196 : vector<16x1xf32> to vector<16x16xf32>
    %198 = arith.mulf %191, %197 : vector<16x16xf32>
    %199 = arith.subf %182, %198 : vector<16x16xf32>
    %200 = arith.truncf %199 : vector<16x16xf32> to vector<16x16xbf16>
    %cst_44 = arith.constant dense<0.000000e+00> : vector<16x16xf32>
    %201 = tpu.matmul %200, %168, %cst_44 {dimension_numbers = #tpu.dot_dimension_numbers<[1], [0], [0], [1], [0, 0, 1, 1], [], []>} : vector<16x16xbf16>, vector<16x16xbf16>, vector<16x16xf32> -> vector<16x16xf32>
    %202 = vector.extract_strided_slice %11 {offsets = [0, 80], sizes = [16, 16], strides = [1, 1]} : vector<16x640xbf16> to vector<16x16xbf16>
    %203 = vector.extract_strided_slice %11 {offsets = [0, 208], sizes = [16, 16], strides = [1, 1]} : vector<16x640xbf16> to vector<16x16xbf16>
    %204 = vector.extract_strided_slice %11 {offsets = [0, 336], sizes = [16, 16], strides = [1, 1]} : vector<16x640xbf16> to vector<16x16xbf16>
    %205 = vector.extract_strided_slice %11 {offsets = [0, 464], sizes = [16, 16], strides = [1, 1]} : vector<16x640xbf16> to vector<16x16xbf16>
    %206 = vector.extract_strided_slice %11 {offsets = [0, 592], sizes = [16, 16], strides = [1, 1]} : vector<16x640xbf16> to vector<16x16xbf16>
    %cst_45 = arith.constant dense<0.000000e+00> : vector<16x16xf32>
    %207 = tpu.matmul %202, %204, %cst_45 {dimension_numbers = #tpu.dot_dimension_numbers<[1], [1], [0], [0], [0, 0, 1, 0], [], []>} : vector<16x16xbf16>, vector<16x16xbf16>, vector<16x16xf32> -> vector<16x16xf32>
    %208 = arith.addf %207, %10 : vector<16x16xf32>
    %cst_46 = arith.constant dense<0xFF800000> : vector<16xf32>
    %209 = vector.multi_reduction <maximumf>, %208, %cst_46 [1] : vector<16x16xf32> to vector<16xf32>
    %210 = vector.shape_cast %209 : vector<16xf32> to vector<16x1xf32>
    %211 = vector.broadcast %210 : vector<16x1xf32> to vector<16x16xf32>
    %212 = arith.subf %208, %211 : vector<16x16xf32>
    %213 = arith.truncf %212 : vector<16x16xf32> to vector<16x16xbf16>
    %214 = math.exp %213 : vector<16x16xbf16>
    %215 = arith.extf %214 : vector<16x16xbf16> to vector<16x16xf32>
    %cst_47 = arith.constant dense<0.000000e+00> : vector<16xf32>
    %216 = vector.multi_reduction <add>, %215, %cst_47 [1] : vector<16x16xf32> to vector<16xf32>
    %217 = vector.shape_cast %216 : vector<16xf32> to vector<16x1xf32>
    %218 = tpu.reciprocal %217 {approx = true} : vector<16x1xf32> -> vector<16x1xf32>
    %219 = vector.broadcast %218 : vector<16x1xf32> to vector<16x16xf32>
    %220 = arith.mulf %215, %219 : vector<16x16xf32>
    %cst_48 = arith.constant dense<0.000000e+00> : vector<16x16xf32>
    %221 = tpu.matmul %203, %205, %cst_48 {dimension_numbers = #tpu.dot_dimension_numbers<[1], [1], [0], [0], [0, 0, 1, 0], [], []>} : vector<16x16xbf16>, vector<16x16xbf16>, vector<16x16xf32> -> vector<16x16xf32>
    %222 = arith.addf %221, %10 : vector<16x16xf32>
    %cst_49 = arith.constant dense<0xFF800000> : vector<16xf32>
    %223 = vector.multi_reduction <maximumf>, %222, %cst_49 [1] : vector<16x16xf32> to vector<16xf32>
    %224 = vector.shape_cast %223 : vector<16xf32> to vector<16x1xf32>
    %225 = vector.broadcast %224 : vector<16x1xf32> to vector<16x16xf32>
    %226 = arith.subf %222, %225 : vector<16x16xf32>
    %227 = arith.truncf %226 : vector<16x16xf32> to vector<16x16xbf16>
    %228 = math.exp %227 : vector<16x16xbf16>
    %229 = arith.extf %228 : vector<16x16xbf16> to vector<16x16xf32>
    %cst_50 = arith.constant dense<0.000000e+00> : vector<16xf32>
    %230 = vector.multi_reduction <add>, %229, %cst_50 [1] : vector<16x16xf32> to vector<16xf32>
    %231 = vector.shape_cast %230 : vector<16xf32> to vector<16x1xf32>
    %232 = tpu.reciprocal %231 {approx = true} : vector<16x1xf32> -> vector<16x1xf32>
    %cst_51 = arith.constant 0.355509073 : f32
    %233 = vector.broadcast %cst_51 : f32 to vector<16x1xf32>
    %234 = arith.mulf %232, %233 : vector<16x1xf32>
    %235 = vector.broadcast %234 : vector<16x1xf32> to vector<16x16xf32>
    %236 = arith.mulf %229, %235 : vector<16x16xf32>
    %237 = arith.subf %220, %236 : vector<16x16xf32>
    %238 = arith.truncf %237 : vector<16x16xf32> to vector<16x16xbf16>
    %cst_52 = arith.constant dense<0.000000e+00> : vector<16x16xf32>
    %239 = tpu.matmul %238, %206, %cst_52 {dimension_numbers = #tpu.dot_dimension_numbers<[1], [0], [0], [1], [0, 0, 1, 1], [], []>} : vector<16x16xbf16>, vector<16x16xbf16>, vector<16x16xf32> -> vector<16x16xf32>
    %240 = vector.extract_strided_slice %11 {offsets = [0, 96], sizes = [16, 16], strides = [1, 1]} : vector<16x640xbf16> to vector<16x16xbf16>
    %241 = vector.extract_strided_slice %11 {offsets = [0, 224], sizes = [16, 16], strides = [1, 1]} : vector<16x640xbf16> to vector<16x16xbf16>
    %242 = vector.extract_strided_slice %11 {offsets = [0, 352], sizes = [16, 16], strides = [1, 1]} : vector<16x640xbf16> to vector<16x16xbf16>
    %243 = vector.extract_strided_slice %11 {offsets = [0, 480], sizes = [16, 16], strides = [1, 1]} : vector<16x640xbf16> to vector<16x16xbf16>
    %244 = vector.extract_strided_slice %11 {offsets = [0, 608], sizes = [16, 16], strides = [1, 1]} : vector<16x640xbf16> to vector<16x16xbf16>
    %cst_53 = arith.constant dense<0.000000e+00> : vector<16x16xf32>
    %245 = tpu.matmul %240, %242, %cst_53 {dimension_numbers = #tpu.dot_dimension_numbers<[1], [1], [0], [0], [0, 0, 1, 0], [], []>} : vector<16x16xbf16>, vector<16x16xbf16>, vector<16x16xf32> -> vector<16x16xf32>
    %246 = arith.addf %245, %10 : vector<16x16xf32>
    %cst_54 = arith.constant dense<0xFF800000> : vector<16xf32>
    %247 = vector.multi_reduction <maximumf>, %246, %cst_54 [1] : vector<16x16xf32> to vector<16xf32>
    %248 = vector.shape_cast %247 : vector<16xf32> to vector<16x1xf32>
    %249 = vector.broadcast %248 : vector<16x1xf32> to vector<16x16xf32>
    %250 = arith.subf %246, %249 : vector<16x16xf32>
    %251 = arith.truncf %250 : vector<16x16xf32> to vector<16x16xbf16>
    %252 = math.exp %251 : vector<16x16xbf16>
    %253 = arith.extf %252 : vector<16x16xbf16> to vector<16x16xf32>
    %cst_55 = arith.constant dense<0.000000e+00> : vector<16xf32>
    %254 = vector.multi_reduction <add>, %253, %cst_55 [1] : vector<16x16xf32> to vector<16xf32>
    %255 = vector.shape_cast %254 : vector<16xf32> to vector<16x1xf32>
    %256 = tpu.reciprocal %255 {approx = true} : vector<16x1xf32> -> vector<16x1xf32>
    %257 = vector.broadcast %256 : vector<16x1xf32> to vector<16x16xf32>
    %258 = arith.mulf %253, %257 : vector<16x16xf32>
    %cst_56 = arith.constant dense<0.000000e+00> : vector<16x16xf32>
    %259 = tpu.matmul %241, %243, %cst_56 {dimension_numbers = #tpu.dot_dimension_numbers<[1], [1], [0], [0], [0, 0, 1, 0], [], []>} : vector<16x16xbf16>, vector<16x16xbf16>, vector<16x16xf32> -> vector<16x16xf32>
    %260 = arith.addf %259, %10 : vector<16x16xf32>
    %cst_57 = arith.constant dense<0xFF800000> : vector<16xf32>
    %261 = vector.multi_reduction <maximumf>, %260, %cst_57 [1] : vector<16x16xf32> to vector<16xf32>
    %262 = vector.shape_cast %261 : vector<16xf32> to vector<16x1xf32>
    %263 = vector.broadcast %262 : vector<16x1xf32> to vector<16x16xf32>
    %264 = arith.subf %260, %263 : vector<16x16xf32>
    %265 = arith.truncf %264 : vector<16x16xf32> to vector<16x16xbf16>
    %266 = math.exp %265 : vector<16x16xbf16>
    %267 = arith.extf %266 : vector<16x16xbf16> to vector<16x16xf32>
    %cst_58 = arith.constant dense<0.000000e+00> : vector<16xf32>
    %268 = vector.multi_reduction <add>, %267, %cst_58 [1] : vector<16x16xf32> to vector<16xf32>
    %269 = vector.shape_cast %268 : vector<16xf32> to vector<16x1xf32>
    %270 = tpu.reciprocal %269 {approx = true} : vector<16x1xf32> -> vector<16x1xf32>
    %cst_59 = arith.constant 0.355509073 : f32
    %271 = vector.broadcast %cst_59 : f32 to vector<16x1xf32>
    %272 = arith.mulf %270, %271 : vector<16x1xf32>
    %273 = vector.broadcast %272 : vector<16x1xf32> to vector<16x16xf32>
    %274 = arith.mulf %267, %273 : vector<16x16xf32>
    %275 = arith.subf %258, %274 : vector<16x16xf32>
    %276 = arith.truncf %275 : vector<16x16xf32> to vector<16x16xbf16>
    %cst_60 = arith.constant dense<0.000000e+00> : vector<16x16xf32>
    %277 = tpu.matmul %276, %244, %cst_60 {dimension_numbers = #tpu.dot_dimension_numbers<[1], [0], [0], [1], [0, 0, 1, 1], [], []>} : vector<16x16xbf16>, vector<16x16xbf16>, vector<16x16xf32> -> vector<16x16xf32>
    %278 = vector.extract_strided_slice %11 {offsets = [0, 112], sizes = [16, 16], strides = [1, 1]} : vector<16x640xbf16> to vector<16x16xbf16>
    %279 = vector.extract_strided_slice %11 {offsets = [0, 240], sizes = [16, 16], strides = [1, 1]} : vector<16x640xbf16> to vector<16x16xbf16>
    %280 = vector.extract_strided_slice %11 {offsets = [0, 368], sizes = [16, 16], strides = [1, 1]} : vector<16x640xbf16> to vector<16x16xbf16>
    %281 = vector.extract_strided_slice %11 {offsets = [0, 496], sizes = [16, 16], strides = [1, 1]} : vector<16x640xbf16> to vector<16x16xbf16>
    %282 = vector.extract_strided_slice %11 {offsets = [0, 624], sizes = [16, 16], strides = [1, 1]} : vector<16x640xbf16> to vector<16x16xbf16>
    %cst_61 = arith.constant dense<0.000000e+00> : vector<16x16xf32>
    %283 = tpu.matmul %278, %280, %cst_61 {dimension_numbers = #tpu.dot_dimension_numbers<[1], [1], [0], [0], [0, 0, 1, 0], [], []>} : vector<16x16xbf16>, vector<16x16xbf16>, vector<16x16xf32> -> vector<16x16xf32>
    %284 = arith.addf %283, %10 : vector<16x16xf32>
    %cst_62 = arith.constant dense<0xFF800000> : vector<16xf32>
    %285 = vector.multi_reduction <maximumf>, %284, %cst_62 [1] : vector<16x16xf32> to vector<16xf32>
    %286 = vector.shape_cast %285 : vector<16xf32> to vector<16x1xf32>
    %287 = vector.broadcast %286 : vector<16x1xf32> to vector<16x16xf32>
    %288 = arith.subf %284, %287 : vector<16x16xf32>
    %289 = arith.truncf %288 : vector<16x16xf32> to vector<16x16xbf16>
    %290 = math.exp %289 : vector<16x16xbf16>
    %291 = arith.extf %290 : vector<16x16xbf16> to vector<16x16xf32>
    %cst_63 = arith.constant dense<0.000000e+00> : vector<16xf32>
    %292 = vector.multi_reduction <add>, %291, %cst_63 [1] : vector<16x16xf32> to vector<16xf32>
    %293 = vector.shape_cast %292 : vector<16xf32> to vector<16x1xf32>
    %294 = tpu.reciprocal %293 {approx = true} : vector<16x1xf32> -> vector<16x1xf32>
    %295 = vector.broadcast %294 : vector<16x1xf32> to vector<16x16xf32>
    %296 = arith.mulf %291, %295 : vector<16x16xf32>
    %cst_64 = arith.constant dense<0.000000e+00> : vector<16x16xf32>
    %297 = tpu.matmul %279, %281, %cst_64 {dimension_numbers = #tpu.dot_dimension_numbers<[1], [1], [0], [0], [0, 0, 1, 0], [], []>} : vector<16x16xbf16>, vector<16x16xbf16>, vector<16x16xf32> -> vector<16x16xf32>
    %298 = arith.addf %297, %10 : vector<16x16xf32>
    %cst_65 = arith.constant dense<0xFF800000> : vector<16xf32>
    %299 = vector.multi_reduction <maximumf>, %298, %cst_65 [1] : vector<16x16xf32> to vector<16xf32>
    %300 = vector.shape_cast %299 : vector<16xf32> to vector<16x1xf32>
    %301 = vector.broadcast %300 : vector<16x1xf32> to vector<16x16xf32>
    %302 = arith.subf %298, %301 : vector<16x16xf32>
    %303 = arith.truncf %302 : vector<16x16xf32> to vector<16x16xbf16>
    %304 = math.exp %303 : vector<16x16xbf16>
    %305 = arith.extf %304 : vector<16x16xbf16> to vector<16x16xf32>
    %cst_66 = arith.constant dense<0.000000e+00> : vector<16xf32>
    %306 = vector.multi_reduction <add>, %305, %cst_66 [1] : vector<16x16xf32> to vector<16xf32>
    %307 = vector.shape_cast %306 : vector<16xf32> to vector<16x1xf32>
    %308 = tpu.reciprocal %307 {approx = true} : vector<16x1xf32> -> vector<16x1xf32>
    %cst_67 = arith.constant 0.355509073 : f32
    %309 = vector.broadcast %cst_67 : f32 to vector<16x1xf32>
    %310 = arith.mulf %308, %309 : vector<16x1xf32>
    %311 = vector.broadcast %310 : vector<16x1xf32> to vector<16x16xf32>
    %312 = arith.mulf %305, %311 : vector<16x16xf32>
    %313 = arith.subf %296, %312 : vector<16x16xf32>
    %314 = arith.truncf %313 : vector<16x16xf32> to vector<16x16xbf16>
    %cst_68 = arith.constant dense<0.000000e+00> : vector<16x16xf32>
    %315 = tpu.matmul %314, %282, %cst_68 {dimension_numbers = #tpu.dot_dimension_numbers<[1], [0], [0], [1], [0, 0, 1, 1], [], []>} : vector<16x16xbf16>, vector<16x16xbf16>, vector<16x16xf32> -> vector<16x16xf32>
    %316 = tpu.concatenate %49, %87, %125, %163, %201, %239, %277, %315 in 1 : vector<16x16xf32>, vector<16x16xf32>, vector<16x16xf32>, vector<16x16xf32>, vector<16x16xf32>, vector<16x16xf32>, vector<16x16xf32>, vector<16x16xf32> -> vector<16x128xf32>
    %317 = vector.extract_strided_slice %4 {offsets = [16, 0], sizes = [16, 640], strides = [1, 1]} : vector<32x640xbf16> to vector<16x640xbf16>
    %318 = vector.extract_strided_slice %317 {offsets = [0, 0], sizes = [16, 16], strides = [1, 1]} : vector<16x640xbf16> to vector<16x16xbf16>
    %319 = vector.extract_strided_slice %317 {offsets = [0, 128], sizes = [16, 16], strides = [1, 1]} : vector<16x640xbf16> to vector<16x16xbf16>
    %320 = vector.extract_strided_slice %317 {offsets = [0, 256], sizes = [16, 16], strides = [1, 1]} : vector<16x640xbf16> to vector<16x16xbf16>
    %321 = vector.extract_strided_slice %317 {offsets = [0, 384], sizes = [16, 16], strides = [1, 1]} : vector<16x640xbf16> to vector<16x16xbf16>
    %322 = vector.extract_strided_slice %317 {offsets = [0, 512], sizes = [16, 16], strides = [1, 1]} : vector<16x640xbf16> to vector<16x16xbf16>
    %cst_69 = arith.constant dense<0.000000e+00> : vector<16x16xf32>
    %323 = tpu.matmul %318, %320, %cst_69 {dimension_numbers = #tpu.dot_dimension_numbers<[1], [1], [0], [0], [0, 0, 1, 0], [], []>} : vector<16x16xbf16>, vector<16x16xbf16>, vector<16x16xf32> -> vector<16x16xf32>
    %324 = arith.addf %323, %10 : vector<16x16xf32>
    %cst_70 = arith.constant dense<0xFF800000> : vector<16xf32>
    %325 = vector.multi_reduction <maximumf>, %324, %cst_70 [1] : vector<16x16xf32> to vector<16xf32>
    %326 = vector.shape_cast %325 : vector<16xf32> to vector<16x1xf32>
    %327 = vector.broadcast %326 : vector<16x1xf32> to vector<16x16xf32>
    %328 = arith.subf %324, %327 : vector<16x16xf32>
    %329 = arith.truncf %328 : vector<16x16xf32> to vector<16x16xbf16>
    %330 = math.exp %329 : vector<16x16xbf16>
    %331 = arith.extf %330 : vector<16x16xbf16> to vector<16x16xf32>
    %cst_71 = arith.constant dense<0.000000e+00> : vector<16xf32>
    %332 = vector.multi_reduction <add>, %331, %cst_71 [1] : vector<16x16xf32> to vector<16xf32>
    %333 = vector.shape_cast %332 : vector<16xf32> to vector<16x1xf32>
    %334 = tpu.reciprocal %333 {approx = true} : vector<16x1xf32> -> vector<16x1xf32>
    %335 = vector.broadcast %334 : vector<16x1xf32> to vector<16x16xf32>
    %336 = arith.mulf %331, %335 : vector<16x16xf32>
    %cst_72 = arith.constant dense<0.000000e+00> : vector<16x16xf32>
    %337 = tpu.matmul %319, %321, %cst_72 {dimension_numbers = #tpu.dot_dimension_numbers<[1], [1], [0], [0], [0, 0, 1, 0], [], []>} : vector<16x16xbf16>, vector<16x16xbf16>, vector<16x16xf32> -> vector<16x16xf32>
    %338 = arith.addf %337, %10 : vector<16x16xf32>
    %cst_73 = arith.constant dense<0xFF800000> : vector<16xf32>
    %339 = vector.multi_reduction <maximumf>, %338, %cst_73 [1] : vector<16x16xf32> to vector<16xf32>
    %340 = vector.shape_cast %339 : vector<16xf32> to vector<16x1xf32>
    %341 = vector.broadcast %340 : vector<16x1xf32> to vector<16x16xf32>
    %342 = arith.subf %338, %341 : vector<16x16xf32>
    %343 = arith.truncf %342 : vector<16x16xf32> to vector<16x16xbf16>
    %344 = math.exp %343 : vector<16x16xbf16>
    %345 = arith.extf %344 : vector<16x16xbf16> to vector<16x16xf32>
    %cst_74 = arith.constant dense<0.000000e+00> : vector<16xf32>
    %346 = vector.multi_reduction <add>, %345, %cst_74 [1] : vector<16x16xf32> to vector<16xf32>
    %347 = vector.shape_cast %346 : vector<16xf32> to vector<16x1xf32>
    %348 = tpu.reciprocal %347 {approx = true} : vector<16x1xf32> -> vector<16x1xf32>
    %cst_75 = arith.constant 0.355509073 : f32
    %349 = vector.broadcast %cst_75 : f32 to vector<16x1xf32>
    %350 = arith.mulf %348, %349 : vector<16x1xf32>
    %351 = vector.broadcast %350 : vector<16x1xf32> to vector<16x16xf32>
    %352 = arith.mulf %345, %351 : vector<16x16xf32>
    %353 = arith.subf %336, %352 : vector<16x16xf32>
    %354 = arith.truncf %353 : vector<16x16xf32> to vector<16x16xbf16>
    %cst_76 = arith.constant dense<0.000000e+00> : vector<16x16xf32>
    %355 = tpu.matmul %354, %322, %cst_76 {dimension_numbers = #tpu.dot_dimension_numbers<[1], [0], [0], [1], [0, 0, 1, 1], [], []>} : vector<16x16xbf16>, vector<16x16xbf16>, vector<16x16xf32> -> vector<16x16xf32>
    %356 = vector.extract_strided_slice %317 {offsets = [0, 16], sizes = [16, 16], strides = [1, 1]} : vector<16x640xbf16> to vector<16x16xbf16>
    %357 = vector.extract_strided_slice %317 {offsets = [0, 144], sizes = [16, 16], strides = [1, 1]} : vector<16x640xbf16> to vector<16x16xbf16>
    %358 = vector.extract_strided_slice %317 {offsets = [0, 272], sizes = [16, 16], strides = [1, 1]} : vector<16x640xbf16> to vector<16x16xbf16>
    %359 = vector.extract_strided_slice %317 {offsets = [0, 400], sizes = [16, 16], strides = [1, 1]} : vector<16x640xbf16> to vector<16x16xbf16>
    %360 = vector.extract_strided_slice %317 {offsets = [0, 528], sizes = [16, 16], strides = [1, 1]} : vector<16x640xbf16> to vector<16x16xbf16>
    %cst_77 = arith.constant dense<0.000000e+00> : vector<16x16xf32>
    %361 = tpu.matmul %356, %358, %cst_77 {dimension_numbers = #tpu.dot_dimension_numbers<[1], [1], [0], [0], [0, 0, 1, 0], [], []>} : vector<16x16xbf16>, vector<16x16xbf16>, vector<16x16xf32> -> vector<16x16xf32>
    %362 = arith.addf %361, %10 : vector<16x16xf32>
    %cst_78 = arith.constant dense<0xFF800000> : vector<16xf32>
    %363 = vector.multi_reduction <maximumf>, %362, %cst_78 [1] : vector<16x16xf32> to vector<16xf32>
    %364 = vector.shape_cast %363 : vector<16xf32> to vector<16x1xf32>
    %365 = vector.broadcast %364 : vector<16x1xf32> to vector<16x16xf32>
    %366 = arith.subf %362, %365 : vector<16x16xf32>
    %367 = arith.truncf %366 : vector<16x16xf32> to vector<16x16xbf16>
    %368 = math.exp %367 : vector<16x16xbf16>
    %369 = arith.extf %368 : vector<16x16xbf16> to vector<16x16xf32>
    %cst_79 = arith.constant dense<0.000000e+00> : vector<16xf32>
    %370 = vector.multi_reduction <add>, %369, %cst_79 [1] : vector<16x16xf32> to vector<16xf32>
    %371 = vector.shape_cast %370 : vector<16xf32> to vector<16x1xf32>
    %372 = tpu.reciprocal %371 {approx = true} : vector<16x1xf32> -> vector<16x1xf32>
    %373 = vector.broadcast %372 : vector<16x1xf32> to vector<16x16xf32>
    %374 = arith.mulf %369, %373 : vector<16x16xf32>
    %cst_80 = arith.constant dense<0.000000e+00> : vector<16x16xf32>
    %375 = tpu.matmul %357, %359, %cst_80 {dimension_numbers = #tpu.dot_dimension_numbers<[1], [1], [0], [0], [0, 0, 1, 0], [], []>} : vector<16x16xbf16>, vector<16x16xbf16>, vector<16x16xf32> -> vector<16x16xf32>
    %376 = arith.addf %375, %10 : vector<16x16xf32>
    %cst_81 = arith.constant dense<0xFF800000> : vector<16xf32>
    %377 = vector.multi_reduction <maximumf>, %376, %cst_81 [1] : vector<16x16xf32> to vector<16xf32>
    %378 = vector.shape_cast %377 : vector<16xf32> to vector<16x1xf32>
    %379 = vector.broadcast %378 : vector<16x1xf32> to vector<16x16xf32>
    %380 = arith.subf %376, %379 : vector<16x16xf32>
    %381 = arith.truncf %380 : vector<16x16xf32> to vector<16x16xbf16>
    %382 = math.exp %381 : vector<16x16xbf16>
    %383 = arith.extf %382 : vector<16x16xbf16> to vector<16x16xf32>
    %cst_82 = arith.constant dense<0.000000e+00> : vector<16xf32>
    %384 = vector.multi_reduction <add>, %383, %cst_82 [1] : vector<16x16xf32> to vector<16xf32>
    %385 = vector.shape_cast %384 : vector<16xf32> to vector<16x1xf32>
    %386 = tpu.reciprocal %385 {approx = true} : vector<16x1xf32> -> vector<16x1xf32>
    %cst_83 = arith.constant 0.355509073 : f32
    %387 = vector.broadcast %cst_83 : f32 to vector<16x1xf32>
    %388 = arith.mulf %386, %387 : vector<16x1xf32>
    %389 = vector.broadcast %388 : vector<16x1xf32> to vector<16x16xf32>
    %390 = arith.mulf %383, %389 : vector<16x16xf32>
    %391 = arith.subf %374, %390 : vector<16x16xf32>
    %392 = arith.truncf %391 : vector<16x16xf32> to vector<16x16xbf16>
    %cst_84 = arith.constant dense<0.000000e+00> : vector<16x16xf32>
    %393 = tpu.matmul %392, %360, %cst_84 {dimension_numbers = #tpu.dot_dimension_numbers<[1], [0], [0], [1], [0, 0, 1, 1], [], []>} : vector<16x16xbf16>, vector<16x16xbf16>, vector<16x16xf32> -> vector<16x16xf32>
    %394 = vector.extract_strided_slice %317 {offsets = [0, 32], sizes = [16, 16], strides = [1, 1]} : vector<16x640xbf16> to vector<16x16xbf16>
    %395 = vector.extract_strided_slice %317 {offsets = [0, 160], sizes = [16, 16], strides = [1, 1]} : vector<16x640xbf16> to vector<16x16xbf16>
    %396 = vector.extract_strided_slice %317 {offsets = [0, 288], sizes = [16, 16], strides = [1, 1]} : vector<16x640xbf16> to vector<16x16xbf16>
    %397 = vector.extract_strided_slice %317 {offsets = [0, 416], sizes = [16, 16], strides = [1, 1]} : vector<16x640xbf16> to vector<16x16xbf16>
    %398 = vector.extract_strided_slice %317 {offsets = [0, 544], sizes = [16, 16], strides = [1, 1]} : vector<16x640xbf16> to vector<16x16xbf16>
    %cst_85 = arith.constant dense<0.000000e+00> : vector<16x16xf32>
    %399 = tpu.matmul %394, %396, %cst_85 {dimension_numbers = #tpu.dot_dimension_numbers<[1], [1], [0], [0], [0, 0, 1, 0], [], []>} : vector<16x16xbf16>, vector<16x16xbf16>, vector<16x16xf32> -> vector<16x16xf32>
    %400 = arith.addf %399, %10 : vector<16x16xf32>
    %cst_86 = arith.constant dense<0xFF800000> : vector<16xf32>
    %401 = vector.multi_reduction <maximumf>, %400, %cst_86 [1] : vector<16x16xf32> to vector<16xf32>
    %402 = vector.shape_cast %401 : vector<16xf32> to vector<16x1xf32>
    %403 = vector.broadcast %402 : vector<16x1xf32> to vector<16x16xf32>
    %404 = arith.subf %400, %403 : vector<16x16xf32>
    %405 = arith.truncf %404 : vector<16x16xf32> to vector<16x16xbf16>
    %406 = math.exp %405 : vector<16x16xbf16>
    %407 = arith.extf %406 : vector<16x16xbf16> to vector<16x16xf32>
    %cst_87 = arith.constant dense<0.000000e+00> : vector<16xf32>
    %408 = vector.multi_reduction <add>, %407, %cst_87 [1] : vector<16x16xf32> to vector<16xf32>
    %409 = vector.shape_cast %408 : vector<16xf32> to vector<16x1xf32>
    %410 = tpu.reciprocal %409 {approx = true} : vector<16x1xf32> -> vector<16x1xf32>
    %411 = vector.broadcast %410 : vector<16x1xf32> to vector<16x16xf32>
    %412 = arith.mulf %407, %411 : vector<16x16xf32>
    %cst_88 = arith.constant dense<0.000000e+00> : vector<16x16xf32>
    %413 = tpu.matmul %395, %397, %cst_88 {dimension_numbers = #tpu.dot_dimension_numbers<[1], [1], [0], [0], [0, 0, 1, 0], [], []>} : vector<16x16xbf16>, vector<16x16xbf16>, vector<16x16xf32> -> vector<16x16xf32>
    %414 = arith.addf %413, %10 : vector<16x16xf32>
    %cst_89 = arith.constant dense<0xFF800000> : vector<16xf32>
    %415 = vector.multi_reduction <maximumf>, %414, %cst_89 [1] : vector<16x16xf32> to vector<16xf32>
    %416 = vector.shape_cast %415 : vector<16xf32> to vector<16x1xf32>
    %417 = vector.broadcast %416 : vector<16x1xf32> to vector<16x16xf32>
    %418 = arith.subf %414, %417 : vector<16x16xf32>
    %419 = arith.truncf %418 : vector<16x16xf32> to vector<16x16xbf16>
    %420 = math.exp %419 : vector<16x16xbf16>
    %421 = arith.extf %420 : vector<16x16xbf16> to vector<16x16xf32>
    %cst_90 = arith.constant dense<0.000000e+00> : vector<16xf32>
    %422 = vector.multi_reduction <add>, %421, %cst_90 [1] : vector<16x16xf32> to vector<16xf32>
    %423 = vector.shape_cast %422 : vector<16xf32> to vector<16x1xf32>
    %424 = tpu.reciprocal %423 {approx = true} : vector<16x1xf32> -> vector<16x1xf32>
    %cst_91 = arith.constant 0.355509073 : f32
    %425 = vector.broadcast %cst_91 : f32 to vector<16x1xf32>
    %426 = arith.mulf %424, %425 : vector<16x1xf32>
    %427 = vector.broadcast %426 : vector<16x1xf32> to vector<16x16xf32>
    %428 = arith.mulf %421, %427 : vector<16x16xf32>
    %429 = arith.subf %412, %428 : vector<16x16xf32>
    %430 = arith.truncf %429 : vector<16x16xf32> to vector<16x16xbf16>
    %cst_92 = arith.constant dense<0.000000e+00> : vector<16x16xf32>
    %431 = tpu.matmul %430, %398, %cst_92 {dimension_numbers = #tpu.dot_dimension_numbers<[1], [0], [0], [1], [0, 0, 1, 1], [], []>} : vector<16x16xbf16>, vector<16x16xbf16>, vector<16x16xf32> -> vector<16x16xf32>
    %432 = vector.extract_strided_slice %317 {offsets = [0, 48], sizes = [16, 16], strides = [1, 1]} : vector<16x640xbf16> to vector<16x16xbf16>
    %433 = vector.extract_strided_slice %317 {offsets = [0, 176], sizes = [16, 16], strides = [1, 1]} : vector<16x640xbf16> to vector<16x16xbf16>
    %434 = vector.extract_strided_slice %317 {offsets = [0, 304], sizes = [16, 16], strides = [1, 1]} : vector<16x640xbf16> to vector<16x16xbf16>
    %435 = vector.extract_strided_slice %317 {offsets = [0, 432], sizes = [16, 16], strides = [1, 1]} : vector<16x640xbf16> to vector<16x16xbf16>
    %436 = vector.extract_strided_slice %317 {offsets = [0, 560], sizes = [16, 16], strides = [1, 1]} : vector<16x640xbf16> to vector<16x16xbf16>
    %cst_93 = arith.constant dense<0.000000e+00> : vector<16x16xf32>
    %437 = tpu.matmul %432, %434, %cst_93 {dimension_numbers = #tpu.dot_dimension_numbers<[1], [1], [0], [0], [0, 0, 1, 0], [], []>} : vector<16x16xbf16>, vector<16x16xbf16>, vector<16x16xf32> -> vector<16x16xf32>
    %438 = arith.addf %437, %10 : vector<16x16xf32>
    %cst_94 = arith.constant dense<0xFF800000> : vector<16xf32>
    %439 = vector.multi_reduction <maximumf>, %438, %cst_94 [1] : vector<16x16xf32> to vector<16xf32>
    %440 = vector.shape_cast %439 : vector<16xf32> to vector<16x1xf32>
    %441 = vector.broadcast %440 : vector<16x1xf32> to vector<16x16xf32>
    %442 = arith.subf %438, %441 : vector<16x16xf32>
    %443 = arith.truncf %442 : vector<16x16xf32> to vector<16x16xbf16>
    %444 = math.exp %443 : vector<16x16xbf16>
    %445 = arith.extf %444 : vector<16x16xbf16> to vector<16x16xf32>
    %cst_95 = arith.constant dense<0.000000e+00> : vector<16xf32>
    %446 = vector.multi_reduction <add>, %445, %cst_95 [1] : vector<16x16xf32> to vector<16xf32>
    %447 = vector.shape_cast %446 : vector<16xf32> to vector<16x1xf32>
    %448 = tpu.reciprocal %447 {approx = true} : vector<16x1xf32> -> vector<16x1xf32>
    %449 = vector.broadcast %448 : vector<16x1xf32> to vector<16x16xf32>
    %450 = arith.mulf %445, %449 : vector<16x16xf32>
    %cst_96 = arith.constant dense<0.000000e+00> : vector<16x16xf32>
    %451 = tpu.matmul %433, %435, %cst_96 {dimension_numbers = #tpu.dot_dimension_numbers<[1], [1], [0], [0], [0, 0, 1, 0], [], []>} : vector<16x16xbf16>, vector<16x16xbf16>, vector<16x16xf32> -> vector<16x16xf32>
    %452 = arith.addf %451, %10 : vector<16x16xf32>
    %cst_97 = arith.constant dense<0xFF800000> : vector<16xf32>
    %453 = vector.multi_reduction <maximumf>, %452, %cst_97 [1] : vector<16x16xf32> to vector<16xf32>
    %454 = vector.shape_cast %453 : vector<16xf32> to vector<16x1xf32>
    %455 = vector.broadcast %454 : vector<16x1xf32> to vector<16x16xf32>
    %456 = arith.subf %452, %455 : vector<16x16xf32>
    %457 = arith.truncf %456 : vector<16x16xf32> to vector<16x16xbf16>
    %458 = math.exp %457 : vector<16x16xbf16>
    %459 = arith.extf %458 : vector<16x16xbf16> to vector<16x16xf32>
    %cst_98 = arith.constant dense<0.000000e+00> : vector<16xf32>
    %460 = vector.multi_reduction <add>, %459, %cst_98 [1] : vector<16x16xf32> to vector<16xf32>
    %461 = vector.shape_cast %460 : vector<16xf32> to vector<16x1xf32>
    %462 = tpu.reciprocal %461 {approx = true} : vector<16x1xf32> -> vector<16x1xf32>
    %cst_99 = arith.constant 0.355509073 : f32
    %463 = vector.broadcast %cst_99 : f32 to vector<16x1xf32>
    %464 = arith.mulf %462, %463 : vector<16x1xf32>
    %465 = vector.broadcast %464 : vector<16x1xf32> to vector<16x16xf32>
    %466 = arith.mulf %459, %465 : vector<16x16xf32>
    %467 = arith.subf %450, %466 : vector<16x16xf32>
    %468 = arith.truncf %467 : vector<16x16xf32> to vector<16x16xbf16>
    %cst_100 = arith.constant dense<0.000000e+00> : vector<16x16xf32>
    %469 = tpu.matmul %468, %436, %cst_100 {dimension_numbers = #tpu.dot_dimension_numbers<[1], [0], [0], [1], [0, 0, 1, 1], [], []>} : vector<16x16xbf16>, vector<16x16xbf16>, vector<16x16xf32> -> vector<16x16xf32>
    %470 = vector.extract_strided_slice %317 {offsets = [0, 64], sizes = [16, 16], strides = [1, 1]} : vector<16x640xbf16> to vector<16x16xbf16>
    %471 = vector.extract_strided_slice %317 {offsets = [0, 192], sizes = [16, 16], strides = [1, 1]} : vector<16x640xbf16> to vector<16x16xbf16>
    %472 = vector.extract_strided_slice %317 {offsets = [0, 320], sizes = [16, 16], strides = [1, 1]} : vector<16x640xbf16> to vector<16x16xbf16>
    %473 = vector.extract_strided_slice %317 {offsets = [0, 448], sizes = [16, 16], strides = [1, 1]} : vector<16x640xbf16> to vector<16x16xbf16>
    %474 = vector.extract_strided_slice %317 {offsets = [0, 576], sizes = [16, 16], strides = [1, 1]} : vector<16x640xbf16> to vector<16x16xbf16>
    %cst_101 = arith.constant dense<0.000000e+00> : vector<16x16xf32>
    %475 = tpu.matmul %470, %472, %cst_101 {dimension_numbers = #tpu.dot_dimension_numbers<[1], [1], [0], [0], [0, 0, 1, 0], [], []>} : vector<16x16xbf16>, vector<16x16xbf16>, vector<16x16xf32> -> vector<16x16xf32>
    %476 = arith.addf %475, %10 : vector<16x16xf32>
    %cst_102 = arith.constant dense<0xFF800000> : vector<16xf32>
    %477 = vector.multi_reduction <maximumf>, %476, %cst_102 [1] : vector<16x16xf32> to vector<16xf32>
    %478 = vector.shape_cast %477 : vector<16xf32> to vector<16x1xf32>
    %479 = vector.broadcast %478 : vector<16x1xf32> to vector<16x16xf32>
    %480 = arith.subf %476, %479 : vector<16x16xf32>
    %481 = arith.truncf %480 : vector<16x16xf32> to vector<16x16xbf16>
    %482 = math.exp %481 : vector<16x16xbf16>
    %483 = arith.extf %482 : vector<16x16xbf16> to vector<16x16xf32>
    %cst_103 = arith.constant dense<0.000000e+00> : vector<16xf32>
    %484 = vector.multi_reduction <add>, %483, %cst_103 [1] : vector<16x16xf32> to vector<16xf32>
    %485 = vector.shape_cast %484 : vector<16xf32> to vector<16x1xf32>
    %486 = tpu.reciprocal %485 {approx = true} : vector<16x1xf32> -> vector<16x1xf32>
    %487 = vector.broadcast %486 : vector<16x1xf32> to vector<16x16xf32>
    %488 = arith.mulf %483, %487 : vector<16x16xf32>
    %cst_104 = arith.constant dense<0.000000e+00> : vector<16x16xf32>
    %489 = tpu.matmul %471, %473, %cst_104 {dimension_numbers = #tpu.dot_dimension_numbers<[1], [1], [0], [0], [0, 0, 1, 0], [], []>} : vector<16x16xbf16>, vector<16x16xbf16>, vector<16x16xf32> -> vector<16x16xf32>
    %490 = arith.addf %489, %10 : vector<16x16xf32>
    %cst_105 = arith.constant dense<0xFF800000> : vector<16xf32>
    %491 = vector.multi_reduction <maximumf>, %490, %cst_105 [1] : vector<16x16xf32> to vector<16xf32>
    %492 = vector.shape_cast %491 : vector<16xf32> to vector<16x1xf32>
    %493 = vector.broadcast %492 : vector<16x1xf32> to vector<16x16xf32>
    %494 = arith.subf %490, %493 : vector<16x16xf32>
    %495 = arith.truncf %494 : vector<16x16xf32> to vector<16x16xbf16>
    %496 = math.exp %495 : vector<16x16xbf16>
    %497 = arith.extf %496 : vector<16x16xbf16> to vector<16x16xf32>
    %cst_106 = arith.constant dense<0.000000e+00> : vector<16xf32>
    %498 = vector.multi_reduction <add>, %497, %cst_106 [1] : vector<16x16xf32> to vector<16xf32>
    %499 = vector.shape_cast %498 : vector<16xf32> to vector<16x1xf32>
    %500 = tpu.reciprocal %499 {approx = true} : vector<16x1xf32> -> vector<16x1xf32>
    %cst_107 = arith.constant 0.355509073 : f32
    %501 = vector.broadcast %cst_107 : f32 to vector<16x1xf32>
    %502 = arith.mulf %500, %501 : vector<16x1xf32>
    %503 = vector.broadcast %502 : vector<16x1xf32> to vector<16x16xf32>
    %504 = arith.mulf %497, %503 : vector<16x16xf32>
    %505 = arith.subf %488, %504 : vector<16x16xf32>
    %506 = arith.truncf %505 : vector<16x16xf32> to vector<16x16xbf16>
    %cst_108 = arith.constant dense<0.000000e+00> : vector<16x16xf32>
    %507 = tpu.matmul %506, %474, %cst_108 {dimension_numbers = #tpu.dot_dimension_numbers<[1], [0], [0], [1], [0, 0, 1, 1], [], []>} : vector<16x16xbf16>, vector<16x16xbf16>, vector<16x16xf32> -> vector<16x16xf32>
    %508 = vector.extract_strided_slice %317 {offsets = [0, 80], sizes = [16, 16], strides = [1, 1]} : vector<16x640xbf16> to vector<16x16xbf16>
    %509 = vector.extract_strided_slice %317 {offsets = [0, 208], sizes = [16, 16], strides = [1, 1]} : vector<16x640xbf16> to vector<16x16xbf16>
    %510 = vector.extract_strided_slice %317 {offsets = [0, 336], sizes = [16, 16], strides = [1, 1]} : vector<16x640xbf16> to vector<16x16xbf16>
    %511 = vector.extract_strided_slice %317 {offsets = [0, 464], sizes = [16, 16], strides = [1, 1]} : vector<16x640xbf16> to vector<16x16xbf16>
    %512 = vector.extract_strided_slice %317 {offsets = [0, 592], sizes = [16, 16], strides = [1, 1]} : vector<16x640xbf16> to vector<16x16xbf16>
    %cst_109 = arith.constant dense<0.000000e+00> : vector<16x16xf32>
    %513 = tpu.matmul %508, %510, %cst_109 {dimension_numbers = #tpu.dot_dimension_numbers<[1], [1], [0], [0], [0, 0, 1, 0], [], []>} : vector<16x16xbf16>, vector<16x16xbf16>, vector<16x16xf32> -> vector<16x16xf32>
    %514 = arith.addf %513, %10 : vector<16x16xf32>
    %cst_110 = arith.constant dense<0xFF800000> : vector<16xf32>
    %515 = vector.multi_reduction <maximumf>, %514, %cst_110 [1] : vector<16x16xf32> to vector<16xf32>
    %516 = vector.shape_cast %515 : vector<16xf32> to vector<16x1xf32>
    %517 = vector.broadcast %516 : vector<16x1xf32> to vector<16x16xf32>
    %518 = arith.subf %514, %517 : vector<16x16xf32>
    %519 = arith.truncf %518 : vector<16x16xf32> to vector<16x16xbf16>
    %520 = math.exp %519 : vector<16x16xbf16>
    %521 = arith.extf %520 : vector<16x16xbf16> to vector<16x16xf32>
    %cst_111 = arith.constant dense<0.000000e+00> : vector<16xf32>
    %522 = vector.multi_reduction <add>, %521, %cst_111 [1] : vector<16x16xf32> to vector<16xf32>
    %523 = vector.shape_cast %522 : vector<16xf32> to vector<16x1xf32>
    %524 = tpu.reciprocal %523 {approx = true} : vector<16x1xf32> -> vector<16x1xf32>
    %525 = vector.broadcast %524 : vector<16x1xf32> to vector<16x16xf32>
    %526 = arith.mulf %521, %525 : vector<16x16xf32>
    %cst_112 = arith.constant dense<0.000000e+00> : vector<16x16xf32>
    %527 = tpu.matmul %509, %511, %cst_112 {dimension_numbers = #tpu.dot_dimension_numbers<[1], [1], [0], [0], [0, 0, 1, 0], [], []>} : vector<16x16xbf16>, vector<16x16xbf16>, vector<16x16xf32> -> vector<16x16xf32>
    %528 = arith.addf %527, %10 : vector<16x16xf32>
    %cst_113 = arith.constant dense<0xFF800000> : vector<16xf32>
    %529 = vector.multi_reduction <maximumf>, %528, %cst_113 [1] : vector<16x16xf32> to vector<16xf32>
    %530 = vector.shape_cast %529 : vector<16xf32> to vector<16x1xf32>
    %531 = vector.broadcast %530 : vector<16x1xf32> to vector<16x16xf32>
    %532 = arith.subf %528, %531 : vector<16x16xf32>
    %533 = arith.truncf %532 : vector<16x16xf32> to vector<16x16xbf16>
    %534 = math.exp %533 : vector<16x16xbf16>
    %535 = arith.extf %534 : vector<16x16xbf16> to vector<16x16xf32>
    %cst_114 = arith.constant dense<0.000000e+00> : vector<16xf32>
    %536 = vector.multi_reduction <add>, %535, %cst_114 [1] : vector<16x16xf32> to vector<16xf32>
    %537 = vector.shape_cast %536 : vector<16xf32> to vector<16x1xf32>
    %538 = tpu.reciprocal %537 {approx = true} : vector<16x1xf32> -> vector<16x1xf32>
    %cst_115 = arith.constant 0.355509073 : f32
    %539 = vector.broadcast %cst_115 : f32 to vector<16x1xf32>
    %540 = arith.mulf %538, %539 : vector<16x1xf32>
    %541 = vector.broadcast %540 : vector<16x1xf32> to vector<16x16xf32>
    %542 = arith.mulf %535, %541 : vector<16x16xf32>
    %543 = arith.subf %526, %542 : vector<16x16xf32>
    %544 = arith.truncf %543 : vector<16x16xf32> to vector<16x16xbf16>
    %cst_116 = arith.constant dense<0.000000e+00> : vector<16x16xf32>
    %545 = tpu.matmul %544, %512, %cst_116 {dimension_numbers = #tpu.dot_dimension_numbers<[1], [0], [0], [1], [0, 0, 1, 1], [], []>} : vector<16x16xbf16>, vector<16x16xbf16>, vector<16x16xf32> -> vector<16x16xf32>
    %546 = vector.extract_strided_slice %317 {offsets = [0, 96], sizes = [16, 16], strides = [1, 1]} : vector<16x640xbf16> to vector<16x16xbf16>
    %547 = vector.extract_strided_slice %317 {offsets = [0, 224], sizes = [16, 16], strides = [1, 1]} : vector<16x640xbf16> to vector<16x16xbf16>
    %548 = vector.extract_strided_slice %317 {offsets = [0, 352], sizes = [16, 16], strides = [1, 1]} : vector<16x640xbf16> to vector<16x16xbf16>
    %549 = vector.extract_strided_slice %317 {offsets = [0, 480], sizes = [16, 16], strides = [1, 1]} : vector<16x640xbf16> to vector<16x16xbf16>
    %550 = vector.extract_strided_slice %317 {offsets = [0, 608], sizes = [16, 16], strides = [1, 1]} : vector<16x640xbf16> to vector<16x16xbf16>
    %cst_117 = arith.constant dense<0.000000e+00> : vector<16x16xf32>
    %551 = tpu.matmul %546, %548, %cst_117 {dimension_numbers = #tpu.dot_dimension_numbers<[1], [1], [0], [0], [0, 0, 1, 0], [], []>} : vector<16x16xbf16>, vector<16x16xbf16>, vector<16x16xf32> -> vector<16x16xf32>
    %552 = arith.addf %551, %10 : vector<16x16xf32>
    %cst_118 = arith.constant dense<0xFF800000> : vector<16xf32>
    %553 = vector.multi_reduction <maximumf>, %552, %cst_118 [1] : vector<16x16xf32> to vector<16xf32>
    %554 = vector.shape_cast %553 : vector<16xf32> to vector<16x1xf32>
    %555 = vector.broadcast %554 : vector<16x1xf32> to vector<16x16xf32>
    %556 = arith.subf %552, %555 : vector<16x16xf32>
    %557 = arith.truncf %556 : vector<16x16xf32> to vector<16x16xbf16>
    %558 = math.exp %557 : vector<16x16xbf16>
    %559 = arith.extf %558 : vector<16x16xbf16> to vector<16x16xf32>
    %cst_119 = arith.constant dense<0.000000e+00> : vector<16xf32>
    %560 = vector.multi_reduction <add>, %559, %cst_119 [1] : vector<16x16xf32> to vector<16xf32>
    %561 = vector.shape_cast %560 : vector<16xf32> to vector<16x1xf32>
    %562 = tpu.reciprocal %561 {approx = true} : vector<16x1xf32> -> vector<16x1xf32>
    %563 = vector.broadcast %562 : vector<16x1xf32> to vector<16x16xf32>
    %564 = arith.mulf %559, %563 : vector<16x16xf32>
    %cst_120 = arith.constant dense<0.000000e+00> : vector<16x16xf32>
    %565 = tpu.matmul %547, %549, %cst_120 {dimension_numbers = #tpu.dot_dimension_numbers<[1], [1], [0], [0], [0, 0, 1, 0], [], []>} : vector<16x16xbf16>, vector<16x16xbf16>, vector<16x16xf32> -> vector<16x16xf32>
    %566 = arith.addf %565, %10 : vector<16x16xf32>
    %cst_121 = arith.constant dense<0xFF800000> : vector<16xf32>
    %567 = vector.multi_reduction <maximumf>, %566, %cst_121 [1] : vector<16x16xf32> to vector<16xf32>
    %568 = vector.shape_cast %567 : vector<16xf32> to vector<16x1xf32>
    %569 = vector.broadcast %568 : vector<16x1xf32> to vector<16x16xf32>
    %570 = arith.subf %566, %569 : vector<16x16xf32>
    %571 = arith.truncf %570 : vector<16x16xf32> to vector<16x16xbf16>
    %572 = math.exp %571 : vector<16x16xbf16>
    %573 = arith.extf %572 : vector<16x16xbf16> to vector<16x16xf32>
    %cst_122 = arith.constant dense<0.000000e+00> : vector<16xf32>
    %574 = vector.multi_reduction <add>, %573, %cst_122 [1] : vector<16x16xf32> to vector<16xf32>
    %575 = vector.shape_cast %574 : vector<16xf32> to vector<16x1xf32>
    %576 = tpu.reciprocal %575 {approx = true} : vector<16x1xf32> -> vector<16x1xf32>
    %cst_123 = arith.constant 0.355509073 : f32
    %577 = vector.broadcast %cst_123 : f32 to vector<16x1xf32>
    %578 = arith.mulf %576, %577 : vector<16x1xf32>
    %579 = vector.broadcast %578 : vector<16x1xf32> to vector<16x16xf32>
    %580 = arith.mulf %573, %579 : vector<16x16xf32>
    %581 = arith.subf %564, %580 : vector<16x16xf32>
    %582 = arith.truncf %581 : vector<16x16xf32> to vector<16x16xbf16>
    %cst_124 = arith.constant dense<0.000000e+00> : vector<16x16xf32>
    %583 = tpu.matmul %582, %550, %cst_124 {dimension_numbers = #tpu.dot_dimension_numbers<[1], [0], [0], [1], [0, 0, 1, 1], [], []>} : vector<16x16xbf16>, vector<16x16xbf16>, vector<16x16xf32> -> vector<16x16xf32>
    %584 = vector.extract_strided_slice %317 {offsets = [0, 112], sizes = [16, 16], strides = [1, 1]} : vector<16x640xbf16> to vector<16x16xbf16>
    %585 = vector.extract_strided_slice %317 {offsets = [0, 240], sizes = [16, 16], strides = [1, 1]} : vector<16x640xbf16> to vector<16x16xbf16>
    %586 = vector.extract_strided_slice %317 {offsets = [0, 368], sizes = [16, 16], strides = [1, 1]} : vector<16x640xbf16> to vector<16x16xbf16>
    %587 = vector.extract_strided_slice %317 {offsets = [0, 496], sizes = [16, 16], strides = [1, 1]} : vector<16x640xbf16> to vector<16x16xbf16>
    %588 = vector.extract_strided_slice %317 {offsets = [0, 624], sizes = [16, 16], strides = [1, 1]} : vector<16x640xbf16> to vector<16x16xbf16>
    %cst_125 = arith.constant dense<0.000000e+00> : vector<16x16xf32>
    %589 = tpu.matmul %584, %586, %cst_125 {dimension_numbers = #tpu.dot_dimension_numbers<[1], [1], [0], [0], [0, 0, 1, 0], [], []>} : vector<16x16xbf16>, vector<16x16xbf16>, vector<16x16xf32> -> vector<16x16xf32>
    %590 = arith.addf %589, %10 : vector<16x16xf32>
    %cst_126 = arith.constant dense<0xFF800000> : vector<16xf32>
    %591 = vector.multi_reduction <maximumf>, %590, %cst_126 [1] : vector<16x16xf32> to vector<16xf32>
    %592 = vector.shape_cast %591 : vector<16xf32> to vector<16x1xf32>
    %593 = vector.broadcast %592 : vector<16x1xf32> to vector<16x16xf32>
    %594 = arith.subf %590, %593 : vector<16x16xf32>
    %595 = arith.truncf %594 : vector<16x16xf32> to vector<16x16xbf16>
    %596 = math.exp %595 : vector<16x16xbf16>
    %597 = arith.extf %596 : vector<16x16xbf16> to vector<16x16xf32>
    %cst_127 = arith.constant dense<0.000000e+00> : vector<16xf32>
    %598 = vector.multi_reduction <add>, %597, %cst_127 [1] : vector<16x16xf32> to vector<16xf32>
    %599 = vector.shape_cast %598 : vector<16xf32> to vector<16x1xf32>
    %600 = tpu.reciprocal %599 {approx = true} : vector<16x1xf32> -> vector<16x1xf32>
    %601 = vector.broadcast %600 : vector<16x1xf32> to vector<16x16xf32>
    %602 = arith.mulf %597, %601 : vector<16x16xf32>
    %cst_128 = arith.constant dense<0.000000e+00> : vector<16x16xf32>
    %603 = tpu.matmul %585, %587, %cst_128 {dimension_numbers = #tpu.dot_dimension_numbers<[1], [1], [0], [0], [0, 0, 1, 0], [], []>} : vector<16x16xbf16>, vector<16x16xbf16>, vector<16x16xf32> -> vector<16x16xf32>
    %604 = arith.addf %603, %10 : vector<16x16xf32>
    %cst_129 = arith.constant dense<0xFF800000> : vector<16xf32>
    %605 = vector.multi_reduction <maximumf>, %604, %cst_129 [1] : vector<16x16xf32> to vector<16xf32>
    %606 = vector.shape_cast %605 : vector<16xf32> to vector<16x1xf32>
    %607 = vector.broadcast %606 : vector<16x1xf32> to vector<16x16xf32>
    %608 = arith.subf %604, %607 : vector<16x16xf32>
    %609 = arith.truncf %608 : vector<16x16xf32> to vector<16x16xbf16>
    %610 = math.exp %609 : vector<16x16xbf16>
    %611 = arith.extf %610 : vector<16x16xbf16> to vector<16x16xf32>
    %cst_130 = arith.constant dense<0.000000e+00> : vector<16xf32>
    %612 = vector.multi_reduction <add>, %611, %cst_130 [1] : vector<16x16xf32> to vector<16xf32>
    %613 = vector.shape_cast %612 : vector<16xf32> to vector<16x1xf32>
    %614 = tpu.reciprocal %613 {approx = true} : vector<16x1xf32> -> vector<16x1xf32>
    %cst_131 = arith.constant 0.355509073 : f32
    %615 = vector.broadcast %cst_131 : f32 to vector<16x1xf32>
    %616 = arith.mulf %614, %615 : vector<16x1xf32>
    %617 = vector.broadcast %616 : vector<16x1xf32> to vector<16x16xf32>
    %618 = arith.mulf %611, %617 : vector<16x16xf32>
    %619 = arith.subf %602, %618 : vector<16x16xf32>
    %620 = arith.truncf %619 : vector<16x16xf32> to vector<16x16xbf16>
    %cst_132 = arith.constant dense<0.000000e+00> : vector<16x16xf32>
    %621 = tpu.matmul %620, %588, %cst_132 {dimension_numbers = #tpu.dot_dimension_numbers<[1], [0], [0], [1], [0, 0, 1, 1], [], []>} : vector<16x16xbf16>, vector<16x16xbf16>, vector<16x16xf32> -> vector<16x16xf32>
    %622 = tpu.concatenate %355, %393, %431, %469, %507, %545, %583, %621 in 1 : vector<16x16xf32>, vector<16x16xf32>, vector<16x16xf32>, vector<16x16xf32>, vector<16x16xf32>, vector<16x16xf32>, vector<16x16xf32>, vector<16x16xf32> -> vector<16x128xf32>
    %623 = tpu.concatenate %316, %622 in 0 : vector<16x128xf32>, vector<16x128xf32> -> vector<32x128xf32>
    %624 = arith.mulf %623, %623 : vector<32x128xf32>
    %625 = tpu.iota {dimensions = array<i32: 1>} : vector<32x128xi32>
    %c127_i32 = arith.constant 127 : i32
    %626 = tpu.dynamic_rotate %624 by %c127_i32 dim 1 : vector<32x128xf32>, i32 -> vector<32x128xf32>
    %c1_i32 = arith.constant 1 : i32
    %627 = tpu.dynamic_rotate %624 by %c1_i32 dim 1 : vector<32x128xf32>, i32 -> vector<32x128xf32>
    %c2_i32 = arith.constant 2 : i32
    %c0_i32 = arith.constant 0 : i32
    %628 = arith.cmpi eq, %c2_i32, %c0_i32 : i32
    %c1_i32_133 = arith.constant 1 : i32
    %629 = arith.select %628, %c1_i32_133, %c2_i32 : i32
    %630 = vector.broadcast %629 : i32 to vector<32x128xi32>
    %631 = arith.remsi %625, %630 : vector<32x128xi32>
    %c0_i32_134 = arith.constant 0 : i32
    %632 = vector.broadcast %c0_i32_134 : i32 to vector<32x128xi32>
    %633 = arith.cmpi ne, %631, %632 : vector<32x128xi32>
    %c0_i32_135 = arith.constant 0 : i32
    %634 = vector.broadcast %c0_i32_135 : i32 to vector<32x128xi32>
    %635 = arith.cmpi slt, %631, %634 : vector<32x128xi32>
    %c0_i32_136 = arith.constant 0 : i32
    %636 = arith.cmpi slt, %629, %c0_i32_136 : i32
    %637 = vector.broadcast %636 : i1 to vector<32x128xi1>
    %638 = vector.broadcast %637 : vector<32x128xi1> to vector<32x128xi1>
    %639 = arith.xori %635, %638 : vector<32x128xi1>
    %640 = arith.andi %639, %633 : vector<32x128xi1>
    %641 = vector.broadcast %629 : i32 to vector<32x128xi32>
    %642 = arith.addi %631, %641 : vector<32x128xi32>
    %643 = arith.select %640, %642, %631 : vector<32x128xi1>, vector<32x128xi32>
    %c1_i32_137 = arith.constant 1 : i32
    %644 = vector.broadcast %c1_i32_137 : i32 to vector<32x128xi32>
    %645 = arith.cmpi slt, %643, %644 : vector<32x128xi32>
    %646 = arith.select %645, %626, %627 : vector<32x128xi1>, vector<32x128xf32>
    %647 = arith.addf %624, %646 : vector<32x128xf32>
    %cst_138 = arith.constant 5.000000e-01 : f32
    %648 = vector.broadcast %cst_138 : f32 to vector<32x128xf32>
    %649 = arith.mulf %647, %648 : vector<32x128xf32>
    %cst_139 = arith.constant 9.99999997E-7 : f32
    %650 = vector.broadcast %cst_139 : f32 to vector<32x128xf32>
    %651 = arith.addf %649, %650 : vector<32x128xf32>
    %652 = math.rsqrt %651 : vector<32x128xf32>
    %653 = arith.mulf %623, %652 : vector<32x128xf32>
    %654 = arith.truncf %653 : vector<32x128xf32> to vector<32x128xbf16>
    %c0_140 = arith.constant 0 : index
    %c0_141 = arith.constant 0 : index
    %655 = vector.load %arg3[%c0_140, %c0_141] : memref<128x128xbf16, #tpu.memory_space<vmem>>, vector<128x128xbf16>
    %cst_142 = arith.constant dense<0.000000e+00> : vector<32x128xf32>
    %656 = tpu.matmul %654, %655, %cst_142 {dimension_numbers = #tpu.dot_dimension_numbers<[1], [0], [0], [1], [0, 0, 1, 1], [], []>} : vector<32x128xbf16>, vector<128x128xbf16>, vector<32x128xf32> -> vector<32x128xf32>
    %c0_143 = arith.constant 0 : index
    %c0_144 = arith.constant 0 : index
    %657 = vector.load %arg4[%c0_143, %c0_144] : memref<32x128xf32, #tpu.memory_space<vmem>>, vector<32x128xf32>
    tpu.vector_store %arg4[%c0_143, %c0_144], %656 {strides = array<i32>} : memref<32x128xf32, #tpu.memory_space<vmem>>, vector<32x128xf32>,
    return
  }
  func.func @transform_0(%arg0: i32) -> (i32, i32) {
    %c0_i32 = arith.constant 0 : i32
    %c0_i32_0 = arith.constant 0 : i32
    return %arg0, %c0_i32 : i32, i32
  }
  func.func @transform_1(%arg0: i32) -> (i32, i32) {
    %c0_i32 = arith.constant 0 : i32
    %c0_i32_0 = arith.constant 0 : i32
    %c0_i32_1 = arith.constant 0 : i32
    return %c0_i32, %c0_i32_0 : i32, i32
  }
  func.func @transform_2(%arg0: i32) -> (i32, i32) {
    %c0_i32 = arith.constant 0 : i32
    %c0_i32_0 = arith.constant 0 : i32
    %c0_i32_1 = arith.constant 0 : i32
    return %c0_i32, %c0_i32_0 : i32, i32
  }
  func.func @transform_3(%arg0: i32) -> (i32, i32) {
    %c0_i32 = arith.constant 0 : i32
    %c0_i32_0 = arith.constant 0 : i32
    return %arg0, %c0_i32 : i32, i32
  }
}

</mosaic_0001>

<llo_original>
// kernel: diff_attention_forward.1
$region0: #{diff_attention_forward.1}
  #allocation0 [shape = 'u32[]', space=smem, size = 0x4, offset = 0x4, fixed_abs, tag = 'smem constant byte address 0x4 - core index']
  #allocation1 [shape = 'u32[144,128]{1,0:T(1,128)}', space=vmem, size = 0x12000, scoped, tag = 'internal scratch']
  %s0 = inlined_call_operand.hbm [shape: f32[32,128], index: 0, kind: input, shape index: {}]
  %s1 = inlined_call_operand.hbm [shape: bf16[128,640], index: 1, kind: input, shape index: {}]
  %s2 = inlined_call_operand.hbm [shape: bf16[128,128], index: 2, kind: input, shape index: {}]
  %s3 = inlined_call_operand.hbm [shape: f32[32,128], index: 3, kind: output, shape index: {}]
  %s4 = sld [smem:[#allocation0]]
  $region34: #{diff_attention_forward.1} parent=0
    _
  %s6 = ssub.s32 1, %s4
  %s7 = scalar_select 0, %s6, %s4
  $region1: #{diff_attention_forward.1} parent=0
    #allocation2 [shape = 'u8[16384]{0}', space=vmem, size = 0x4000, scoped, tag = 'input window, operand 0, single buffered']
    #allocation3 [shape = 's32[1]{0}', space=sflag, size = 0x4, scoped, tag = 'scoped memory for diff_attention_forward.1']
    #allocation4 [shape = 's32[1]{0}', space=sflag, size = 0x4, scoped, tag = 'scoped memory for diff_attention_forward.1']
    #allocation5 [shape = 'u8[163840]{0}', space=vmem, size = 0x28000, scoped, tag = 'input window, operand 1, single buffered']
    #allocation6 [shape = 's32[1]{0}', space=sflag, size = 0x4, scoped, tag = 'scoped memory for diff_attention_forward.1']
    #allocation7 [shape = 'u8[32768]{0}', space=vmem, size = 0x8000, scoped, tag = 'input window, operand 2, single buffered']
    #allocation8 [shape = 'u8[16384]{0}', space=vmem, size = 0x4000, scoped, tag = 'output window, operand 0, single buffered']
    %8 = vsyncpa [#allocation3], 0
    %9 = vsyncpa [#allocation6], 0
    %10 = vsyncpa [#allocation4], 0
    // Predicated region
    $region2: #{diff_attention_forward.1} parent=1 // pred_check
      _
    $region3: #{diff_attention_forward.1} parent=1 // pred_check_branch
      %12 = sbr.rel (0) target = $region5
    $region4: #{diff_attention_forward.1} parent=1 // pred_region
      %s14 = ssub.s32 512, 512
      %15 = vsyncadd [#allocation3], %s14
      %s16 = sshll.u32 [#allocation2], 4
      %s17 = int_to_ptr.vmem [resolvable:$true] %s16
      %22 = dma.hbm_to_vmem [thread:$0]  %s0, 512, %s17, [#allocation3], 128, 128, 8
    $region5: #{diff_attention_forward.1} parent=1 // pred_fallthru
      _
    // Predicated region
    $region6: #{diff_attention_forward.1} parent=1 // pred_check
      _
    $region7: #{diff_attention_forward.1} parent=1 // pred_check_branch
      %24 = sbr.rel (0) target = $region9
    $region8: #{diff_attention_forward.1} parent=1 // pred_region
      %s26 = ssub.s32 5120, 5120
      %27 = vsyncadd [#allocation6], %s26
      %s28 = sshll.u32 [#allocation5], 4
      %s29 = int_to_ptr.vmem [resolvable:$true] %s28
      %34 = dma.hbm_to_vmem [thread:$0]  %s1, 5120, %s29, [#allocation6], 320, 320, 20
    $region9: #{diff_attention_forward.1} parent=1 // pred_fallthru
      _
    // Predicated region
    $region10: #{diff_attention_forward.1} parent=1 // pred_check
      _
    $region11: #{diff_attention_forward.1} parent=1 // pred_check_branch
      %36 = sbr.rel (0) target = $region13
    $region12: #{diff_attention_forward.1} parent=1 // pred_region
      %s38 = ssub.s32 1024, 1024
      %39 = vsyncadd [#allocation6], %s38
      %s40 = sshll.u32 [#allocation7], 4
      %s41 = int_to_ptr.vmem [resolvable:$true] %s40
      %46 = dma.hbm_to_vmem [thread:$0]  %s2, 1024, %s41, [#allocation6], 64, 64, 4
    $region13: #{diff_attention_forward.1} parent=1 // pred_fallthru
      _
    // Predicated region
    $region14: #{diff_attention_forward.1} parent=1 // pred_check
      _
    $region15: #{diff_attention_forward.1} parent=1 // pred_check_branch
      %48 = sbr.rel (0) target = $region17
    $region16: #{diff_attention_forward.1} parent=1 // pred_region
      %49 = dma.done [#allocation3], 512
    $region17: #{diff_attention_forward.1} parent=1 // pred_fallthru
      _
    // Predicated region
    $region18: #{diff_attention_forward.1} parent=1 // pred_check
      _
    $region19: #{diff_attention_forward.1} parent=1 // pred_check_branch
      %51 = sbr.rel (0) target = $region21
    $region20: #{diff_attention_forward.1} parent=1 // pred_region
      %52 = dma.done [#allocation6], 5120
    $region21: #{diff_attention_forward.1} parent=1 // pred_fallthru
      _
    // Predicated region
    $region22: #{diff_attention_forward.1} parent=1 // pred_check
      _
    $region23: #{diff_attention_forward.1} parent=1 // pred_check_branch
      %54 = sbr.rel (0) target = $region25
    $region24: #{diff_attention_forward.1} parent=1 // pred_region
      %55 = dma.done [#allocation6], 1024
    $region25: #{diff_attention_forward.1} parent=1 // pred_fallthru
      _
    %v57 = vld [vmem:[#allocation2] sm:$0xff]
    %v58 = vld [vmem:[#allocation2 + $0x8] sm:$0xff]
    %v59 = vld [vmem:[#allocation2 + $0x10] sm:$0xff]
    %v60 = vld [vmem:[#allocation2 + $0x18] sm:$0xff]
    %v61 = vpack.c.bf16 %v58, %v57
    %v62 = vpack.c.bf16 %v60, %v59
    %v63 = vld [vmem:[#allocation5] sm:$0xff]
    %v64 = vld [vmem:[#allocation5 + $0x8] sm:$0xff]
    %v65 = vld [vmem:[#allocation5 + $0x10] sm:$0xf]
    %v66 = vld [vmem:[#allocation5 + $0x14] sm:$0xff]
    %v67 = vld [vmem:[#allocation5 + $0x1c] sm:$0xff]
    %v68 = vld [vmem:[#allocation5 + $0x24] sm:$0xf]
    %v69 = vld [vmem:[#allocation5 + $0x28] sm:$0xff]
    %v70 = vld [vmem:[#allocation5 + $0x30] sm:$0xff]
    %v71 = vld [vmem:[#allocation5 + $0x38] sm:$0xf]
    %v72 = vld [vmem:[#allocation5 + $0x3c] sm:$0xff]
    %v73 = vld [vmem:[#allocation5 + $0x44] sm:$0xff]
    %v74 = vld [vmem:[#allocation5 + $0x4c] sm:$0xf]
    %v75 = vld [vmem:[#allocation5 + $0x50] sm:$0xff]
    %v76 = vld [vmem:[#allocation5 + $0x58] sm:$0xff]
    %v77 = vld [vmem:[#allocation5 + $0x60] sm:$0xf]
    %v78 = vld [vmem:[#allocation5 + $0x64] sm:$0xff]
    %v79 = vld [vmem:[#allocation5 + $0x6c] sm:$0xff]
    %v80 = vld [vmem:[#allocation5 + $0x74] sm:$0xf]
    %v81 = vld [vmem:[#allocation5 + $0x78] sm:$0xff]
    %v82 = vld [vmem:[#allocation5 + $0x80] sm:$0xff]
    %v83 = vld [vmem:[#allocation5 + $0x88] sm:$0xf]
    %v84 = vld [vmem:[#allocation5 + $0x8c] sm:$0xff]
    %v85 = vld [vmem:[#allocation5 + $0x94] sm:$0xff]
    %v86 = vld [vmem:[#allocation5 + $0x9c] sm:$0xf]
    %v87 = vld [vmem:[#allocation5 + $0xa0] sm:$0xff]
    %v88 = vld [vmem:[#allocation5 + $0xa8] sm:$0xff]
    %v89 = vld [vmem:[#allocation5 + $0xb0] sm:$0xf]
    %v90 = vld [vmem:[#allocation5 + $0xb4] sm:$0xff]
    %v91 = vld [vmem:[#allocation5 + $0xbc] sm:$0xff]
    %v92 = vld [vmem:[#allocation5 + $0xc4] sm:$0xf]
    %v93 = vld [vmem:[#allocation5 + $0xc8] sm:$0xff]
    %v94 = vld [vmem:[#allocation5 + $0xd0] sm:$0xff]
    %v95 = vld [vmem:[#allocation5 + $0xd8] sm:$0xf]
    %v96 = vld [vmem:[#allocation5 + $0xdc] sm:$0xff]
    %v97 = vld [vmem:[#allocation5 + $0xe4] sm:$0xff]
    %v98 = vld [vmem:[#allocation5 + $0xec] sm:$0xf]
    %v99 = vld [vmem:[#allocation5 + $0xf0] sm:$0xff]
    %v100 = vld [vmem:[#allocation5 + $0xf8] sm:$0xff]
    %v101 = vld [vmem:[#allocation5 + $0x100] sm:$0xf]
    %v102 = vld [vmem:[#allocation5 + $0x104] sm:$0xff]
    %v103 = vld [vmem:[#allocation5 + $0x10c] sm:$0xff]
    %v104 = vld [vmem:[#allocation5 + $0x114] sm:$0xf]
    %v105 = vld [vmem:[#allocation5 + $0x118] sm:$0xff]
    %v106 = vld [vmem:[#allocation5 + $0x120] sm:$0xff]
    %v107 = vld [vmem:[#allocation5 + $0x128] sm:$0xf]
    %v108 = vld [vmem:[#allocation5 + $0x12c] sm:$0xff]
    %v109 = vld [vmem:[#allocation5 + $0x134] sm:$0xff]
    %v110 = vld [vmem:[#allocation5 + $0x13c] sm:$0xf]
    %v159 = vunpack.c.l.b16 %v63
    %v160 = vunpack.c.h.b16 %v63
    %v161 = vunpack.c.l.b16 %v64
    %v162 = vunpack.c.h.b16 %v64
    %v163 = vunpack.c.l.b16 %v65
    %v164 = vunpack.c.l.b16 %v66
    %v165 = vunpack.c.h.b16 %v66
    %v166 = vunpack.c.l.b16 %v67
    %v167 = vunpack.c.h.b16 %v67
    %v168 = vunpack.c.l.b16 %v68
    %v169 = vunpack.c.l.b16 %v69
    %v170 = vunpack.c.h.b16 %v69
    %v171 = vunpack.c.l.b16 %v70
    %v172 = vunpack.c.h.b16 %v70
    %v173 = vunpack.c.l.b16 %v71
    %v174 = vunpack.c.l.b16 %v72
    %v175 = vunpack.c.h.b16 %v72
    %v176 = vunpack.c.l.b16 %v73
    %v177 = vunpack.c.h.b16 %v73
    %v178 = vunpack.c.l.b16 %v74
    %v179 = vunpack.c.l.b16 %v75
    %v180 = vunpack.c.h.b16 %v75
    %v181 = vunpack.c.l.b16 %v76
    %v182 = vunpack.c.h.b16 %v76
    %v183 = vunpack.c.l.b16 %v77
    %v184 = vunpack.c.l.b16 %v78
    %v185 = vunpack.c.h.b16 %v78
    %v186 = vunpack.c.l.b16 %v79
    %v187 = vunpack.c.h.b16 %v79
    %v188 = vunpack.c.l.b16 %v80
    %v189 = vunpack.c.l.b16 %v81
    %v190 = vunpack.c.h.b16 %v81
    %v191 = vunpack.c.l.b16 %v82
    %v192 = vunpack.c.h.b16 %v82
    %v193 = vunpack.c.l.b16 %v83
    %v194 = vunpack.c.l.b16 %v84
    %v195 = vunpack.c.h.b16 %v84
    %v196 = vunpack.c.l.b16 %v85
    %v197 = vunpack.c.h.b16 %v85
    %v198 = vunpack.c.l.b16 %v86
    %v199 = vunpack.c.l.b16 %v87
    %v200 = vunpack.c.h.b16 %v87
    %v201 = vunpack.c.l.b16 %v88
    %v202 = vunpack.c.h.b16 %v88
    %v203 = vunpack.c.l.b16 %v89
    %v204 = vunpack.c.l.b16 %v90
    %v205 = vunpack.c.h.b16 %v90
    %v206 = vunpack.c.l.b16 %v91
    %v207 = vunpack.c.h.b16 %v91
    %v208 = vunpack.c.l.b16 %v92
    %v209 = vunpack.c.l.b16 %v93
    %v210 = vunpack.c.h.b16 %v93
    %v211 = vunpack.c.l.b16 %v94
    %v212 = vunpack.c.h.b16 %v94
    %v213 = vunpack.c.l.b16 %v95
    %v214 = vunpack.c.l.b16 %v96
    %v215 = vunpack.c.h.b16 %v96
    %v216 = vunpack.c.l.b16 %v97
    %v217 = vunpack.c.h.b16 %v97
    %v218 = vunpack.c.l.b16 %v98
    %v219 = vunpack.c.l.b16 %v99
    %v220 = vunpack.c.h.b16 %v99
    %v221 = vunpack.c.l.b16 %v100
    %v222 = vunpack.c.h.b16 %v100
    %v223 = vunpack.c.l.b16 %v101
    %v224 = vunpack.c.l.b16 %v102
    %v225 = vunpack.c.h.b16 %v102
    %v226 = vunpack.c.l.b16 %v103
    %v227 = vunpack.c.h.b16 %v103
    %v228 = vunpack.c.l.b16 %v104
    %v229 = vunpack.c.l.b16 %v105
    %v230 = vunpack.c.h.b16 %v105
    %v231 = vunpack.c.l.b16 %v106
    %v232 = vunpack.c.h.b16 %v106
    %v233 = vunpack.c.l.b16 %v107
    %v234 = vunpack.c.l.b16 %v108
    %v235 = vunpack.c.h.b16 %v108
    %v236 = vunpack.c.l.b16 %v109
    %v237 = vunpack.c.h.b16 %v109
    %v238 = vunpack.c.l.b16 %v110
    %v239 = vpack.c.b16 %v164, %v159
    %v240 = vpack.c.b16 %v165, %v160
    %v241 = vpack.c.b16 %v166, %v161
    %v242 = vpack.c.b16 %v167, %v162
    %v243 = vpack.c.b16 %v168, %v163
    %v244 = vpack.c.b16 %v174, %v169
    %v245 = vpack.c.b16 %v175, %v170
    %v246 = vpack.c.b16 %v176, %v171
    %v247 = vpack.c.b16 %v177, %v172
    %v248 = vpack.c.b16 %v178, %v173
    %v249 = vpack.c.b16 %v184, %v179
    %v250 = vpack.c.b16 %v185, %v180
    %v251 = vpack.c.b16 %v186, %v181
    %v252 = vpack.c.b16 %v187, %v182
    %v253 = vpack.c.b16 %v188, %v183
    %v254 = vpack.c.b16 %v194, %v189
    %v255 = vpack.c.b16 %v195, %v190
    %v256 = vpack.c.b16 %v196, %v191
    %v257 = vpack.c.b16 %v197, %v192
    %v258 = vpack.c.b16 %v198, %v193
    %v259 = vpack.c.b16 %v204, %v199
    %v260 = vpack.c.b16 %v205, %v200
    %v261 = vpack.c.b16 %v206, %v201
    %v262 = vpack.c.b16 %v207, %v202
    %v263 = vpack.c.b16 %v208, %v203
    %v264 = vpack.c.b16 %v214, %v209
    %v265 = vpack.c.b16 %v215, %v210
    %v266 = vpack.c.b16 %v216, %v211
    %v267 = vpack.c.b16 %v217, %v212
    %v268 = vpack.c.b16 %v218, %v213
    %v269 = vpack.c.b16 %v224, %v219
    %v270 = vpack.c.b16 %v225, %v220
    %v271 = vpack.c.b16 %v226, %v221
    %v272 = vpack.c.b16 %v227, %v222
    %v273 = vpack.c.b16 %v228, %v223
    %v274 = vpack.c.b16 %v234, %v229
    %v275 = vpack.c.b16 %v235, %v230
    %v276 = vpack.c.b16 %v236, %v231
    %v277 = vpack.c.b16 %v237, %v232
    %v278 = vpack.c.b16 %v238, %v233
    %319 = vmatprep.subr.bf16.mxu0 %v240
    %320 = vmatpush1.bf16.msra.mxu0 %v239
    %321 = vmatprep.subr.bf16.mxu0 %v245
    %322 = vmatpush1.bf16.msra.mxu0 %v244
    %323 = vmatprep.subr.bf16.mxu0 %v250
    %324 = vmatpush1.bf16.msra.mxu0 %v249
    %325 = vmatprep.subr.bf16.mxu0 %v255
    %326 = vmatpush1.bf16.msra.mxu0 %v254
    %327 = vmatprep.subr.bf16.mxu0 %v260
    %328 = vmatpush1.bf16.msra.mxu0 %v259
    %329 = vmatprep.subr.bf16.mxu0 %v265
    %330 = vmatpush1.bf16.msra.mxu0 %v264
    %331 = vmatprep.subr.bf16.mxu0 %v270
    %332 = vmatpush1.bf16.msra.mxu0 %v269
    %333 = vmatprep.subr.bf16.mxu0 %v275
    %334 = vmatpush1.bf16.msra.mxu0 %v274
    %335 = vmatprep.subr.bf16.mxu0 0
    %336 = vmatpush1.bf16.msra.mxu0 0
    %337 = vmatprep.subr.bf16.mxu0 0
    %338 = vmatpush1.bf16.msra.mxu0 0
    %339 = vmatprep.subr.bf16.mxu0 0
    %340 = vmatpush1.bf16.msra.mxu0 0
    %341 = vmatprep.subr.bf16.mxu0 0
    %342 = vmatpush1.bf16.msra.mxu0 0
    %343 = vmatprep.subr.bf16.mxu0 0
    %344 = vmatpush1.bf16.msra.mxu0 0
    %345 = vmatprep.subr.bf16.mxu0 0
    %346 = vmatpush1.bf16.msra.mxu0 0
    %347 = vmatprep.subr.bf16.mxu0 0
    %348 = vmatpush1.bf16.msra.mxu0 0
    %349 = vmatprep.subr.bf16.mxu0 0
    %350 = vmatpush1.bf16.msra.mxu0 0
    %351 = vmatprep.mubr.bf16.mxu0 0
    %352 = vmatmul.mubr.bf16.gmra.mrb[0].mxu0 %v61
    %v353 = vpop.f32.mrb[0].mxu0
    %v354 = vadd.f32 0.0, %v353
    %v355 = vpop.f32.mrb[0].mxu0
    %v356 = vadd.f32 0.0, %v355
    %v357 = vpop.f32.mrb[0].mxu0
    %v358 = vadd.f32 0.0, %v357
    %v359 = vpop.f32.mrb[0].mxu0
    %v360 = vadd.f32 0.0, %v359
    %361 = vmatprep.mubr.bf16.mxu0 0
    %362 = vmatmul.mubr.bf16.gmra.mrb[0].mxu0 %v62
    %v363 = vpop.f32.mrb[0].mxu0
    %v364 = vadd.f32 0.0, %v363
    %v365 = vpop.f32.mrb[0].mxu0
    %v366 = vadd.f32 0.0, %v365
    %v367 = vpop.f32.mrb[0].mxu0
    %v368 = vadd.f32 0.0, %v367
    %v369 = vpop.f32.mrb[0].mxu0
    %v370 = vadd.f32 0.0, %v369
    %371 = vdwg.mxu0
    %372 = vmatprep.subr.bf16.mxu0 %v242
    %373 = vmatpush1.bf16.msra.mxu0 %v241
    %374 = vmatprep.subr.bf16.mxu0 %v247
    %375 = vmatpush1.bf16.msra.mxu0 %v246
    %376 = vmatprep.subr.bf16.mxu0 %v252
    %377 = vmatpush1.bf16.msra.mxu0 %v251
    %378 = vmatprep.subr.bf16.mxu0 %v257
    %379 = vmatpush1.bf16.msra.mxu0 %v256
    %380 = vmatprep.subr.bf16.mxu0 %v262
    %381 = vmatpush1.bf16.msra.mxu0 %v261
    %382 = vmatprep.subr.bf16.mxu0 %v267
    %383 = vmatpush1.bf16.msra.mxu0 %v266
    %384 = vmatprep.subr.bf16.mxu0 %v272
    %385 = vmatpush1.bf16.msra.mxu0 %v271
    %386 = vmatprep.subr.bf16.mxu0 %v277
    %387 = vmatpush1.bf16.msra.mxu0 %v276
    %388 = vmatprep.subr.bf16.mxu0 0
    %389 = vmatpush1.bf16.msra.mxu0 0
    %390 = vmatprep.subr.bf16.mxu0 0
    %391 = vmatpush1.bf16.msra.mxu0 0
    %392 = vmatprep.subr.bf16.mxu0 0
    %393 = vmatpush1.bf16.msra.mxu0 0
    %394 = vmatprep.subr.bf16.mxu0 0
    %395 = vmatpush1.bf16.msra.mxu0 0
    %396 = vmatprep.subr.bf16.mxu0 0
    %397 = vmatpush1.bf16.msra.mxu0 0
    %398 = vmatprep.subr.bf16.mxu0 0
    %399 = vmatpush1.bf16.msra.mxu0 0
    %400 = vmatprep.subr.bf16.mxu0 0
    %401 = vmatpush1.bf16.msra.mxu0 0
    %402 = vmatprep.subr.bf16.mxu0 0
    %403 = vmatpush1.bf16.msra.mxu0 0
    %404 = vmatprep.mubr.bf16.mxu0 0
    %405 = vmatmul.mubr.bf16.gmra.mrb[0].mxu0 %v61
    %v406 = vpop.f32.mrb[0].mxu0
    %v407 = vadd.f32 0.0, %v406
    %v408 = vpop.f32.mrb[0].mxu0
    %v409 = vadd.f32 0.0, %v408
    %v410 = vpop.f32.mrb[0].mxu0
    %v411 = vadd.f32 0.0, %v410
    %v412 = vpop.f32.mrb[0].mxu0
    %v413 = vadd.f32 0.0, %v412
    %414 = vmatprep.mubr.bf16.mxu0 0
    %415 = vmatmul.mubr.bf16.gmra.mrb[0].mxu0 %v62
    %v416 = vpop.f32.mrb[0].mxu0
    %v417 = vadd.f32 0.0, %v416
    %v418 = vpop.f32.mrb[0].mxu0
    %v419 = vadd.f32 0.0, %v418
    %v420 = vpop.f32.mrb[0].mxu0
    %v421 = vadd.f32 0.0, %v420
    %v422 = vpop.f32.mrb[0].mxu0
    %v423 = vadd.f32 0.0, %v422
    %424 = vdwg.mxu0
    %425 = vmatprep.subr.bf16.mxu0 0
    %426 = vmatpush1.bf16.msra.mxu0 %v243
    %427 = vmatprep.subr.bf16.mxu0 0
    %428 = vmatpush1.bf16.msra.mxu0 %v248
    %429 = vmatprep.subr.bf16.mxu0 0
    %430 = vmatpush1.bf16.msra.mxu0 %v253
    %431 = vmatprep.subr.bf16.mxu0 0
    %432 = vmatpush1.bf16.msra.mxu0 %v258
    %433 = vmatprep.subr.bf16.mxu0 0
    %434 = vmatpush1.bf16.msra.mxu0 %v263
    %435 = vmatprep.subr.bf16.mxu0 0
    %436 = vmatpush1.bf16.msra.mxu0 %v268
    %437 = vmatprep.subr.bf16.mxu0 0
    %438 = vmatpush1.bf16.msra.mxu0 %v273
    %439 = vmatprep.subr.bf16.mxu0 0
    %440 = vmatpush1.bf16.msra.mxu0 %v278
    %441 = vmatprep.subr.bf16.mxu0 0
    %442 = vmatpush1.bf16.msra.mxu0 0
    %443 = vmatprep.subr.bf16.mxu0 0
    %444 = vmatpush1.bf16.msra.mxu0 0
    %445 = vmatprep.subr.bf16.mxu0 0
    %446 = vmatpush1.bf16.msra.mxu0 0
    %447 = vmatprep.subr.bf16.mxu0 0
    %448 = vmatpush1.bf16.msra.mxu0 0
    %449 = vmatprep.subr.bf16.mxu0 0
    %450 = vmatpush1.bf16.msra.mxu0 0
    %451 = vmatprep.subr.bf16.mxu0 0
    %452 = vmatpush1.bf16.msra.mxu0 0
    %453 = vmatprep.subr.bf16.mxu0 0
    %454 = vmatpush1.bf16.msra.mxu0 0
    %455 = vmatprep.subr.bf16.mxu0 0
    %456 = vmatpush1.bf16.msra.mxu0 0
    %457 = vmatprep.mubr.bf16.mxu0 0
    %458 = vmatmul.mubr.bf16.gmra.mrb[0].mxu0 %v61
    %v459 = vpop.f32.mrb[0].mxu0
    %v460 = vadd.f32 0.0, %v459
    %v461 = vpop.f32.mrb[0].mxu0
    %v462 = vpop.f32.mrb[0].mxu0
    %v463 = vadd.f32 0.0, %v462
    %v464 = vpop.f32.mrb[0].mxu0
    %465 = vmatprep.mubr.bf16.mxu0 0
    %466 = vmatmul.mubr.bf16.gmra.mrb[0].mxu0 %v62
    %v467 = vpop.f32.mrb[0].mxu0
    %v468 = vadd.f32 0.0, %v467
    %v469 = vpop.f32.mrb[0].mxu0
    %v470 = vpop.f32.mrb[0].mxu0
    %v471 = vadd.f32 0.0, %v470
    %v472 = vpop.f32.mrb[0].mxu0
    %473 = vdwg.mxu0
    %v474 = vpack.c.bf16 %v358, %v354
    %v475 = vpack.c.bf16 %v360, %v356
    %v476 = vpack.c.bf16 %v411, %v407
    %v477 = vpack.c.bf16 %v413, %v409
    %v478 = vpack.c.bf16 %v463, %v460
    %v479 = vpack.c.bf16 %v368, %v364
    %v480 = vpack.c.bf16 %v370, %v366
    %v481 = vpack.c.bf16 %v421, %v417
    %v482 = vpack.c.bf16 %v423, %v419
    %v483 = vpack.c.bf16 %v471, %v468
    %v484 = vlaneseq
    %v485 = vshrl.u32 %v484, 7
    %v486 = vadd.s32 %v485, 8
    %v487 = vlaneseq
    %v488 = vand.u32 %v487, 127
    %vm489 = vcmp.gt.s32.totalorder %v488, %v485
    %vm490 = vcmp.gt.s32.totalorder %v488, %v486
    %v491 = vsel %vm489, -inf, 0.0
    %v492 = vsel %vm490, -inf, 0.0
    %vm493 = vcmask 130048
    %v495 = vsel %vm493, %v474, 0
    %v498 = vsel %vm493, %v476, 0
    %500 = vmatprep.subr.bf16.mxu0 0
    %501 = vmatpush1.bf16.xpose.msra.mxu0 %v498
    %502 = vmatprep.subr.bf16.mxu0 0
    %503 = vmatpush1.bf16.xpose.msra.mxu0 0
    %504 = vmatprep.subr.bf16.mxu0 0
    %505 = vmatpush1.bf16.xpose.msra.mxu0 0
    %506 = vmatprep.subr.bf16.mxu0 0
    %507 = vmatpush1.bf16.xpose.msra.mxu0 0
    %508 = vmatprep.subr.bf16.mxu0 0
    %509 = vmatpush1.bf16.xpose.msra.mxu0 0
    %510 = vmatprep.subr.bf16.mxu0 0
    %511 = vmatpush1.bf16.xpose.msra.mxu0 0
    %512 = vmatprep.subr.bf16.mxu0 0
    %513 = vmatpush1.bf16.xpose.msra.mxu0 0
    %514 = vmatprep.subr.bf16.mxu0 0
    %515 = vmatpush1.bf16.xpose.msra.mxu0 0
    %516 = vmatprep.subr.bf16.mxu0 0
    %517 = vmatpush1.bf16.xpose.msra.mxu0 0
    %518 = vmatprep.subr.bf16.mxu0 0
    %519 = vmatpush1.bf16.xpose.msra.mxu0 0
    %520 = vmatprep.subr.bf16.mxu0 0
    %521 = vmatpush1.bf16.xpose.msra.mxu0 0
    %522 = vmatprep.subr.bf16.mxu0 0
    %523 = vmatpush1.bf16.xpose.msra.mxu0 0
    %524 = vmatprep.subr.bf16.mxu0 0
    %525 = vmatpush1.bf16.xpose.msra.mxu0 0
    %526 = vmatprep.subr.bf16.mxu0 0
    %527 = vmatpush1.bf16.xpose.msra.mxu0 0
    %528 = vmatprep.subr.bf16.mxu0 0
    %529 = vmatpush1.bf16.xpose.msra.mxu0 0
    %530 = vmatprep.subr.bf16.mxu0 0
    %531 = vmatpush1.bf16.xpose.msra.mxu0 0
    %532 = vmatprep.mubr.bf16.mxu0 0
    %533 = vmatmul.mubr.bf16.gmra.mrb[0].mxu0 %v495
    %v534 = vpop.f32.mrb[0].mxu0
    %v535 = vadd.f32 %v491, %v534
    %v536 = vpop.f32.mrb[0].mxu0
    %v537 = vpop.f32.mrb[0].mxu0
    %v538 = vadd.f32 %v492, %v537
    %v539 = vpop.f32.mrb[0].mxu0
    %540 = vdwg.mxu0
    %v541 = vsel %vm493, %v535, -inf
    %542 = vmax.xlane.f32.xlu0 %v541
    %v543 = vpop.xlane.xlu0 %542
    %v544 = vsel %vm493, %v538, -inf
    %545 = vmax.xlane.f32.xlu0 %v544
    %v546 = vpop.xlane.xlu0 %545
    %v547 = vsub.f32 %v535, %v543
    %v548 = vsub.f32 %v538, %v546
    %v549 = vpack.c.bf16 %v548, %v547
    %v551 = vmul.bf16 %v549, 1069105081
    %v552 = vpow.bf16.pop %v551
    %v553 = vunpack.c.l.bf16 %v552
    %v554 = vunpack.c.h.bf16 %v552
    %v555 = vsel %vm493, %v553, 0.0
    %556 = vadd.xlane.f32.xlu0 %v555
    %v557 = vpop.xlane.xlu0 %556
    %v558 = vsel %vm493, %v554, 0.0
    %559 = vadd.xlane.f32.xlu0 %v558
    %v560 = vpop.xlane.xlu0 %559
    %v561 = vrcp.pop %v557
    %v562 = vrcp.pop %v560
    %v563 = vmul.f32 %v553, %v561
    %v564 = vmul.f32 %v554, %v562
    %v566 = vsel %vm493, %v475, 0
    %v569 = vsel %vm493, %v477, 0
    %571 = vmatprep.subr.bf16.mxu0 0
    %572 = vmatpush1.bf16.xpose.msra.mxu0 %v569
    %573 = vmatprep.subr.bf16.mxu0 0
    %574 = vmatpush1.bf16.xpose.msra.mxu0 0
    %575 = vmatprep.subr.bf16.mxu0 0
    %576 = vmatpush1.bf16.xpose.msra.mxu0 0
    %577 = vmatprep.subr.bf16.mxu0 0
    %578 = vmatpush1.bf16.xpose.msra.mxu0 0
    %579 = vmatprep.subr.bf16.mxu0 0
    %580 = vmatpush1.bf16.xpose.msra.mxu0 0
    %581 = vmatprep.subr.bf16.mxu0 0
    %582 = vmatpush1.bf16.xpose.msra.mxu0 0
    %583 = vmatprep.subr.bf16.mxu0 0
    %584 = vmatpush1.bf16.xpose.msra.mxu0 0
    %585 = vmatprep.subr.bf16.mxu0 0
    %586 = vmatpush1.bf16.xpose.msra.mxu0 0
    %587 = vmatprep.subr.bf16.mxu0 0
    %588 = vmatpush1.bf16.xpose.msra.mxu0 0
    %589 = vmatprep.subr.bf16.mxu0 0
    %590 = vmatpush1.bf16.xpose.msra.mxu0 0
    %591 = vmatprep.subr.bf16.mxu0 0
    %592 = vmatpush1.bf16.xpose.msra.mxu0 0
    %593 = vmatprep.subr.bf16.mxu0 0
    %594 = vmatpush1.bf16.xpose.msra.mxu0 0
    %595 = vmatprep.subr.bf16.mxu0 0
    %596 = vmatpush1.bf16.xpose.msra.mxu0 0
    %597 = vmatprep.subr.bf16.mxu0 0
    %598 = vmatpush1.bf16.xpose.msra.mxu0 0
    %599 = vmatprep.subr.bf16.mxu0 0
    %600 = vmatpush1.bf16.xpose.msra.mxu0 0
    %601 = vmatprep.subr.bf16.mxu0 0
    %602 = vmatpush1.bf16.xpose.msra.mxu0 0
    %603 = vmatprep.mubr.bf16.mxu0 0
    %604 = vmatmul.mubr.bf16.gmra.mrb[0].mxu0 %v566
    %v605 = vpop.f32.mrb[0].mxu0
    %v606 = vadd.f32 %v491, %v605
    %v607 = vpop.f32.mrb[0].mxu0
    %v608 = vpop.f32.mrb[0].mxu0
    %v609 = vadd.f32 %v492, %v608
    %v610 = vpop.f32.mrb[0].mxu0
    %611 = vdwg.mxu0
    %v612 = vsel %vm493, %v606, -inf
    %613 = vmax.xlane.f32.xlu0 %v612
    %v614 = vpop.xlane.xlu0 %613
    %v615 = vsel %vm493, %v609, -inf
    %616 = vmax.xlane.f32.xlu0 %v615
    %v617 = vpop.xlane.xlu0 %616
    %v618 = vsub.f32 %v606, %v614
    %v619 = vsub.f32 %v609, %v617
    %v620 = vpack.c.bf16 %v619, %v618
    %v622 = vmul.bf16 %v620, 1069105081
    %v623 = vpow.bf16.pop %v622
    %v624 = vunpack.c.l.bf16 %v623
    %v625 = vunpack.c.h.bf16 %v623
    %v626 = vsel %vm493, %v624, 0.0
    %627 = vadd.xlane.f32.xlu0 %v626
    %v628 = vpop.xlane.xlu0 %627
    %v629 = vsel %vm493, %v625, 0.0
    %630 = vadd.xlane.f32.xlu0 %v629
    %v631 = vpop.xlane.xlu0 %630
    %v632 = vrcp.pop %v628
    %v633 = vrcp.pop %v631
    %v634 = vmul.f32 %v632, 0.35550907
    %v635 = vmul.f32 %v633, 0.35550907
    %v636 = vmul.f32 %v624, %v634
    %v637 = vmul.f32 %v625, %v635
    %v638 = vsub.f32 %v563, %v636
    %v639 = vsub.f32 %v564, %v637
    %v640 = vpack.c.bf16 %v639, %v638
    %v642 = vsel %vm493, %v640, 0
    %644 = vmatprep.subr.bf16.mxu0 0
    %645 = vmatpush1.bf16.msra.mxu0 %v478
    %646 = vmatprep.subr.bf16.mxu0 0
    %647 = vmatpush1.bf16.msra.mxu0 0
    %648 = vmatprep.subr.bf16.mxu0 0
    %649 = vmatpush1.bf16.msra.mxu0 0
    %650 = vmatprep.subr.bf16.mxu0 0
    %651 = vmatpush1.bf16.msra.mxu0 0
    %652 = vmatprep.subr.bf16.mxu0 0
    %653 = vmatpush1.bf16.msra.mxu0 0
    %654 = vmatprep.subr.bf16.mxu0 0
    %655 = vmatpush1.bf16.msra.mxu0 0
    %656 = vmatprep.subr.bf16.mxu0 0
    %657 = vmatpush1.bf16.msra.mxu0 0
    %658 = vmatprep.subr.bf16.mxu0 0
    %659 = vmatpush1.bf16.msra.mxu0 0
    %660 = vmatprep.subr.bf16.mxu0 0
    %661 = vmatpush1.bf16.msra.mxu0 0
    %662 = vmatprep.subr.bf16.mxu0 0
    %663 = vmatpush1.bf16.msra.mxu0 0
    %664 = vmatprep.subr.bf16.mxu0 0
    %665 = vmatpush1.bf16.msra.mxu0 0
    %666 = vmatprep.subr.bf16.mxu0 0
    %667 = vmatpush1.bf16.msra.mxu0 0
    %668 = vmatprep.subr.bf16.mxu0 0
    %669 = vmatpush1.bf16.msra.mxu0 0
    %670 = vmatprep.subr.bf16.mxu0 0
    %671 = vmatpush1.bf16.msra.mxu0 0
    %672 = vmatprep.subr.bf16.mxu0 0
    %673 = vmatpush1.bf16.msra.mxu0 0
    %674 = vmatprep.subr.bf16.mxu0 0
    %675 = vmatpush1.bf16.msra.mxu0 0
    %676 = vmatprep.mubr.bf16.mxu0 0
    %677 = vmatmul.mubr.bf16.gmra.mrb[0].mxu0 %v642
    %v678 = vpop.f32.mrb[0].mxu0
    %v679 = vadd.f32 0.0, %v678
    %v680 = vpop.f32.mrb[0].mxu0
    %v681 = vpop.f32.mrb[0].mxu0
    %v682 = vadd.f32 0.0, %v681
    %v683 = vpop.f32.mrb[0].mxu0
    %684 = vdwg.mxu0
    %686 = vrot.lane.b32.xlu0 %v474, 112
    %v687 = vpop.permute.xlu0 %686
    %689 = vrot.lane.b32.xlu0 %v476, 112
    %v690 = vpop.permute.xlu0 %689
    %v692 = vsel %vm493, %v687, 0
    %v695 = vsel %vm493, %v690, 0
    %697 = vmatprep.subr.bf16.mxu0 0
    %698 = vmatpush1.bf16.xpose.msra.mxu0 %v695
    %699 = vmatprep.subr.bf16.mxu0 0
    %700 = vmatpush1.bf16.xpose.msra.mxu0 0
    %701 = vmatprep.subr.bf16.mxu0 0
    %702 = vmatpush1.bf16.xpose.msra.mxu0 0
    %703 = vmatprep.subr.bf16.mxu0 0
    %704 = vmatpush1.bf16.xpose.msra.mxu0 0
    %705 = vmatprep.subr.bf16.mxu0 0
    %706 = vmatpush1.bf16.xpose.msra.mxu0 0
    %707 = vmatprep.subr.bf16.mxu0 0
    %708 = vmatpush1.bf16.xpose.msra.mxu0 0
    %709 = vmatprep.subr.bf16.mxu0 0
    %710 = vmatpush1.bf16.xpose.msra.mxu0 0
    %711 = vmatprep.subr.bf16.mxu0 0
    %712 = vmatpush1.bf16.xpose.msra.mxu0 0
    %713 = vmatprep.subr.bf16.mxu0 0
    %714 = vmatpush1.bf16.xpose.msra.mxu0 0
    %715 = vmatprep.subr.bf16.mxu0 0
    %716 = vmatpush1.bf16.xpose.msra.mxu0 0
    %717 = vmatprep.subr.bf16.mxu0 0
    %718 = vmatpush1.bf16.xpose.msra.mxu0 0
    %719 = vmatprep.subr.bf16.mxu0 0
    %720 = vmatpush1.bf16.xpose.msra.mxu0 0
    %721 = vmatprep.subr.bf16.mxu0 0
    %722 = vmatpush1.bf16.xpose.msra.mxu0 0
    %723 = vmatprep.subr.bf16.mxu0 0
    %724 = vmatpush1.bf16.xpose.msra.mxu0 0
    %725 = vmatprep.subr.bf16.mxu0 0
    %726 = vmatpush1.bf16.xpose.msra.mxu0 0
    %727 = vmatprep.subr.bf16.mxu0 0
    %728 = vmatpush1.bf16.xpose.msra.mxu0 0
    %729 = vmatprep.mubr.bf16.mxu0 0
    %730 = vmatmul.mubr.bf16.gmra.mrb[0].mxu0 %v692
    %v731 = vpop.f32.mrb[0].mxu0
    %v732 = vadd.f32 %v491, %v731
    %v733 = vpop.f32.mrb[0].mxu0
    %v734 = vpop.f32.mrb[0].mxu0
    %v735 = vadd.f32 %v492, %v734
    %v736 = vpop.f32.mrb[0].mxu0
    %737 = vdwg.mxu0
    %v738 = vsel %vm493, %v732, -inf
    %739 = vmax.xlane.f32.xlu0 %v738
    %v740 = vpop.xlane.xlu0 %739
    %v741 = vsel %vm493, %v735, -inf
    %742 = vmax.xlane.f32.xlu0 %v741
    %v743 = vpop.xlane.xlu0 %742
    %v744 = vsub.f32 %v732, %v740
    %v745 = vsub.f32 %v735, %v743
    %v746 = vpack.c.bf16 %v745, %v744
    %v748 = vmul.bf16 %v746, 1069105081
    %v749 = vpow.bf16.pop %v748
    %v750 = vunpack.c.l.bf16 %v749
    %v751 = vunpack.c.h.bf16 %v749
    %v752 = vsel %vm493, %v750, 0.0
    %753 = vadd.xlane.f32.xlu0 %v752
    %v754 = vpop.xlane.xlu0 %753
    %v755 = vsel %vm493, %v751, 0.0
    %756 = vadd.xlane.f32.xlu0 %v755
    %v757 = vpop.xlane.xlu0 %756
    %v758 = vrcp.pop %v754
    %v759 = vrcp.pop %v757
    %v760 = vmul.f32 %v750, %v758
    %v761 = vmul.f32 %v751, %v759
    %763 = vrot.lane.b32.xlu0 %v475, 112
    %v764 = vpop.permute.xlu0 %763
    %766 = vrot.lane.b32.xlu0 %v477, 112
    %v767 = vpop.permute.xlu0 %766
    %v769 = vsel %vm493, %v764, 0
    %v772 = vsel %vm493, %v767, 0
    %774 = vmatprep.subr.bf16.mxu0 0
    %775 = vmatpush1.bf16.xpose.msra.mxu0 %v772
    %776 = vmatprep.subr.bf16.mxu0 0
    %777 = vmatpush1.bf16.xpose.msra.mxu0 0
    %778 = vmatprep.subr.bf16.mxu0 0
    %779 = vmatpush1.bf16.xpose.msra.mxu0 0
    %780 = vmatprep.subr.bf16.mxu0 0
    %781 = vmatpush1.bf16.xpose.msra.mxu0 0
    %782 = vmatprep.subr.bf16.mxu0 0
    %783 = vmatpush1.bf16.xpose.msra.mxu0 0
    %784 = vmatprep.subr.bf16.mxu0 0
    %785 = vmatpush1.bf16.xpose.msra.mxu0 0
    %786 = vmatprep.subr.bf16.mxu0 0
    %787 = vmatpush1.bf16.xpose.msra.mxu0 0
    %788 = vmatprep.subr.bf16.mxu0 0
    %789 = vmatpush1.bf16.xpose.msra.mxu0 0
    %790 = vmatprep.subr.bf16.mxu0 0
    %791 = vmatpush1.bf16.xpose.msra.mxu0 0
    %792 = vmatprep.subr.bf16.mxu0 0
    %793 = vmatpush1.bf16.xpose.msra.mxu0 0
    %794 = vmatprep.subr.bf16.mxu0 0
    %795 = vmatpush1.bf16.xpose.msra.mxu0 0
    %796 = vmatprep.subr.bf16.mxu0 0
    %797 = vmatpush1.bf16.xpose.msra.mxu0 0
    %798 = vmatprep.subr.bf16.mxu0 0
    %799 = vmatpush1.bf16.xpose.msra.mxu0 0
    %800 = vmatprep.subr.bf16.mxu0 0
    %801 = vmatpush1.bf16.xpose.msra.mxu0 0
    %802 = vmatprep.subr.bf16.mxu0 0
    %803 = vmatpush1.bf16.xpose.msra.mxu0 0
    %804 = vmatprep.subr.bf16.mxu0 0
    %805 = vmatpush1.bf16.xpose.msra.mxu0 0
    %806 = vmatprep.mubr.bf16.mxu0 0
    %807 = vmatmul.mubr.bf16.gmra.mrb[0].mxu0 %v769
    %v808 = vpop.f32.mrb[0].mxu0
    %v809 = vadd.f32 %v491, %v808
    %v810 = vpop.f32.mrb[0].mxu0
    %v811 = vpop.f32.mrb[0].mxu0
    %v812 = vadd.f32 %v492, %v811
    %v813 = vpop.f32.mrb[0].mxu0
    %814 = vdwg.mxu0
    %v815 = vsel %vm493, %v809, -inf
    %816 = vmax.xlane.f32.xlu0 %v815
    %v817 = vpop.xlane.xlu0 %816
    %v818 = vsel %vm493, %v812, -inf
    %819 = vmax.xlane.f32.xlu0 %v818
    %v820 = vpop.xlane.xlu0 %819
    %v821 = vsub.f32 %v809, %v817
    %v822 = vsub.f32 %v812, %v820
    %v823 = vpack.c.bf16 %v822, %v821
    %v825 = vmul.bf16 %v823, 1069105081
    %v826 = vpow.bf16.pop %v825
    %v827 = vunpack.c.l.bf16 %v826
    %v828 = vunpack.c.h.bf16 %v826
    %v829 = vsel %vm493, %v827, 0.0
    %830 = vadd.xlane.f32.xlu0 %v829
    %v831 = vpop.xlane.xlu0 %830
    %v832 = vsel %vm493, %v828, 0.0
    %833 = vadd.xlane.f32.xlu0 %v832
    %v834 = vpop.xlane.xlu0 %833
    %v835 = vrcp.pop %v831
    %v836 = vrcp.pop %v834
    %v837 = vmul.f32 %v835, 0.35550907
    %v838 = vmul.f32 %v836, 0.35550907
    %v839 = vmul.f32 %v827, %v837
    %v840 = vmul.f32 %v828, %v838
    %v841 = vsub.f32 %v760, %v839
    %v842 = vsub.f32 %v761, %v840
    %v843 = vpack.c.bf16 %v842, %v841
    %845 = vrot.lane.b32.xlu0 %v478, 112
    %v846 = vpop.permute.xlu0 %845
    %v849 = vsel %vm493, %v843, 0
    %851 = vmatprep.subr.bf16.mxu0 0
    %852 = vmatpush1.bf16.msra.mxu0 %v846
    %853 = vmatprep.subr.bf16.mxu0 0
    %854 = vmatpush1.bf16.msra.mxu0 0
    %855 = vmatprep.subr.bf16.mxu0 0
    %856 = vmatpush1.bf16.msra.mxu0 0
    %857 = vmatprep.subr.bf16.mxu0 0
    %858 = vmatpush1.bf16.msra.mxu0 0
    %859 = vmatprep.subr.bf16.mxu0 0
    %860 = vmatpush1.bf16.msra.mxu0 0
    %861 = vmatprep.subr.bf16.mxu0 0
    %862 = vmatpush1.bf16.msra.mxu0 0
    %863 = vmatprep.subr.bf16.mxu0 0
    %864 = vmatpush1.bf16.msra.mxu0 0
    %865 = vmatprep.subr.bf16.mxu0 0
    %866 = vmatpush1.bf16.msra.mxu0 0
    %867 = vmatprep.subr.bf16.mxu0 0
    %868 = vmatpush1.bf16.msra.mxu0 0
    %869 = vmatprep.subr.bf16.mxu0 0
    %870 = vmatpush1.bf16.msra.mxu0 0
    %871 = vmatprep.subr.bf16.mxu0 0
    %872 = vmatpush1.bf16.msra.mxu0 0
    %873 = vmatprep.subr.bf16.mxu0 0
    %874 = vmatpush1.bf16.msra.mxu0 0
    %875 = vmatprep.subr.bf16.mxu0 0
    %876 = vmatpush1.bf16.msra.mxu0 0
    %877 = vmatprep.subr.bf16.mxu0 0
    %878 = vmatpush1.bf16.msra.mxu0 0
    %879 = vmatprep.subr.bf16.mxu0 0
    %880 = vmatpush1.bf16.msra.mxu0 0
    %881 = vmatprep.subr.bf16.mxu0 0
    %882 = vmatpush1.bf16.msra.mxu0 0
    %883 = vmatprep.mubr.bf16.mxu0 0
    %884 = vmatmul.mubr.bf16.gmra.mrb[0].mxu0 %v849
    %v885 = vpop.f32.mrb[0].mxu0
    %v886 = vadd.f32 0.0, %v885
    %v887 = vpop.f32.mrb[0].mxu0
    %v888 = vpop.f32.mrb[0].mxu0
    %v889 = vadd.f32 0.0, %v888
    %v890 = vpop.f32.mrb[0].mxu0
    %891 = vdwg.mxu0
    %892 = vrot.lane.b32.xlu0 %v474, 96
    %v893 = vpop.permute.xlu0 %892
    %894 = vrot.lane.b32.xlu0 %v476, 96
    %v895 = vpop.permute.xlu0 %894
    %v897 = vsel %vm493, %v893, 0
    %v900 = vsel %vm493, %v895, 0
    %902 = vmatprep.subr.bf16.mxu0 0
    %903 = vmatpush1.bf16.xpose.msra.mxu0 %v900
    %904 = vmatprep.subr.bf16.mxu0 0
    %905 = vmatpush1.bf16.xpose.msra.mxu0 0
    %906 = vmatprep.subr.bf16.mxu0 0
    %907 = vmatpush1.bf16.xpose.msra.mxu0 0
    %908 = vmatprep.subr.bf16.mxu0 0
    %909 = vmatpush1.bf16.xpose.msra.mxu0 0
    %910 = vmatprep.subr.bf16.mxu0 0
    %911 = vmatpush1.bf16.xpose.msra.mxu0 0
    %912 = vmatprep.subr.bf16.mxu0 0
    %913 = vmatpush1.bf16.xpose.msra.mxu0 0
    %914 = vmatprep.subr.bf16.mxu0 0
    %915 = vmatpush1.bf16.xpose.msra.mxu0 0
    %916 = vmatprep.subr.bf16.mxu0 0
    %917 = vmatpush1.bf16.xpose.msra.mxu0 0
    %918 = vmatprep.subr.bf16.mxu0 0
    %919 = vmatpush1.bf16.xpose.msra.mxu0 0
    %920 = vmatprep.subr.bf16.mxu0 0
    %921 = vmatpush1.bf16.xpose.msra.mxu0 0
    %922 = vmatprep.subr.bf16.mxu0 0
    %923 = vmatpush1.bf16.xpose.msra.mxu0 0
    %924 = vmatprep.subr.bf16.mxu0 0
    %925 = vmatpush1.bf16.xpose.msra.mxu0 0
    %926 = vmatprep.subr.bf16.mxu0 0
    %927 = vmatpush1.bf16.xpose.msra.mxu0 0
    %928 = vmatprep.subr.bf16.mxu0 0
    %929 = vmatpush1.bf16.xpose.msra.mxu0 0
    %930 = vmatprep.subr.bf16.mxu0 0
    %931 = vmatpush1.bf16.xpose.msra.mxu0 0
    %932 = vmatprep.subr.bf16.mxu0 0
    %933 = vmatpush1.bf16.xpose.msra.mxu0 0
    %934 = vmatprep.mubr.bf16.mxu0 0
    %935 = vmatmul.mubr.bf16.gmra.mrb[0].mxu0 %v897
    %v936 = vpop.f32.mrb[0].mxu0
    %v937 = vadd.f32 %v491, %v936
    %v938 = vpop.f32.mrb[0].mxu0
    %v939 = vpop.f32.mrb[0].mxu0
    %v940 = vadd.f32 %v492, %v939
    %v941 = vpop.f32.mrb[0].mxu0
    %942 = vdwg.mxu0
    %v943 = vsel %vm493, %v937, -inf
    %944 = vmax.xlane.f32.xlu0 %v943
    %v945 = vpop.xlane.xlu0 %944
    %v946 = vsel %vm493, %v940, -inf
    %947 = vmax.xlane.f32.xlu0 %v946
    %v948 = vpop.xlane.xlu0 %947
    %v949 = vsub.f32 %v937, %v945
    %v950 = vsub.f32 %v940, %v948
    %v951 = vpack.c.bf16 %v950, %v949
    %v953 = vmul.bf16 %v951, 1069105081
    %v954 = vpow.bf16.pop %v953
    %v955 = vunpack.c.l.bf16 %v954
    %v956 = vunpack.c.h.bf16 %v954
    %v957 = vsel %vm493, %v955, 0.0
    %958 = vadd.xlane.f32.xlu0 %v957
    %v959 = vpop.xlane.xlu0 %958
    %v960 = vsel %vm493, %v956, 0.0
    %961 = vadd.xlane.f32.xlu0 %v960
    %v962 = vpop.xlane.xlu0 %961
    %v963 = vrcp.pop %v959
    %v964 = vrcp.pop %v962
    %v965 = vmul.f32 %v955, %v963
    %v966 = vmul.f32 %v956, %v964
    %967 = vrot.lane.b32.xlu0 %v475, 96
    %v968 = vpop.permute.xlu0 %967
    %969 = vrot.lane.b32.xlu0 %v477, 96
    %v970 = vpop.permute.xlu0 %969
    %v972 = vsel %vm493, %v968, 0
    %v975 = vsel %vm493, %v970, 0
    %977 = vmatprep.subr.bf16.mxu0 0
    %978 = vmatpush1.bf16.xpose.msra.mxu0 %v975
    %979 = vmatprep.subr.bf16.mxu0 0
    %980 = vmatpush1.bf16.xpose.msra.mxu0 0
    %981 = vmatprep.subr.bf16.mxu0 0
    %982 = vmatpush1.bf16.xpose.msra.mxu0 0
    %983 = vmatprep.subr.bf16.mxu0 0
    %984 = vmatpush1.bf16.xpose.msra.mxu0 0
    %985 = vmatprep.subr.bf16.mxu0 0
    %986 = vmatpush1.bf16.xpose.msra.mxu0 0
    %987 = vmatprep.subr.bf16.mxu0 0
    %988 = vmatpush1.bf16.xpose.msra.mxu0 0
    %989 = vmatprep.subr.bf16.mxu0 0
    %990 = vmatpush1.bf16.xpose.msra.mxu0 0
    %991 = vmatprep.subr.bf16.mxu0 0
    %992 = vmatpush1.bf16.xpose.msra.mxu0 0
    %993 = vmatprep.subr.bf16.mxu0 0
    %994 = vmatpush1.bf16.xpose.msra.mxu0 0
    %995 = vmatprep.subr.bf16.mxu0 0
    %996 = vmatpush1.bf16.xpose.msra.mxu0 0
    %997 = vmatprep.subr.bf16.mxu0 0
    %998 = vmatpush1.bf16.xpose.msra.mxu0 0
    %999 = vmatprep.subr.bf16.mxu0 0
    %1000 = vmatpush1.bf16.xpose.msra.mxu0 0
    %1001 = vmatprep.subr.bf16.mxu0 0
    %1002 = vmatpush1.bf16.xpose.msra.mxu0 0
    %1003 = vmatprep.subr.bf16.mxu0 0
    %1004 = vmatpush1.bf16.xpose.msra.mxu0 0
    %1005 = vmatprep.subr.bf16.mxu0 0
    %1006 = vmatpush1.bf16.xpose.msra.mxu0 0
    %1007 = vmatprep.subr.bf16.mxu0 0
    %1008 = vmatpush1.bf16.xpose.msra.mxu0 0
    %1009 = vmatprep.mubr.bf16.mxu0 0
    %1010 = vmatmul.mubr.bf16.gmra.mrb[0].mxu0 %v972
    %v1011 = vpop.f32.mrb[0].mxu0
    %v1012 = vadd.f32 %v491, %v1011
    %v1013 = vpop.f32.mrb[0].mxu0
    %v1014 = vpop.f32.mrb[0].mxu0
    %v1015 = vadd.f32 %v492, %v1014
    %v1016 = vpop.f32.mrb[0].mxu0
    %1017 = vdwg.mxu0
    %v1018 = vsel %vm493, %v1012, -inf
    %1019 = vmax.xlane.f32.xlu0 %v1018
    %v1020 = vpop.xlane.xlu0 %1019
    %v1021 = vsel %vm493, %v1015, -inf
    %1022 = vmax.xlane.f32.xlu0 %v1021
    %v1023 = vpop.xlane.xlu0 %1022
    %v1024 = vsub.f32 %v1012, %v1020
    %v1025 = vsub.f32 %v1015, %v1023
    %v1026 = vpack.c.bf16 %v1025, %v1024
    %v1028 = vmul.bf16 %v1026, 1069105081
    %v1029 = vpow.bf16.pop %v1028
    %v1030 = vunpack.c.l.bf16 %v1029
    %v1031 = vunpack.c.h.bf16 %v1029
    %v1032 = vsel %vm493, %v1030, 0.0
    %1033 = vadd.xlane.f32.xlu0 %v1032
    %v1034 = vpop.xlane.xlu0 %1033
    %v1035 = vsel %vm493, %v1031, 0.0
    %1036 = vadd.xlane.f32.xlu0 %v1035
    %v1037 = vpop.xlane.xlu0 %1036
    %v1038 = vrcp.pop %v1034
    %v1039 = vrcp.pop %v1037
    %v1040 = vmul.f32 %v1038, 0.35550907
    %v1041 = vmul.f32 %v1039, 0.35550907
    %v1042 = vmul.f32 %v1030, %v1040
    %v1043 = vmul.f32 %v1031, %v1041
    %v1044 = vsub.f32 %v965, %v1042
    %v1045 = vsub.f32 %v966, %v1043
    %v1046 = vpack.c.bf16 %v1045, %v1044
    %1047 = vrot.lane.b32.xlu0 %v478, 96
    %v1048 = vpop.permute.xlu0 %1047
    %v1051 = vsel %vm493, %v1046, 0
    %1053 = vmatprep.subr.bf16.mxu0 0
    %1054 = vmatpush1.bf16.msra.mxu0 %v1048
    %1055 = vmatprep.subr.bf16.mxu0 0
    %1056 = vmatpush1.bf16.msra.mxu0 0
    %1057 = vmatprep.subr.bf16.mxu0 0
    %1058 = vmatpush1.bf16.msra.mxu0 0
    %1059 = vmatprep.subr.bf16.mxu0 0
    %1060 = vmatpush1.bf16.msra.mxu0 0
    %1061 = vmatprep.subr.bf16.mxu0 0
    %1062 = vmatpush1.bf16.msra.mxu0 0
    %1063 = vmatprep.subr.bf16.mxu0 0
    %1064 = vmatpush1.bf16.msra.mxu0 0
    %1065 = vmatprep.subr.bf16.mxu0 0
    %1066 = vmatpush1.bf16.msra.mxu0 0
    %1067 = vmatprep.subr.bf16.mxu0 0
    %1068 = vmatpush1.bf16.msra.mxu0 0
    %1069 = vmatprep.subr.bf16.mxu0 0
    %1070 = vmatpush1.bf16.msra.mxu0 0
    %1071 = vmatprep.subr.bf16.mxu0 0
    %1072 = vmatpush1.bf16.msra.mxu0 0
    %1073 = vmatprep.subr.bf16.mxu0 0
    %1074 = vmatpush1.bf16.msra.mxu0 0
    %1075 = vmatprep.subr.bf16.mxu0 0
    %1076 = vmatpush1.bf16.msra.mxu0 0
    %1077 = vmatprep.subr.bf16.mxu0 0
    %1078 = vmatpush1.bf16.msra.mxu0 0
    %1079 = vmatprep.subr.bf16.mxu0 0
    %1080 = vmatpush1.bf16.msra.mxu0 0
    %1081 = vmatprep.subr.bf16.mxu0 0
    %1082 = vmatpush1.bf16.msra.mxu0 0
    %1083 = vmatprep.subr.bf16.mxu0 0
    %1084 = vmatpush1.bf16.msra.mxu0 0
    %1085 = vmatprep.mubr.bf16.mxu0 0
    %1086 = vmatmul.mubr.bf16.gmra.mrb[0].mxu0 %v1051
    %v1087 = vpop.f32.mrb[0].mxu0
    %v1088 = vadd.f32 0.0, %v1087
    %v1089 = vpop.f32.mrb[0].mxu0
    %v1090 = vpop.f32.mrb[0].mxu0
    %v1091 = vadd.f32 0.0, %v1090
    %v1092 = vpop.f32.mrb[0].mxu0
    %1093 = vdwg.mxu0
    %1094 = vrot.lane.b32.xlu0 %v474, 80
    %v1095 = vpop.permute.xlu0 %1094
    %1096 = vrot.lane.b32.xlu0 %v476, 80
    %v1097 = vpop.permute.xlu0 %1096
    %v1099 = vsel %vm493, %v1095, 0
    %v1102 = vsel %vm493, %v1097, 0
    %1104 = vmatprep.subr.bf16.mxu0 0
    %1105 = vmatpush1.bf16.xpose.msra.mxu0 %v1102
    %1106 = vmatprep.subr.bf16.mxu0 0
    %1107 = vmatpush1.bf16.xpose.msra.mxu0 0
    %1108 = vmatprep.subr.bf16.mxu0 0
    %1109 = vmatpush1.bf16.xpose.msra.mxu0 0
    %1110 = vmatprep.subr.bf16.mxu0 0
    %1111 = vmatpush1.bf16.xpose.msra.mxu0 0
    %1112 = vmatprep.subr.bf16.mxu0 0
    %1113 = vmatpush1.bf16.xpose.msra.mxu0 0
    %1114 = vmatprep.subr.bf16.mxu0 0
    %1115 = vmatpush1.bf16.xpose.msra.mxu0 0
    %1116 = vmatprep.subr.bf16.mxu0 0
    %1117 = vmatpush1.bf16.xpose.msra.mxu0 0
    %1118 = vmatprep.subr.bf16.mxu0 0
    %1119 = vmatpush1.bf16.xpose.msra.mxu0 0
    %1120 = vmatprep.subr.bf16.mxu0 0
    %1121 = vmatpush1.bf16.xpose.msra.mxu0 0
    %1122 = vmatprep.subr.bf16.mxu0 0
    %1123 = vmatpush1.bf16.xpose.msra.mxu0 0
    %1124 = vmatprep.subr.bf16.mxu0 0
    %1125 = vmatpush1.bf16.xpose.msra.mxu0 0
    %1126 = vmatprep.subr.bf16.mxu0 0
    %1127 = vmatpush1.bf16.xpose.msra.mxu0 0
    %1128 = vmatprep.subr.bf16.mxu0 0
    %1129 = vmatpush1.bf16.xpose.msra.mxu0 0
    %1130 = vmatprep.subr.bf16.mxu0 0
    %1131 = vmatpush1.bf16.xpose.msra.mxu0 0
    %1132 = vmatprep.subr.bf16.mxu0 0
    %1133 = vmatpush1.bf16.xpose.msra.mxu0 0
    %1134 = vmatprep.subr.bf16.mxu0 0
    %1135 = vmatpush1.bf16.xpose.msra.mxu0 0
    %1136 = vmatprep.mubr.bf16.mxu0 0
    %1137 = vmatmul.mubr.bf16.gmra.mrb[0].mxu0 %v1099
    %v1138 = vpop.f32.mrb[0].mxu0
    %v1139 = vadd.f32 %v491, %v1138
    %v1140 = vpop.f32.mrb[0].mxu0
    %v1141 = vpop.f32.mrb[0].mxu0
    %v1142 = vadd.f32 %v492, %v1141
    %v1143 = vpop.f32.mrb[0].mxu0
    %1144 = vdwg.mxu0
    %v1145 = vsel %vm493, %v1139, -inf
    %1146 = vmax.xlane.f32.xlu0 %v1145
    %v1147 = vpop.xlane.xlu0 %1146
    %v1148 = vsel %vm493, %v1142, -inf
    %1149 = vmax.xlane.f32.xlu0 %v1148
    %v1150 = vpop.xlane.xlu0 %1149
    %v1151 = vsub.f32 %v1139, %v1147
    %v1152 = vsub.f32 %v1142, %v1150
    %v1153 = vpack.c.bf16 %v1152, %v1151
    %v1155 = vmul.bf16 %v1153, 1069105081
    %v1156 = vpow.bf16.pop %v1155
    %v1157 = vunpack.c.l.bf16 %v1156
    %v1158 = vunpack.c.h.bf16 %v1156
    %v1159 = vsel %vm493, %v1157, 0.0
    %1160 = vadd.xlane.f32.xlu0 %v1159
    %v1161 = vpop.xlane.xlu0 %1160
    %v1162 = vsel %vm493, %v1158, 0.0
    %1163 = vadd.xlane.f32.xlu0 %v1162
    %v1164 = vpop.xlane.xlu0 %1163
    %v1165 = vrcp.pop %v1161
    %v1166 = vrcp.pop %v1164
    %v1167 = vmul.f32 %v1157, %v1165
    %v1168 = vmul.f32 %v1158, %v1166
    %1169 = vrot.lane.b32.xlu0 %v475, 80
    %v1170 = vpop.permute.xlu0 %1169
    %1171 = vrot.lane.b32.xlu0 %v477, 80
    %v1172 = vpop.permute.xlu0 %1171
    %v1174 = vsel %vm493, %v1170, 0
    %v1177 = vsel %vm493, %v1172, 0
    %1179 = vmatprep.subr.bf16.mxu0 0
    %1180 = vmatpush1.bf16.xpose.msra.mxu0 %v1177
    %1181 = vmatprep.subr.bf16.mxu0 0
    %1182 = vmatpush1.bf16.xpose.msra.mxu0 0
    %1183 = vmatprep.subr.bf16.mxu0 0
    %1184 = vmatpush1.bf16.xpose.msra.mxu0 0
    %1185 = vmatprep.subr.bf16.mxu0 0
    %1186 = vmatpush1.bf16.xpose.msra.mxu0 0
    %1187 = vmatprep.subr.bf16.mxu0 0
    %1188 = vmatpush1.bf16.xpose.msra.mxu0 0
    %1189 = vmatprep.subr.bf16.mxu0 0
    %1190 = vmatpush1.bf16.xpose.msra.mxu0 0
    %1191 = vmatprep.subr.bf16.mxu0 0
    %1192 = vmatpush1.bf16.xpose.msra.mxu0 0
    %1193 = vmatprep.subr.bf16.mxu0 0
    %1194 = vmatpush1.bf16.xpose.msra.mxu0 0
    %1195 = vmatprep.subr.bf16.mxu0 0
    %1196 = vmatpush1.bf16.xpose.msra.mxu0 0
    %1197 = vmatprep.subr.bf16.mxu0 0
    %1198 = vmatpush1.bf16.xpose.msra.mxu0 0
    %1199 = vmatprep.subr.bf16.mxu0 0
    %1200 = vmatpush1.bf16.xpose.msra.mxu0 0
    %1201 = vmatprep.subr.bf16.mxu0 0
    %1202 = vmatpush1.bf16.xpose.msra.mxu0 0
    %1203 = vmatprep.subr.bf16.mxu0 0
    %1204 = vmatpush1.bf16.xpose.msra.mxu0 0
    %1205 = vmatprep.subr.bf16.mxu0 0
    %1206 = vmatpush1.bf16.xpose.msra.mxu0 0
    %1207 = vmatprep.subr.bf16.mxu0 0
    %1208 = vmatpush1.bf16.xpose.msra.mxu0 0
    %1209 = vmatprep.subr.bf16.mxu0 0
    %1210 = vmatpush1.bf16.xpose.msra.mxu0 0
    %1211 = vmatprep.mubr.bf16.mxu0 0
    %1212 = vmatmul.mubr.bf16.gmra.mrb[0].mxu0 %v1174
    %v1213 = vpop.f32.mrb[0].mxu0
    %v1214 = vadd.f32 %v491, %v1213
    %v1215 = vpop.f32.mrb[0].mxu0
    %v1216 = vpop.f32.mrb[0].mxu0
    %v1217 = vadd.f32 %v492, %v1216
    %v1218 = vpop.f32.mrb[0].mxu0
    %1219 = vdwg.mxu0
    %v1220 = vsel %vm493, %v1214, -inf
    %1221 = vmax.xlane.f32.xlu0 %v1220
    %v1222 = vpop.xlane.xlu0 %1221
    %v1223 = vsel %vm493, %v1217, -inf
    %1224 = vmax.xlane.f32.xlu0 %v1223
    %v1225 = vpop.xlane.xlu0 %1224
    %v1226 = vsub.f32 %v1214, %v1222
    %v1227 = vsub.f32 %v1217, %v1225
    %v1228 = vpack.c.bf16 %v1227, %v1226
    %v1230 = vmul.bf16 %v1228, 1069105081
    %v1231 = vpow.bf16.pop %v1230
    %v1232 = vunpack.c.l.bf16 %v1231
    %v1233 = vunpack.c.h.bf16 %v1231
    %v1234 = vsel %vm493, %v1232, 0.0
    %1235 = vadd.xlane.f32.xlu0 %v1234
    %v1236 = vpop.xlane.xlu0 %1235
    %v1237 = vsel %vm493, %v1233, 0.0
    %1238 = vadd.xlane.f32.xlu0 %v1237
    %v1239 = vpop.xlane.xlu0 %1238
    %v1240 = vrcp.pop %v1236
    %v1241 = vrcp.pop %v1239
    %v1242 = vmul.f32 %v1240, 0.35550907
    %v1243 = vmul.f32 %v1241, 0.35550907
    %v1244 = vmul.f32 %v1232, %v1242
    %v1245 = vmul.f32 %v1233, %v1243
    %v1246 = vsub.f32 %v1167, %v1244
    %v1247 = vsub.f32 %v1168, %v1245
    %v1248 = vpack.c.bf16 %v1247, %v1246
    %1249 = vrot.lane.b32.xlu0 %v478, 80
    %v1250 = vpop.permute.xlu0 %1249
    %v1253 = vsel %vm493, %v1248, 0
    %1255 = vmatprep.subr.bf16.mxu0 0
    %1256 = vmatpush1.bf16.msra.mxu0 %v1250
    %1257 = vmatprep.subr.bf16.mxu0 0
    %1258 = vmatpush1.bf16.msra.mxu0 0
    %1259 = vmatprep.subr.bf16.mxu0 0
    %1260 = vmatpush1.bf16.msra.mxu0 0
    %1261 = vmatprep.subr.bf16.mxu0 0
    %1262 = vmatpush1.bf16.msra.mxu0 0
    %1263 = vmatprep.subr.bf16.mxu0 0
    %1264 = vmatpush1.bf16.msra.mxu0 0
    %1265 = vmatprep.subr.bf16.mxu0 0
    %1266 = vmatpush1.bf16.msra.mxu0 0
    %1267 = vmatprep.subr.bf16.mxu0 0
    %1268 = vmatpush1.bf16.msra.mxu0 0
    %1269 = vmatprep.subr.bf16.mxu0 0
    %1270 = vmatpush1.bf16.msra.mxu0 0
    %1271 = vmatprep.subr.bf16.mxu0 0
    %1272 = vmatpush1.bf16.msra.mxu0 0
    %1273 = vmatprep.subr.bf16.mxu0 0
    %1274 = vmatpush1.bf16.msra.mxu0 0
    %1275 = vmatprep.subr.bf16.mxu0 0
    %1276 = vmatpush1.bf16.msra.mxu0 0
    %1277 = vmatprep.subr.bf16.mxu0 0
    %1278 = vmatpush1.bf16.msra.mxu0 0
    %1279 = vmatprep.subr.bf16.mxu0 0
    %1280 = vmatpush1.bf16.msra.mxu0 0
    %1281 = vmatprep.subr.bf16.mxu0 0
    %1282 = vmatpush1.bf16.msra.mxu0 0
    %1283 = vmatprep.subr.bf16.mxu0 0
    %1284 = vmatpush1.bf16.msra.mxu0 0
    %1285 = vmatprep.subr.bf16.mxu0 0
    %1286 = vmatpush1.bf16.msra.mxu0 0
    %1287 = vmatprep.mubr.bf16.mxu0 0
    %1288 = vmatmul.mubr.bf16.gmra.mrb[0].mxu0 %v1253
    %v1289 = vpop.f32.mrb[0].mxu0
    %v1290 = vadd.f32 0.0, %v1289
    %v1291 = vpop.f32.mrb[0].mxu0
    %v1292 = vpop.f32.mrb[0].mxu0
    %v1293 = vadd.f32 0.0, %v1292
    %v1294 = vpop.f32.mrb[0].mxu0
    %1295 = vdwg.mxu0
    %1296 = vrot.lane.b32.xlu0 %v474, 64
    %v1297 = vpop.permute.xlu0 %1296
    %1298 = vrot.lane.b32.xlu0 %v476, 64
    %v1299 = vpop.permute.xlu0 %1298
    %v1301 = vsel %vm493, %v1297, 0
    %v1304 = vsel %vm493, %v1299, 0
    %1306 = vmatprep.subr.bf16.mxu0 0
    %1307 = vmatpush1.bf16.xpose.msra.mxu0 %v1304
    %1308 = vmatprep.subr.bf16.mxu0 0
    %1309 = vmatpush1.bf16.xpose.msra.mxu0 0
    %1310 = vmatprep.subr.bf16.mxu0 0
    %1311 = vmatpush1.bf16.xpose.msra.mxu0 0
    %1312 = vmatprep.subr.bf16.mxu0 0
    %1313 = vmatpush1.bf16.xpose.msra.mxu0 0
    %1314 = vmatprep.subr.bf16.mxu0 0
    %1315 = vmatpush1.bf16.xpose.msra.mxu0 0
    %1316 = vmatprep.subr.bf16.mxu0 0
    %1317 = vmatpush1.bf16.xpose.msra.mxu0 0
    %1318 = vmatprep.subr.bf16.mxu0 0
    %1319 = vmatpush1.bf16.xpose.msra.mxu0 0
    %1320 = vmatprep.subr.bf16.mxu0 0
    %1321 = vmatpush1.bf16.xpose.msra.mxu0 0
    %1322 = vmatprep.subr.bf16.mxu0 0
    %1323 = vmatpush1.bf16.xpose.msra.mxu0 0
    %1324 = vmatprep.subr.bf16.mxu0 0
    %1325 = vmatpush1.bf16.xpose.msra.mxu0 0
    %1326 = vmatprep.subr.bf16.mxu0 0
    %1327 = vmatpush1.bf16.xpose.msra.mxu0 0
    %1328 = vmatprep.subr.bf16.mxu0 0
    %1329 = vmatpush1.bf16.xpose.msra.mxu0 0
    %1330 = vmatprep.subr.bf16.mxu0 0
    %1331 = vmatpush1.bf16.xpose.msra.mxu0 0
    %1332 = vmatprep.subr.bf16.mxu0 0
    %1333 = vmatpush1.bf16.xpose.msra.mxu0 0
    %1334 = vmatprep.subr.bf16.mxu0 0
    %1335 = vmatpush1.bf16.xpose.msra.mxu0 0
    %1336 = vmatprep.subr.bf16.mxu0 0
    %1337 = vmatpush1.bf16.xpose.msra.mxu0 0
    %1338 = vmatprep.mubr.bf16.mxu0 0
    %1339 = vmatmul.mubr.bf16.gmra.mrb[0].mxu0 %v1301
    %v1340 = vpop.f32.mrb[0].mxu0
    %v1341 = vadd.f32 %v491, %v1340
    %v1342 = vpop.f32.mrb[0].mxu0
    %v1343 = vpop.f32.mrb[0].mxu0
    %v1344 = vadd.f32 %v492, %v1343
    %v1345 = vpop.f32.mrb[0].mxu0
    %1346 = vdwg.mxu0
    %v1347 = vsel %vm493, %v1341, -inf
    %1348 = vmax.xlane.f32.xlu0 %v1347
    %v1349 = vpop.xlane.xlu0 %1348
    %v1350 = vsel %vm493, %v1344, -inf
    %1351 = vmax.xlane.f32.xlu0 %v1350
    %v1352 = vpop.xlane.xlu0 %1351
    %v1353 = vsub.f32 %v1341, %v1349
    %v1354 = vsub.f32 %v1344, %v1352
    %v1355 = vpack.c.bf16 %v1354, %v1353
    %v1357 = vmul.bf16 %v1355, 1069105081
    %v1358 = vpow.bf16.pop %v1357
    %v1359 = vunpack.c.l.bf16 %v1358
    %v1360 = vunpack.c.h.bf16 %v1358
    %v1361 = vsel %vm493, %v1359, 0.0
    %1362 = vadd.xlane.f32.xlu0 %v1361
    %v1363 = vpop.xlane.xlu0 %1362
    %v1364 = vsel %vm493, %v1360, 0.0
    %1365 = vadd.xlane.f32.xlu0 %v1364
    %v1366 = vpop.xlane.xlu0 %1365
    %v1367 = vrcp.pop %v1363
    %v1368 = vrcp.pop %v1366
    %v1369 = vmul.f32 %v1359, %v1367
    %v1370 = vmul.f32 %v1360, %v1368
    %1371 = vrot.lane.b32.xlu0 %v475, 64
    %v1372 = vpop.permute.xlu0 %1371
    %1373 = vrot.lane.b32.xlu0 %v477, 64
    %v1374 = vpop.permute.xlu0 %1373
    %v1376 = vsel %vm493, %v1372, 0
    %v1379 = vsel %vm493, %v1374, 0
    %1381 = vmatprep.subr.bf16.mxu0 0
    %1382 = vmatpush1.bf16.xpose.msra.mxu0 %v1379
    %1383 = vmatprep.subr.bf16.mxu0 0
    %1384 = vmatpush1.bf16.xpose.msra.mxu0 0
    %1385 = vmatprep.subr.bf16.mxu0 0
    %1386 = vmatpush1.bf16.xpose.msra.mxu0 0
    %1387 = vmatprep.subr.bf16.mxu0 0
    %1388 = vmatpush1.bf16.xpose.msra.mxu0 0
    %1389 = vmatprep.subr.bf16.mxu0 0
    %1390 = vmatpush1.bf16.xpose.msra.mxu0 0
    %1391 = vmatprep.subr.bf16.mxu0 0
    %1392 = vmatpush1.bf16.xpose.msra.mxu0 0
    %1393 = vmatprep.subr.bf16.mxu0 0
    %1394 = vmatpush1.bf16.xpose.msra.mxu0 0
    %1395 = vmatprep.subr.bf16.mxu0 0
    %1396 = vmatpush1.bf16.xpose.msra.mxu0 0
    %1397 = vmatprep.subr.bf16.mxu0 0
    %1398 = vmatpush1.bf16.xpose.msra.mxu0 0
    %1399 = vmatprep.subr.bf16.mxu0 0
    %1400 = vmatpush1.bf16.xpose.msra.mxu0 0
    %1401 = vmatprep.subr.bf16.mxu0 0
    %1402 = vmatpush1.bf16.xpose.msra.mxu0 0
    %1403 = vmatprep.subr.bf16.mxu0 0
    %1404 = vmatpush1.bf16.xpose.msra.mxu0 0
    %1405 = vmatprep.subr.bf16.mxu0 0
    %1406 = vmatpush1.bf16.xpose.msra.mxu0 0
    %1407 = vmatprep.subr.bf16.mxu0 0
    %1408 = vmatpush1.bf16.xpose.msra.mxu0 0
    %1409 = vmatprep.subr.bf16.mxu0 0
    %1410 = vmatpush1.bf16.xpose.msra.mxu0 0
    %1411 = vmatprep.subr.bf16.mxu0 0
    %1412 = vmatpush1.bf16.xpose.msra.mxu0 0
    %1413 = vmatprep.mubr.bf16.mxu0 0
    %1414 = vmatmul.mubr.bf16.gmra.mrb[0].mxu0 %v1376
    %v1415 = vpop.f32.mrb[0].mxu0
    %v1416 = vadd.f32 %v491, %v1415
    %v1417 = vpop.f32.mrb[0].mxu0
    %v1418 = vpop.f32.mrb[0].mxu0
    %v1419 = vadd.f32 %v492, %v1418
    %v1420 = vpop.f32.mrb[0].mxu0
    %1421 = vdwg.mxu0
    %v1422 = vsel %vm493, %v1416, -inf
    %1423 = vmax.xlane.f32.xlu0 %v1422
    %v1424 = vpop.xlane.xlu0 %1423
    %v1425 = vsel %vm493, %v1419, -inf
    %1426 = vmax.xlane.f32.xlu0 %v1425
    %v1427 = vpop.xlane.xlu0 %1426
    %v1428 = vsub.f32 %v1416, %v1424
    %v1429 = vsub.f32 %v1419, %v1427
    %v1430 = vpack.c.bf16 %v1429, %v1428
    %v1432 = vmul.bf16 %v1430, 1069105081
    %v1433 = vpow.bf16.pop %v1432
    %v1434 = vunpack.c.l.bf16 %v1433
    %v1435 = vunpack.c.h.bf16 %v1433
    %v1436 = vsel %vm493, %v1434, 0.0
    %1437 = vadd.xlane.f32.xlu0 %v1436
    %v1438 = vpop.xlane.xlu0 %1437
    %v1439 = vsel %vm493, %v1435, 0.0
    %1440 = vadd.xlane.f32.xlu0 %v1439
    %v1441 = vpop.xlane.xlu0 %1440
    %v1442 = vrcp.pop %v1438
    %v1443 = vrcp.pop %v1441
    %v1444 = vmul.f32 %v1442, 0.35550907
    %v1445 = vmul.f32 %v1443, 0.35550907
    %v1446 = vmul.f32 %v1434, %v1444
    %v1447 = vmul.f32 %v1435, %v1445
    %v1448 = vsub.f32 %v1369, %v1446
    %v1449 = vsub.f32 %v1370, %v1447
    %v1450 = vpack.c.bf16 %v1449, %v1448
    %1451 = vrot.lane.b32.xlu0 %v478, 64
    %v1452 = vpop.permute.xlu0 %1451
    %v1455 = vsel %vm493, %v1450, 0
    %1457 = vmatprep.subr.bf16.mxu0 0
    %1458 = vmatpush1.bf16.msra.mxu0 %v1452
    %1459 = vmatprep.subr.bf16.mxu0 0
    %1460 = vmatpush1.bf16.msra.mxu0 0
    %1461 = vmatprep.subr.bf16.mxu0 0
    %1462 = vmatpush1.bf16.msra.mxu0 0
    %1463 = vmatprep.subr.bf16.mxu0 0
    %1464 = vmatpush1.bf16.msra.mxu0 0
    %1465 = vmatprep.subr.bf16.mxu0 0
    %1466 = vmatpush1.bf16.msra.mxu0 0
    %1467 = vmatprep.subr.bf16.mxu0 0
    %1468 = vmatpush1.bf16.msra.mxu0 0
    %1469 = vmatprep.subr.bf16.mxu0 0
    %1470 = vmatpush1.bf16.msra.mxu0 0
    %1471 = vmatprep.subr.bf16.mxu0 0
    %1472 = vmatpush1.bf16.msra.mxu0 0
    %1473 = vmatprep.subr.bf16.mxu0 0
    %1474 = vmatpush1.bf16.msra.mxu0 0
    %1475 = vmatprep.subr.bf16.mxu0 0
    %1476 = vmatpush1.bf16.msra.mxu0 0
    %1477 = vmatprep.subr.bf16.mxu0 0
    %1478 = vmatpush1.bf16.msra.mxu0 0
    %1479 = vmatprep.subr.bf16.mxu0 0
    %1480 = vmatpush1.bf16.msra.mxu0 0
    %1481 = vmatprep.subr.bf16.mxu0 0
    %1482 = vmatpush1.bf16.msra.mxu0 0
    %1483 = vmatprep.subr.bf16.mxu0 0
    %1484 = vmatpush1.bf16.msra.mxu0 0
    %1485 = vmatprep.subr.bf16.mxu0 0
    %1486 = vmatpush1.bf16.msra.mxu0 0
    %1487 = vmatprep.subr.bf16.mxu0 0
    %1488 = vmatpush1.bf16.msra.mxu0 0
    %1489 = vmatprep.mubr.bf16.mxu0 0
    %1490 = vmatmul.mubr.bf16.gmra.mrb[0].mxu0 %v1455
    %v1491 = vpop.f32.mrb[0].mxu0
    %v1492 = vadd.f32 0.0, %v1491
    %v1493 = vpop.f32.mrb[0].mxu0
    %v1494 = vpop.f32.mrb[0].mxu0
    %v1495 = vadd.f32 0.0, %v1494
    %v1496 = vpop.f32.mrb[0].mxu0
    %1497 = vdwg.mxu0
    %1498 = vrot.lane.b32.xlu0 %v474, 48
    %v1499 = vpop.permute.xlu0 %1498
    %1500 = vrot.lane.b32.xlu0 %v476, 48
    %v1501 = vpop.permute.xlu0 %1500
    %v1503 = vsel %vm493, %v1499, 0
    %v1506 = vsel %vm493, %v1501, 0
    %1508 = vmatprep.subr.bf16.mxu0 0
    %1509 = vmatpush1.bf16.xpose.msra.mxu0 %v1506
    %1510 = vmatprep.subr.bf16.mxu0 0
    %1511 = vmatpush1.bf16.xpose.msra.mxu0 0
    %1512 = vmatprep.subr.bf16.mxu0 0
    %1513 = vmatpush1.bf16.xpose.msra.mxu0 0
    %1514 = vmatprep.subr.bf16.mxu0 0
    %1515 = vmatpush1.bf16.xpose.msra.mxu0 0
    %1516 = vmatprep.subr.bf16.mxu0 0
    %1517 = vmatpush1.bf16.xpose.msra.mxu0 0
    %1518 = vmatprep.subr.bf16.mxu0 0
    %1519 = vmatpush1.bf16.xpose.msra.mxu0 0
    %1520 = vmatprep.subr.bf16.mxu0 0
    %1521 = vmatpush1.bf16.xpose.msra.mxu0 0
    %1522 = vmatprep.subr.bf16.mxu0 0
    %1523 = vmatpush1.bf16.xpose.msra.mxu0 0
    %1524 = vmatprep.subr.bf16.mxu0 0
    %1525 = vmatpush1.bf16.xpose.msra.mxu0 0
    %1526 = vmatprep.subr.bf16.mxu0 0
    %1527 = vmatpush1.bf16.xpose.msra.mxu0 0
    %1528 = vmatprep.subr.bf16.mxu0 0
    %1529 = vmatpush1.bf16.xpose.msra.mxu0 0
    %1530 = vmatprep.subr.bf16.mxu0 0
    %1531 = vmatpush1.bf16.xpose.msra.mxu0 0
    %1532 = vmatprep.subr.bf16.mxu0 0
    %1533 = vmatpush1.bf16.xpose.msra.mxu0 0
    %1534 = vmatprep.subr.bf16.mxu0 0
    %1535 = vmatpush1.bf16.xpose.msra.mxu0 0
    %1536 = vmatprep.subr.bf16.mxu0 0
    %1537 = vmatpush1.bf16.xpose.msra.mxu0 0
    %1538 = vmatprep.subr.bf16.mxu0 0
    %1539 = vmatpush1.bf16.xpose.msra.mxu0 0
    %1540 = vmatprep.mubr.bf16.mxu0 0
    %1541 = vmatmul.mubr.bf16.gmra.mrb[0].mxu0 %v1503
    %v1542 = vpop.f32.mrb[0].mxu0
    %v1543 = vadd.f32 %v491, %v1542
    %v1544 = vpop.f32.mrb[0].mxu0
    %v1545 = vpop.f32.mrb[0].mxu0
    %v1546 = vadd.f32 %v492, %v1545
    %v1547 = vpop.f32.mrb[0].mxu0
    %1548 = vdwg.mxu0
    %v1549 = vsel %vm493, %v1543, -inf
    %1550 = vmax.xlane.f32.xlu0 %v1549
    %v1551 = vpop.xlane.xlu0 %1550
    %v1552 = vsel %vm493, %v1546, -inf
    %1553 = vmax.xlane.f32.xlu0 %v1552
    %v1554 = vpop.xlane.xlu0 %1553
    %v1555 = vsub.f32 %v1543, %v1551
    %v1556 = vsub.f32 %v1546, %v1554
    %v1557 = vpack.c.bf16 %v1556, %v1555
    %v1559 = vmul.bf16 %v1557, 1069105081
    %v1560 = vpow.bf16.pop %v1559
    %v1561 = vunpack.c.l.bf16 %v1560
    %v1562 = vunpack.c.h.bf16 %v1560
    %v1563 = vsel %vm493, %v1561, 0.0
    %1564 = vadd.xlane.f32.xlu0 %v1563
    %v1565 = vpop.xlane.xlu0 %1564
    %v1566 = vsel %vm493, %v1562, 0.0
    %1567 = vadd.xlane.f32.xlu0 %v1566
    %v1568 = vpop.xlane.xlu0 %1567
    %v1569 = vrcp.pop %v1565
    %v1570 = vrcp.pop %v1568
    %v1571 = vmul.f32 %v1561, %v1569
    %v1572 = vmul.f32 %v1562, %v1570
    %1573 = vrot.lane.b32.xlu0 %v475, 48
    %v1574 = vpop.permute.xlu0 %1573
    %1575 = vrot.lane.b32.xlu0 %v477, 48
    %v1576 = vpop.permute.xlu0 %1575
    %v1578 = vsel %vm493, %v1574, 0
    %v1581 = vsel %vm493, %v1576, 0
    %1583 = vmatprep.subr.bf16.mxu0 0
    %1584 = vmatpush1.bf16.xpose.msra.mxu0 %v1581
    %1585 = vmatprep.subr.bf16.mxu0 0
    %1586 = vmatpush1.bf16.xpose.msra.mxu0 0
    %1587 = vmatprep.subr.bf16.mxu0 0
    %1588 = vmatpush1.bf16.xpose.msra.mxu0 0
    %1589 = vmatprep.subr.bf16.mxu0 0
    %1590 = vmatpush1.bf16.xpose.msra.mxu0 0
    %1591 = vmatprep.subr.bf16.mxu0 0
    %1592 = vmatpush1.bf16.xpose.msra.mxu0 0
    %1593 = vmatprep.subr.bf16.mxu0 0
    %1594 = vmatpush1.bf16.xpose.msra.mxu0 0
    %1595 = vmatprep.subr.bf16.mxu0 0
    %1596 = vmatpush1.bf16.xpose.msra.mxu0 0
    %1597 = vmatprep.subr.bf16.mxu0 0
    %1598 = vmatpush1.bf16.xpose.msra.mxu0 0
    %1599 = vmatprep.subr.bf16.mxu0 0
    %1600 = vmatpush1.bf16.xpose.msra.mxu0 0
    %1601 = vmatprep.subr.bf16.mxu0 0
    %1602 = vmatpush1.bf16.xpose.msra.mxu0 0
    %1603 = vmatprep.subr.bf16.mxu0 0
    %1604 = vmatpush1.bf16.xpose.msra.mxu0 0
    %1605 = vmatprep.subr.bf16.mxu0 0
    %1606 = vmatpush1.bf16.xpose.msra.mxu0 0
    %1607 = vmatprep.subr.bf16.mxu0 0
    %1608 = vmatpush1.bf16.xpose.msra.mxu0 0
    %1609 = vmatprep.subr.bf16.mxu0 0
    %1610 = vmatpush1.bf16.xpose.msra.mxu0 0
    %1611 = vmatprep.subr.bf16.mxu0 0
    %1612 = vmatpush1.bf16.xpose.msra.mxu0 0
    %1613 = vmatprep.subr.bf16.mxu0 0
    %1614 = vmatpush1.bf16.xpose.msra.mxu0 0
    %1615 = vmatprep.mubr.bf16.mxu0 0
    %1616 = vmatmul.mubr.bf16.gmra.mrb[0].mxu0 %v1578
    %v1617 = vpop.f32.mrb[0].mxu0
    %v1618 = vadd.f32 %v491, %v1617
    %v1619 = vpop.f32.mrb[0].mxu0
    %v1620 = vpop.f32.mrb[0].mxu0
    %v1621 = vadd.f32 %v492, %v1620
    %v1622 = vpop.f32.mrb[0].mxu0
    %1623 = vdwg.mxu0
    %v1624 = vsel %vm493, %v1618, -inf
    %1625 = vmax.xlane.f32.xlu0 %v1624
    %v1626 = vpop.xlane.xlu0 %1625
    %v1627 = vsel %vm493, %v1621, -inf
    %1628 = vmax.xlane.f32.xlu0 %v1627
    %v1629 = vpop.xlane.xlu0 %1628
    %v1630 = vsub.f32 %v1618, %v1626
    %v1631 = vsub.f32 %v1621, %v1629
    %v1632 = vpack.c.bf16 %v1631, %v1630
    %v1634 = vmul.bf16 %v1632, 1069105081
    %v1635 = vpow.bf16.pop %v1634
    %v1636 = vunpack.c.l.bf16 %v1635
    %v1637 = vunpack.c.h.bf16 %v1635
    %v1638 = vsel %vm493, %v1636, 0.0
    %1639 = vadd.xlane.f32.xlu0 %v1638
    %v1640 = vpop.xlane.xlu0 %1639
    %v1641 = vsel %vm493, %v1637, 0.0
    %1642 = vadd.xlane.f32.xlu0 %v1641
    %v1643 = vpop.xlane.xlu0 %1642
    %v1644 = vrcp.pop %v1640
    %v1645 = vrcp.pop %v1643
    %v1646 = vmul.f32 %v1644, 0.35550907
    %v1647 = vmul.f32 %v1645, 0.35550907
    %v1648 = vmul.f32 %v1636, %v1646
    %v1649 = vmul.f32 %v1637, %v1647
    %v1650 = vsub.f32 %v1571, %v1648
    %v1651 = vsub.f32 %v1572, %v1649
    %v1652 = vpack.c.bf16 %v1651, %v1650
    %1653 = vrot.lane.b32.xlu0 %v478, 48
    %v1654 = vpop.permute.xlu0 %1653
    %v1657 = vsel %vm493, %v1652, 0
    %1659 = vmatprep.subr.bf16.mxu0 0
    %1660 = vmatpush1.bf16.msra.mxu0 %v1654
    %1661 = vmatprep.subr.bf16.mxu0 0
    %1662 = vmatpush1.bf16.msra.mxu0 0
    %1663 = vmatprep.subr.bf16.mxu0 0
    %1664 = vmatpush1.bf16.msra.mxu0 0
    %1665 = vmatprep.subr.bf16.mxu0 0
    %1666 = vmatpush1.bf16.msra.mxu0 0
    %1667 = vmatprep.subr.bf16.mxu0 0
    %1668 = vmatpush1.bf16.msra.mxu0 0
    %1669 = vmatprep.subr.bf16.mxu0 0
    %1670 = vmatpush1.bf16.msra.mxu0 0
    %1671 = vmatprep.subr.bf16.mxu0 0
    %1672 = vmatpush1.bf16.msra.mxu0 0
    %1673 = vmatprep.subr.bf16.mxu0 0
    %1674 = vmatpush1.bf16.msra.mxu0 0
    %1675 = vmatprep.subr.bf16.mxu0 0
    %1676 = vmatpush1.bf16.msra.mxu0 0
    %1677 = vmatprep.subr.bf16.mxu0 0
    %1678 = vmatpush1.bf16.msra.mxu0 0
    %1679 = vmatprep.subr.bf16.mxu0 0
    %1680 = vmatpush1.bf16.msra.mxu0 0
    %1681 = vmatprep.subr.bf16.mxu0 0
    %1682 = vmatpush1.bf16.msra.mxu0 0
    %1683 = vmatprep.subr.bf16.mxu0 0
    %1684 = vmatpush1.bf16.msra.mxu0 0
    %1685 = vmatprep.subr.bf16.mxu0 0
    %1686 = vmatpush1.bf16.msra.mxu0 0
    %1687 = vmatprep.subr.bf16.mxu0 0
    %1688 = vmatpush1.bf16.msra.mxu0 0
    %1689 = vmatprep.subr.bf16.mxu0 0
    %1690 = vmatpush1.bf16.msra.mxu0 0
    %1691 = vmatprep.mubr.bf16.mxu0 0
    %1692 = vmatmul.mubr.bf16.gmra.mrb[0].mxu0 %v1657
    %v1693 = vpop.f32.mrb[0].mxu0
    %v1694 = vadd.f32 0.0, %v1693
    %v1695 = vpop.f32.mrb[0].mxu0
    %v1696 = vpop.f32.mrb[0].mxu0
    %v1697 = vadd.f32 0.0, %v1696
    %v1698 = vpop.f32.mrb[0].mxu0
    %1699 = vdwg.mxu0
    %1700 = vrot.lane.b32.xlu0 %v474, 32
    %v1701 = vpop.permute.xlu0 %1700
    %1702 = vrot.lane.b32.xlu0 %v476, 32
    %v1703 = vpop.permute.xlu0 %1702
    %v1705 = vsel %vm493, %v1701, 0
    %v1708 = vsel %vm493, %v1703, 0
    %1710 = vmatprep.subr.bf16.mxu0 0
    %1711 = vmatpush1.bf16.xpose.msra.mxu0 %v1708
    %1712 = vmatprep.subr.bf16.mxu0 0
    %1713 = vmatpush1.bf16.xpose.msra.mxu0 0
    %1714 = vmatprep.subr.bf16.mxu0 0
    %1715 = vmatpush1.bf16.xpose.msra.mxu0 0
    %1716 = vmatprep.subr.bf16.mxu0 0
    %1717 = vmatpush1.bf16.xpose.msra.mxu0 0
    %1718 = vmatprep.subr.bf16.mxu0 0
    %1719 = vmatpush1.bf16.xpose.msra.mxu0 0
    %1720 = vmatprep.subr.bf16.mxu0 0
    %1721 = vmatpush1.bf16.xpose.msra.mxu0 0
    %1722 = vmatprep.subr.bf16.mxu0 0
    %1723 = vmatpush1.bf16.xpose.msra.mxu0 0
    %1724 = vmatprep.subr.bf16.mxu0 0
    %1725 = vmatpush1.bf16.xpose.msra.mxu0 0
    %1726 = vmatprep.subr.bf16.mxu0 0
    %1727 = vmatpush1.bf16.xpose.msra.mxu0 0
    %1728 = vmatprep.subr.bf16.mxu0 0
    %1729 = vmatpush1.bf16.xpose.msra.mxu0 0
    %1730 = vmatprep.subr.bf16.mxu0 0
    %1731 = vmatpush1.bf16.xpose.msra.mxu0 0
    %1732 = vmatprep.subr.bf16.mxu0 0
    %1733 = vmatpush1.bf16.xpose.msra.mxu0 0
    %1734 = vmatprep.subr.bf16.mxu0 0
    %1735 = vmatpush1.bf16.xpose.msra.mxu0 0
    %1736 = vmatprep.subr.bf16.mxu0 0
    %1737 = vmatpush1.bf16.xpose.msra.mxu0 0
    %1738 = vmatprep.subr.bf16.mxu0 0
    %1739 = vmatpush1.bf16.xpose.msra.mxu0 0
    %1740 = vmatprep.subr.bf16.mxu0 0
    %1741 = vmatpush1.bf16.xpose.msra.mxu0 0
    %1742 = vmatprep.mubr.bf16.mxu0 0
    %1743 = vmatmul.mubr.bf16.gmra.mrb[0].mxu0 %v1705
    %v1744 = vpop.f32.mrb[0].mxu0
    %v1745 = vadd.f32 %v491, %v1744
    %v1746 = vpop.f32.mrb[0].mxu0
    %v1747 = vpop.f32.mrb[0].mxu0
    %v1748 = vadd.f32 %v492, %v1747
    %v1749 = vpop.f32.mrb[0].mxu0
    %1750 = vdwg.mxu0
    %v1751 = vsel %vm493, %v1745, -inf
    %1752 = vmax.xlane.f32.xlu0 %v1751
    %v1753 = vpop.xlane.xlu0 %1752
    %v1754 = vsel %vm493, %v1748, -inf
    %1755 = vmax.xlane.f32.xlu0 %v1754
    %v1756 = vpop.xlane.xlu0 %1755
    %v1757 = vsub.f32 %v1745, %v1753
    %v1758 = vsub.f32 %v1748, %v1756
    %v1759 = vpack.c.bf16 %v1758, %v1757
    %v1761 = vmul.bf16 %v1759, 1069105081
    %v1762 = vpow.bf16.pop %v1761
    %v1763 = vunpack.c.l.bf16 %v1762
    %v1764 = vunpack.c.h.bf16 %v1762
    %v1765 = vsel %vm493, %v1763, 0.0
    %1766 = vadd.xlane.f32.xlu0 %v1765
    %v1767 = vpop.xlane.xlu0 %1766
    %v1768 = vsel %vm493, %v1764, 0.0
    %1769 = vadd.xlane.f32.xlu0 %v1768
    %v1770 = vpop.xlane.xlu0 %1769
    %v1771 = vrcp.pop %v1767
    %v1772 = vrcp.pop %v1770
    %v1773 = vmul.f32 %v1763, %v1771
    %v1774 = vmul.f32 %v1764, %v1772
    %1775 = vrot.lane.b32.xlu0 %v475, 32
    %v1776 = vpop.permute.xlu0 %1775
    %1777 = vrot.lane.b32.xlu0 %v477, 32
    %v1778 = vpop.permute.xlu0 %1777
    %v1780 = vsel %vm493, %v1776, 0
    %v1783 = vsel %vm493, %v1778, 0
    %1785 = vmatprep.subr.bf16.mxu0 0
    %1786 = vmatpush1.bf16.xpose.msra.mxu0 %v1783
    %1787 = vmatprep.subr.bf16.mxu0 0
    %1788 = vmatpush1.bf16.xpose.msra.mxu0 0
    %1789 = vmatprep.subr.bf16.mxu0 0
    %1790 = vmatpush1.bf16.xpose.msra.mxu0 0
    %1791 = vmatprep.subr.bf16.mxu0 0
    %1792 = vmatpush1.bf16.xpose.msra.mxu0 0
    %1793 = vmatprep.subr.bf16.mxu0 0
    %1794 = vmatpush1.bf16.xpose.msra.mxu0 0
    %1795 = vmatprep.subr.bf16.mxu0 0
    %1796 = vmatpush1.bf16.xpose.msra.mxu0 0
    %1797 = vmatprep.subr.bf16.mxu0 0
    %1798 = vmatpush1.bf16.xpose.msra.mxu0 0
    %1799 = vmatprep.subr.bf16.mxu0 0
    %1800 = vmatpush1.bf16.xpose.msra.mxu0 0
    %1801 = vmatprep.subr.bf16.mxu0 0
    %1802 = vmatpush1.bf16.xpose.msra.mxu0 0
    %1803 = vmatprep.subr.bf16.mxu0 0
    %1804 = vmatpush1.bf16.xpose.msra.mxu0 0
    %1805 = vmatprep.subr.bf16.mxu0 0
    %1806 = vmatpush1.bf16.xpose.msra.mxu0 0
    %1807 = vmatprep.subr.bf16.mxu0 0
    %1808 = vmatpush1.bf16.xpose.msra.mxu0 0
    %1809 = vmatprep.subr.bf16.mxu0 0
    %1810 = vmatpush1.bf16.xpose.msra.mxu0 0
    %1811 = vmatprep.subr.bf16.mxu0 0
    %1812 = vmatpush1.bf16.xpose.msra.mxu0 0
    %1813 = vmatprep.subr.bf16.mxu0 0
    %1814 = vmatpush1.bf16.xpose.msra.mxu0 0
    %1815 = vmatprep.subr.bf16.mxu0 0
    %1816 = vmatpush1.bf16.xpose.msra.mxu0 0
    %1817 = vmatprep.mubr.bf16.mxu0 0
    %1818 = vmatmul.mubr.bf16.gmra.mrb[0].mxu0 %v1780
    %v1819 = vpop.f32.mrb[0].mxu0
    %v1820 = vadd.f32 %v491, %v1819
    %v1821 = vpop.f32.mrb[0].mxu0
    %v1822 = vpop.f32.mrb[0].mxu0
    %v1823 = vadd.f32 %v492, %v1822
    %v1824 = vpop.f32.mrb[0].mxu0
    %1825 = vdwg.mxu0
    %v1826 = vsel %vm493, %v1820, -inf
    %1827 = vmax.xlane.f32.xlu0 %v1826
    %v1828 = vpop.xlane.xlu0 %1827
    %v1829 = vsel %vm493, %v1823, -inf
    %1830 = vmax.xlane.f32.xlu0 %v1829
    %v1831 = vpop.xlane.xlu0 %1830
    %v1832 = vsub.f32 %v1820, %v1828
    %v1833 = vsub.f32 %v1823, %v1831
    %v1834 = vpack.c.bf16 %v1833, %v1832
    %v1836 = vmul.bf16 %v1834, 1069105081
    %v1837 = vpow.bf16.pop %v1836
    %v1838 = vunpack.c.l.bf16 %v1837
    %v1839 = vunpack.c.h.bf16 %v1837
    %v1840 = vsel %vm493, %v1838, 0.0
    %1841 = vadd.xlane.f32.xlu0 %v1840
    %v1842 = vpop.xlane.xlu0 %1841
    %v1843 = vsel %vm493, %v1839, 0.0
    %1844 = vadd.xlane.f32.xlu0 %v1843
    %v1845 = vpop.xlane.xlu0 %1844
    %v1846 = vrcp.pop %v1842
    %v1847 = vrcp.pop %v1845
    %v1848 = vmul.f32 %v1846, 0.35550907
    %v1849 = vmul.f32 %v1847, 0.35550907
    %v1850 = vmul.f32 %v1838, %v1848
    %v1851 = vmul.f32 %v1839, %v1849
    %v1852 = vsub.f32 %v1773, %v1850
    %v1853 = vsub.f32 %v1774, %v1851
    %v1854 = vpack.c.bf16 %v1853, %v1852
    %1855 = vrot.lane.b32.xlu0 %v478, 32
    %v1856 = vpop.permute.xlu0 %1855
    %v1859 = vsel %vm493, %v1854, 0
    %1861 = vmatprep.subr.bf16.mxu0 0
    %1862 = vmatpush1.bf16.msra.mxu0 %v1856
    %1863 = vmatprep.subr.bf16.mxu0 0
    %1864 = vmatpush1.bf16.msra.mxu0 0
    %1865 = vmatprep.subr.bf16.mxu0 0
    %1866 = vmatpush1.bf16.msra.mxu0 0
    %1867 = vmatprep.subr.bf16.mxu0 0
    %1868 = vmatpush1.bf16.msra.mxu0 0
    %1869 = vmatprep.subr.bf16.mxu0 0
    %1870 = vmatpush1.bf16.msra.mxu0 0
    %1871 = vmatprep.subr.bf16.mxu0 0
    %1872 = vmatpush1.bf16.msra.mxu0 0
    %1873 = vmatprep.subr.bf16.mxu0 0
    %1874 = vmatpush1.bf16.msra.mxu0 0
    %1875 = vmatprep.subr.bf16.mxu0 0
    %1876 = vmatpush1.bf16.msra.mxu0 0
    %1877 = vmatprep.subr.bf16.mxu0 0
    %1878 = vmatpush1.bf16.msra.mxu0 0
    %1879 = vmatprep.subr.bf16.mxu0 0
    %1880 = vmatpush1.bf16.msra.mxu0 0
    %1881 = vmatprep.subr.bf16.mxu0 0
    %1882 = vmatpush1.bf16.msra.mxu0 0
    %1883 = vmatprep.subr.bf16.mxu0 0
    %1884 = vmatpush1.bf16.msra.mxu0 0
    %1885 = vmatprep.subr.bf16.mxu0 0
    %1886 = vmatpush1.bf16.msra.mxu0 0
    %1887 = vmatprep.subr.bf16.mxu0 0
    %1888 = vmatpush1.bf16.msra.mxu0 0
    %1889 = vmatprep.subr.bf16.mxu0 0
    %1890 = vmatpush1.bf16.msra.mxu0 0
    %1891 = vmatprep.subr.bf16.mxu0 0
    %1892 = vmatpush1.bf16.msra.mxu0 0
    %1893 = vmatprep.mubr.bf16.mxu0 0
    %1894 = vmatmul.mubr.bf16.gmra.mrb[0].mxu0 %v1859
    %v1895 = vpop.f32.mrb[0].mxu0
    %v1896 = vadd.f32 0.0, %v1895
    %v1897 = vpop.f32.mrb[0].mxu0
    %v1898 = vpop.f32.mrb[0].mxu0
    %v1899 = vadd.f32 0.0, %v1898
    %v1900 = vpop.f32.mrb[0].mxu0
    %1901 = vdwg.mxu0
    %1902 = vrot.lane.b32.xlu0 %v474, 16
    %v1903 = vpop.permute.xlu0 %1902
    %1904 = vrot.lane.b32.xlu0 %v476, 16
    %v1905 = vpop.permute.xlu0 %1904
    %v1907 = vsel %vm493, %v1903, 0
    %v1910 = vsel %vm493, %v1905, 0
    %1912 = vmatprep.subr.bf16.mxu0 0
    %1913 = vmatpush1.bf16.xpose.msra.mxu0 %v1910
    %1914 = vmatprep.subr.bf16.mxu0 0
    %1915 = vmatpush1.bf16.xpose.msra.mxu0 0
    %1916 = vmatprep.subr.bf16.mxu0 0
    %1917 = vmatpush1.bf16.xpose.msra.mxu0 0
    %1918 = vmatprep.subr.bf16.mxu0 0
    %1919 = vmatpush1.bf16.xpose.msra.mxu0 0
    %1920 = vmatprep.subr.bf16.mxu0 0
    %1921 = vmatpush1.bf16.xpose.msra.mxu0 0
    %1922 = vmatprep.subr.bf16.mxu0 0
    %1923 = vmatpush1.bf16.xpose.msra.mxu0 0
    %1924 = vmatprep.subr.bf16.mxu0 0
    %1925 = vmatpush1.bf16.xpose.msra.mxu0 0
    %1926 = vmatprep.subr.bf16.mxu0 0
    %1927 = vmatpush1.bf16.xpose.msra.mxu0 0
    %1928 = vmatprep.subr.bf16.mxu0 0
    %1929 = vmatpush1.bf16.xpose.msra.mxu0 0
    %1930 = vmatprep.subr.bf16.mxu0 0
    %1931 = vmatpush1.bf16.xpose.msra.mxu0 0
    %1932 = vmatprep.subr.bf16.mxu0 0
    %1933 = vmatpush1.bf16.xpose.msra.mxu0 0
    %1934 = vmatprep.subr.bf16.mxu0 0
    %1935 = vmatpush1.bf16.xpose.msra.mxu0 0
    %1936 = vmatprep.subr.bf16.mxu0 0
    %1937 = vmatpush1.bf16.xpose.msra.mxu0 0
    %1938 = vmatprep.subr.bf16.mxu0 0
    %1939 = vmatpush1.bf16.xpose.msra.mxu0 0
    %1940 = vmatprep.subr.bf16.mxu0 0
    %1941 = vmatpush1.bf16.xpose.msra.mxu0 0
    %1942 = vmatprep.subr.bf16.mxu0 0
    %1943 = vmatpush1.bf16.xpose.msra.mxu0 0
    %1944 = vmatprep.mubr.bf16.mxu0 0
    %1945 = vmatmul.mubr.bf16.gmra.mrb[0].mxu0 %v1907
    %v1946 = vpop.f32.mrb[0].mxu0
    %v1947 = vadd.f32 %v491, %v1946
    %v1948 = vpop.f32.mrb[0].mxu0
    %v1949 = vpop.f32.mrb[0].mxu0
    %v1950 = vadd.f32 %v492, %v1949
    %v1951 = vpop.f32.mrb[0].mxu0
    %1952 = vdwg.mxu0
    %v1953 = vsel %vm493, %v1947, -inf
    %1954 = vmax.xlane.f32.xlu0 %v1953
    %v1955 = vpop.xlane.xlu0 %1954
    %v1956 = vsel %vm493, %v1950, -inf
    %1957 = vmax.xlane.f32.xlu0 %v1956
    %v1958 = vpop.xlane.xlu0 %1957
    %v1959 = vsub.f32 %v1947, %v1955
    %v1960 = vsub.f32 %v1950, %v1958
    %v1961 = vpack.c.bf16 %v1960, %v1959
    %v1963 = vmul.bf16 %v1961, 1069105081
    %v1964 = vpow.bf16.pop %v1963
    %v1965 = vunpack.c.l.bf16 %v1964
    %v1966 = vunpack.c.h.bf16 %v1964
    %v1967 = vsel %vm493, %v1965, 0.0
    %1968 = vadd.xlane.f32.xlu0 %v1967
    %v1969 = vpop.xlane.xlu0 %1968
    %v1970 = vsel %vm493, %v1966, 0.0
    %1971 = vadd.xlane.f32.xlu0 %v1970
    %v1972 = vpop.xlane.xlu0 %1971
    %v1973 = vrcp.pop %v1969
    %v1974 = vrcp.pop %v1972
    %v1975 = vmul.f32 %v1965, %v1973
    %v1976 = vmul.f32 %v1966, %v1974
    %1977 = vrot.lane.b32.xlu0 %v475, 16
    %v1978 = vpop.permute.xlu0 %1977
    %1979 = vrot.lane.b32.xlu0 %v477, 16
    %v1980 = vpop.permute.xlu0 %1979
    %v1982 = vsel %vm493, %v1978, 0
    %v1985 = vsel %vm493, %v1980, 0
    %1987 = vmatprep.subr.bf16.mxu0 0
    %1988 = vmatpush1.bf16.xpose.msra.mxu0 %v1985
    %1989 = vmatprep.subr.bf16.mxu0 0
    %1990 = vmatpush1.bf16.xpose.msra.mxu0 0
    %1991 = vmatprep.subr.bf16.mxu0 0
    %1992 = vmatpush1.bf16.xpose.msra.mxu0 0
    %1993 = vmatprep.subr.bf16.mxu0 0
    %1994 = vmatpush1.bf16.xpose.msra.mxu0 0
    %1995 = vmatprep.subr.bf16.mxu0 0
    %1996 = vmatpush1.bf16.xpose.msra.mxu0 0
    %1997 = vmatprep.subr.bf16.mxu0 0
    %1998 = vmatpush1.bf16.xpose.msra.mxu0 0
    %1999 = vmatprep.subr.bf16.mxu0 0
    %2000 = vmatpush1.bf16.xpose.msra.mxu0 0
    %2001 = vmatprep.subr.bf16.mxu0 0
    %2002 = vmatpush1.bf16.xpose.msra.mxu0 0
    %2003 = vmatprep.subr.bf16.mxu0 0
    %2004 = vmatpush1.bf16.xpose.msra.mxu0 0
    %2005 = vmatprep.subr.bf16.mxu0 0
    %2006 = vmatpush1.bf16.xpose.msra.mxu0 0
    %2007 = vmatprep.subr.bf16.mxu0 0
    %2008 = vmatpush1.bf16.xpose.msra.mxu0 0
    %2009 = vmatprep.subr.bf16.mxu0 0
    %2010 = vmatpush1.bf16.xpose.msra.mxu0 0
    %2011 = vmatprep.subr.bf16.mxu0 0
    %2012 = vmatpush1.bf16.xpose.msra.mxu0 0
    %2013 = vmatprep.subr.bf16.mxu0 0
    %2014 = vmatpush1.bf16.xpose.msra.mxu0 0
    %2015 = vmatprep.subr.bf16.mxu0 0
    %2016 = vmatpush1.bf16.xpose.msra.mxu0 0
    %2017 = vmatprep.subr.bf16.mxu0 0
    %2018 = vmatpush1.bf16.xpose.msra.mxu0 0
    %2019 = vmatprep.mubr.bf16.mxu0 0
    %2020 = vmatmul.mubr.bf16.gmra.mrb[0].mxu0 %v1982
    %v2021 = vpop.f32.mrb[0].mxu0
    %v2022 = vadd.f32 %v491, %v2021
    %v2023 = vpop.f32.mrb[0].mxu0
    %v2024 = vpop.f32.mrb[0].mxu0
    %v2025 = vadd.f32 %v492, %v2024
    %v2026 = vpop.f32.mrb[0].mxu0
    %2027 = vdwg.mxu0
    %v2028 = vsel %vm493, %v2022, -inf
    %2029 = vmax.xlane.f32.xlu0 %v2028
    %v2030 = vpop.xlane.xlu0 %2029
    %v2031 = vsel %vm493, %v2025, -inf
    %2032 = vmax.xlane.f32.xlu0 %v2031
    %v2033 = vpop.xlane.xlu0 %2032
    %v2034 = vsub.f32 %v2022, %v2030
    %v2035 = vsub.f32 %v2025, %v2033
    %v2036 = vpack.c.bf16 %v2035, %v2034
    %v2038 = vmul.bf16 %v2036, 1069105081
    %v2039 = vpow.bf16.pop %v2038
    %v2040 = vunpack.c.l.bf16 %v2039
    %v2041 = vunpack.c.h.bf16 %v2039
    %v2042 = vsel %vm493, %v2040, 0.0
    %2043 = vadd.xlane.f32.xlu0 %v2042
    %v2044 = vpop.xlane.xlu0 %2043
    %v2045 = vsel %vm493, %v2041, 0.0
    %2046 = vadd.xlane.f32.xlu0 %v2045
    %v2047 = vpop.xlane.xlu0 %2046
    %v2048 = vrcp.pop %v2044
    %v2049 = vrcp.pop %v2047
    %v2050 = vmul.f32 %v2048, 0.35550907
    %v2051 = vmul.f32 %v2049, 0.35550907
    %v2052 = vmul.f32 %v2040, %v2050
    %v2053 = vmul.f32 %v2041, %v2051
    %v2054 = vsub.f32 %v1975, %v2052
    %v2055 = vsub.f32 %v1976, %v2053
    %v2056 = vpack.c.bf16 %v2055, %v2054
    %2057 = vrot.lane.b32.xlu0 %v478, 16
    %v2058 = vpop.permute.xlu0 %2057
    %v2061 = vsel %vm493, %v2056, 0
    %2063 = vmatprep.subr.bf16.mxu0 0
    %2064 = vmatpush1.bf16.msra.mxu0 %v2058
    %2065 = vmatprep.subr.bf16.mxu0 0
    %2066 = vmatpush1.bf16.msra.mxu0 0
    %2067 = vmatprep.subr.bf16.mxu0 0
    %2068 = vmatpush1.bf16.msra.mxu0 0
    %2069 = vmatprep.subr.bf16.mxu0 0
    %2070 = vmatpush1.bf16.msra.mxu0 0
    %2071 = vmatprep.subr.bf16.mxu0 0
    %2072 = vmatpush1.bf16.msra.mxu0 0
    %2073 = vmatprep.subr.bf16.mxu0 0
    %2074 = vmatpush1.bf16.msra.mxu0 0
    %2075 = vmatprep.subr.bf16.mxu0 0
    %2076 = vmatpush1.bf16.msra.mxu0 0
    %2077 = vmatprep.subr.bf16.mxu0 0
    %2078 = vmatpush1.bf16.msra.mxu0 0
    %2079 = vmatprep.subr.bf16.mxu0 0
    %2080 = vmatpush1.bf16.msra.mxu0 0
    %2081 = vmatprep.subr.bf16.mxu0 0
    %2082 = vmatpush1.bf16.msra.mxu0 0
    %2083 = vmatprep.subr.bf16.mxu0 0
    %2084 = vmatpush1.bf16.msra.mxu0 0
    %2085 = vmatprep.subr.bf16.mxu0 0
    %2086 = vmatpush1.bf16.msra.mxu0 0
    %2087 = vmatprep.subr.bf16.mxu0 0
    %2088 = vmatpush1.bf16.msra.mxu0 0
    %2089 = vmatprep.subr.bf16.mxu0 0
    %2090 = vmatpush1.bf16.msra.mxu0 0
    %2091 = vmatprep.subr.bf16.mxu0 0
    %2092 = vmatpush1.bf16.msra.mxu0 0
    %2093 = vmatprep.subr.bf16.mxu0 0
    %2094 = vmatpush1.bf16.msra.mxu0 0
    %2095 = vmatprep.mubr.bf16.mxu0 0
    %2096 = vmatmul.mubr.bf16.gmra.mrb[0].mxu0 %v2061
    %v2097 = vpop.f32.mrb[0].mxu0
    %v2098 = vadd.f32 0.0, %v2097
    %v2099 = vpop.f32.mrb[0].mxu0
    %v2100 = vpop.f32.mrb[0].mxu0
    %v2101 = vadd.f32 0.0, %v2100
    %v2102 = vpop.f32.mrb[0].mxu0
    %2103 = vdwg.mxu0
    %2106 = vrot.lane.b32.xlu0 %v886, 16
    %v2107 = vpop.permute.xlu0 %2106
    %2108 = vrot.lane.b32.xlu0 %v889, 16
    %v2109 = vpop.permute.xlu0 %2108
    %2114 = vrot.lane.b32.xlu0 %v1088, 32
    %v2115 = vpop.permute.xlu0 %2114
    %2116 = vrot.lane.b32.xlu0 %v1091, 32
    %v2117 = vpop.permute.xlu0 %2116
    %2122 = vrot.lane.b32.xlu0 %v1290, 48
    %v2123 = vpop.permute.xlu0 %2122
    %2124 = vrot.lane.b32.xlu0 %v1293, 48
    %v2125 = vpop.permute.xlu0 %2124
    %2130 = vrot.lane.b32.xlu0 %v1492, 64
    %v2131 = vpop.permute.xlu0 %2130
    %2132 = vrot.lane.b32.xlu0 %v1495, 64
    %v2133 = vpop.permute.xlu0 %2132
    %2138 = vrot.lane.b32.xlu0 %v1694, 80
    %v2139 = vpop.permute.xlu0 %2138
    %2140 = vrot.lane.b32.xlu0 %v1697, 80
    %v2141 = vpop.permute.xlu0 %2140
    %2146 = vrot.lane.b32.xlu0 %v1896, 96
    %v2147 = vpop.permute.xlu0 %2146
    %2148 = vrot.lane.b32.xlu0 %v1899, 96
    %v2149 = vpop.permute.xlu0 %2148
    %2154 = vrot.lane.b32.xlu0 %v2098, 112
    %v2155 = vpop.permute.xlu0 %2154
    %2156 = vrot.lane.b32.xlu0 %v2101, 112
    %v2157 = vpop.permute.xlu0 %2156
    %v2160 = vsel %vm493, %v679, %v2107
    %v2161 = vsel %vm493, %v682, %v2109
    %vm2162 = vcmask 261120
    %v2163 = vsel %vm2162, %v2160, %v2115
    %v2164 = vsel %vm2162, %v2161, %v2117
    %vm2165 = vcmask 392192
    %v2166 = vsel %vm2165, %v2163, %v2123
    %v2167 = vsel %vm2165, %v2164, %v2125
    %vm2168 = vcmask 523264
    %v2169 = vsel %vm2168, %v2166, %v2131
    %v2170 = vsel %vm2168, %v2167, %v2133
    %vm2171 = vcmask 654336
    %v2172 = vsel %vm2171, %v2169, %v2139
    %v2173 = vsel %vm2171, %v2170, %v2141
    %vm2174 = vcmask 785408
    %v2175 = vsel %vm2174, %v2172, %v2147
    %v2176 = vsel %vm2174, %v2173, %v2149
    %vm2177 = vcmask 916480
    %v2178 = vsel %vm2177, %v2175, %v2155
    %v2179 = vsel %vm2177, %v2176, %v2157
    %v2181 = vsel %vm493, %v479, 0
    %v2184 = vsel %vm493, %v481, 0
    %2186 = vmatprep.subr.bf16.mxu0 0
    %2187 = vmatpush1.bf16.xpose.msra.mxu0 %v2184
    %2188 = vmatprep.subr.bf16.mxu0 0
    %2189 = vmatpush1.bf16.xpose.msra.mxu0 0
    %2190 = vmatprep.subr.bf16.mxu0 0
    %2191 = vmatpush1.bf16.xpose.msra.mxu0 0
    %2192 = vmatprep.subr.bf16.mxu0 0
    %2193 = vmatpush1.bf16.xpose.msra.mxu0 0
    %2194 = vmatprep.subr.bf16.mxu0 0
    %2195 = vmatpush1.bf16.xpose.msra.mxu0 0
    %2196 = vmatprep.subr.bf16.mxu0 0
    %2197 = vmatpush1.bf16.xpose.msra.mxu0 0
    %2198 = vmatprep.subr.bf16.mxu0 0
    %2199 = vmatpush1.bf16.xpose.msra.mxu0 0
    %2200 = vmatprep.subr.bf16.mxu0 0
    %2201 = vmatpush1.bf16.xpose.msra.mxu0 0
    %2202 = vmatprep.subr.bf16.mxu0 0
    %2203 = vmatpush1.bf16.xpose.msra.mxu0 0
    %2204 = vmatprep.subr.bf16.mxu0 0
    %2205 = vmatpush1.bf16.xpose.msra.mxu0 0
    %2206 = vmatprep.subr.bf16.mxu0 0
    %2207 = vmatpush1.bf16.xpose.msra.mxu0 0
    %2208 = vmatprep.subr.bf16.mxu0 0
    %2209 = vmatpush1.bf16.xpose.msra.mxu0 0
    %2210 = vmatprep.subr.bf16.mxu0 0
    %2211 = vmatpush1.bf16.xpose.msra.mxu0 0
    %2212 = vmatprep.subr.bf16.mxu0 0
    %2213 = vmatpush1.bf16.xpose.msra.mxu0 0
    %2214 = vmatprep.subr.bf16.mxu0 0
    %2215 = vmatpush1.bf16.xpose.msra.mxu0 0
    %2216 = vmatprep.subr.bf16.mxu0 0
    %2217 = vmatpush1.bf16.xpose.msra.mxu0 0
    %2218 = vmatprep.mubr.bf16.mxu0 0
    %2219 = vmatmul.mubr.bf16.gmra.mrb[0].mxu0 %v2181
    %v2220 = vpop.f32.mrb[0].mxu0
    %v2221 = vadd.f32 %v491, %v2220
    %v2222 = vpop.f32.mrb[0].mxu0
    %v2223 = vpop.f32.mrb[0].mxu0
    %v2224 = vadd.f32 %v492, %v2223
    %v2225 = vpop.f32.mrb[0].mxu0
    %2226 = vdwg.mxu0
    %v2227 = vsel %vm493, %v2221, -inf
    %2228 = vmax.xlane.f32.xlu0 %v2227
    %v2229 = vpop.xlane.xlu0 %2228
    %v2230 = vsel %vm493, %v2224, -inf
    %2231 = vmax.xlane.f32.xlu0 %v2230
    %v2232 = vpop.xlane.xlu0 %2231
    %v2233 = vsub.f32 %v2221, %v2229
    %v2234 = vsub.f32 %v2224, %v2232
    %v2235 = vpack.c.bf16 %v2234, %v2233
    %v2237 = vmul.bf16 %v2235, 1069105081
    %v2238 = vpow.bf16.pop %v2237
    %v2239 = vunpack.c.l.bf16 %v2238
    %v2240 = vunpack.c.h.bf16 %v2238
    %v2241 = vsel %vm493, %v2239, 0.0
    %2242 = vadd.xlane.f32.xlu0 %v2241
    %v2243 = vpop.xlane.xlu0 %2242
    %v2244 = vsel %vm493, %v2240, 0.0
    %2245 = vadd.xlane.f32.xlu0 %v2244
    %v2246 = vpop.xlane.xlu0 %2245
    %v2247 = vrcp.pop %v2243
    %v2248 = vrcp.pop %v2246
    %v2249 = vmul.f32 %v2239, %v2247
    %v2250 = vmul.f32 %v2240, %v2248
    %v2252 = vsel %vm493, %v480, 0
    %v2255 = vsel %vm493, %v482, 0
    %2257 = vmatprep.subr.bf16.mxu0 0
    %2258 = vmatpush1.bf16.xpose.msra.mxu0 %v2255
    %2259 = vmatprep.subr.bf16.mxu0 0
    %2260 = vmatpush1.bf16.xpose.msra.mxu0 0
    %2261 = vmatprep.subr.bf16.mxu0 0
    %2262 = vmatpush1.bf16.xpose.msra.mxu0 0
    %2263 = vmatprep.subr.bf16.mxu0 0
    %2264 = vmatpush1.bf16.xpose.msra.mxu0 0
    %2265 = vmatprep.subr.bf16.mxu0 0
    %2266 = vmatpush1.bf16.xpose.msra.mxu0 0
    %2267 = vmatprep.subr.bf16.mxu0 0
    %2268 = vmatpush1.bf16.xpose.msra.mxu0 0
    %2269 = vmatprep.subr.bf16.mxu0 0
    %2270 = vmatpush1.bf16.xpose.msra.mxu0 0
    %2271 = vmatprep.subr.bf16.mxu0 0
    %2272 = vmatpush1.bf16.xpose.msra.mxu0 0
    %2273 = vmatprep.subr.bf16.mxu0 0
    %2274 = vmatpush1.bf16.xpose.msra.mxu0 0
    %2275 = vmatprep.subr.bf16.mxu0 0
    %2276 = vmatpush1.bf16.xpose.msra.mxu0 0
    %2277 = vmatprep.subr.bf16.mxu0 0
    %2278 = vmatpush1.bf16.xpose.msra.mxu0 0
    %2279 = vmatprep.subr.bf16.mxu0 0
    %2280 = vmatpush1.bf16.xpose.msra.mxu0 0
    %2281 = vmatprep.subr.bf16.mxu0 0
    %2282 = vmatpush1.bf16.xpose.msra.mxu0 0
    %2283 = vmatprep.subr.bf16.mxu0 0
    %2284 = vmatpush1.bf16.xpose.msra.mxu0 0
    %2285 = vmatprep.subr.bf16.mxu0 0
    %2286 = vmatpush1.bf16.xpose.msra.mxu0 0
    %2287 = vmatprep.subr.bf16.mxu0 0
    %2288 = vmatpush1.bf16.xpose.msra.mxu0 0
    %2289 = vmatprep.mubr.bf16.mxu0 0
    %2290 = vmatmul.mubr.bf16.gmra.mrb[0].mxu0 %v2252
    %v2291 = vpop.f32.mrb[0].mxu0
    %v2292 = vadd.f32 %v491, %v2291
    %v2293 = vpop.f32.mrb[0].mxu0
    %v2294 = vpop.f32.mrb[0].mxu0
    %v2295 = vadd.f32 %v492, %v2294
    %v2296 = vpop.f32.mrb[0].mxu0
    %2297 = vdwg.mxu0
    %v2298 = vsel %vm493, %v2292, -inf
    %2299 = vmax.xlane.f32.xlu0 %v2298
    %v2300 = vpop.xlane.xlu0 %2299
    %v2301 = vsel %vm493, %v2295, -inf
    %2302 = vmax.xlane.f32.xlu0 %v2301
    %v2303 = vpop.xlane.xlu0 %2302
    %v2304 = vsub.f32 %v2292, %v2300
    %v2305 = vsub.f32 %v2295, %v2303
    %v2306 = vpack.c.bf16 %v2305, %v2304
    %v2308 = vmul.bf16 %v2306, 1069105081
    %v2309 = vpow.bf16.pop %v2308
    %v2310 = vunpack.c.l.bf16 %v2309
    %v2311 = vunpack.c.h.bf16 %v2309
    %v2312 = vsel %vm493, %v2310, 0.0
    %2313 = vadd.xlane.f32.xlu0 %v2312
    %v2314 = vpop.xlane.xlu0 %2313
    %v2315 = vsel %vm493, %v2311, 0.0
    %2316 = vadd.xlane.f32.xlu0 %v2315
    %v2317 = vpop.xlane.xlu0 %2316
    %v2318 = vrcp.pop %v2314
    %v2319 = vrcp.pop %v2317
    %v2320 = vmul.f32 %v2318, 0.35550907
    %v2321 = vmul.f32 %v2319, 0.35550907
    %v2322 = vmul.f32 %v2310, %v2320
    %v2323 = vmul.f32 %v2311, %v2321
    %v2324 = vsub.f32 %v2249, %v2322
    %v2325 = vsub.f32 %v2250, %v2323
    %v2326 = vpack.c.bf16 %v2325, %v2324
    %v2328 = vsel %vm493, %v2326, 0
    %2330 = vmatprep.subr.bf16.mxu0 0
    %2331 = vmatpush1.bf16.msra.mxu0 %v483
    %2332 = vmatprep.subr.bf16.mxu0 0
    %2333 = vmatpush1.bf16.msra.mxu0 0
    %2334 = vmatprep.subr.bf16.mxu0 0
    %2335 = vmatpush1.bf16.msra.mxu0 0
    %2336 = vmatprep.subr.bf16.mxu0 0
    %2337 = vmatpush1.bf16.msra.mxu0 0
    %2338 = vmatprep.subr.bf16.mxu0 0
    %2339 = vmatpush1.bf16.msra.mxu0 0
    %2340 = vmatprep.subr.bf16.mxu0 0
    %2341 = vmatpush1.bf16.msra.mxu0 0
    %2342 = vmatprep.subr.bf16.mxu0 0
    %2343 = vmatpush1.bf16.msra.mxu0 0
    %2344 = vmatprep.subr.bf16.mxu0 0
    %2345 = vmatpush1.bf16.msra.mxu0 0
    %2346 = vmatprep.subr.bf16.mxu0 0
    %2347 = vmatpush1.bf16.msra.mxu0 0
    %2348 = vmatprep.subr.bf16.mxu0 0
    %2349 = vmatpush1.bf16.msra.mxu0 0
    %2350 = vmatprep.subr.bf16.mxu0 0
    %2351 = vmatpush1.bf16.msra.mxu0 0
    %2352 = vmatprep.subr.bf16.mxu0 0
    %2353 = vmatpush1.bf16.msra.mxu0 0
    %2354 = vmatprep.subr.bf16.mxu0 0
    %2355 = vmatpush1.bf16.msra.mxu0 0
    %2356 = vmatprep.subr.bf16.mxu0 0
    %2357 = vmatpush1.bf16.msra.mxu0 0
    %2358 = vmatprep.subr.bf16.mxu0 0
    %2359 = vmatpush1.bf16.msra.mxu0 0
    %2360 = vmatprep.subr.bf16.mxu0 0
    %2361 = vmatpush1.bf16.msra.mxu0 0
    %2362 = vmatprep.mubr.bf16.mxu0 0
    %2363 = vmatmul.mubr.bf16.gmra.mrb[0].mxu0 %v2328
    %v2364 = vpop.f32.mrb[0].mxu0
    %v2365 = vadd.f32 0.0, %v2364
    %v2366 = vpop.f32.mrb[0].mxu0
    %v2367 = vpop.f32.mrb[0].mxu0
    %v2368 = vadd.f32 0.0, %v2367
    %v2369 = vpop.f32.mrb[0].mxu0
    %2370 = vdwg.mxu0
    %2372 = vrot.lane.b32.xlu0 %v479, 112
    %v2373 = vpop.permute.xlu0 %2372
    %2375 = vrot.lane.b32.xlu0 %v481, 112
    %v2376 = vpop.permute.xlu0 %2375
    %v2378 = vsel %vm493, %v2373, 0
    %v2381 = vsel %vm493, %v2376, 0
    %2383 = vmatprep.subr.bf16.mxu0 0
    %2384 = vmatpush1.bf16.xpose.msra.mxu0 %v2381
    %2385 = vmatprep.subr.bf16.mxu0 0
    %2386 = vmatpush1.bf16.xpose.msra.mxu0 0
    %2387 = vmatprep.subr.bf16.mxu0 0
    %2388 = vmatpush1.bf16.xpose.msra.mxu0 0
    %2389 = vmatprep.subr.bf16.mxu0 0
    %2390 = vmatpush1.bf16.xpose.msra.mxu0 0
    %2391 = vmatprep.subr.bf16.mxu0 0
    %2392 = vmatpush1.bf16.xpose.msra.mxu0 0
    %2393 = vmatprep.subr.bf16.mxu0 0
    %2394 = vmatpush1.bf16.xpose.msra.mxu0 0
    %2395 = vmatprep.subr.bf16.mxu0 0
    %2396 = vmatpush1.bf16.xpose.msra.mxu0 0
    %2397 = vmatprep.subr.bf16.mxu0 0
    %2398 = vmatpush1.bf16.xpose.msra.mxu0 0
    %2399 = vmatprep.subr.bf16.mxu0 0
    %2400 = vmatpush1.bf16.xpose.msra.mxu0 0
    %2401 = vmatprep.subr.bf16.mxu0 0
    %2402 = vmatpush1.bf16.xpose.msra.mxu0 0
    %2403 = vmatprep.subr.bf16.mxu0 0
    %2404 = vmatpush1.bf16.xpose.msra.mxu0 0
    %2405 = vmatprep.subr.bf16.mxu0 0
    %2406 = vmatpush1.bf16.xpose.msra.mxu0 0
    %2407 = vmatprep.subr.bf16.mxu0 0
    %2408 = vmatpush1.bf16.xpose.msra.mxu0 0
    %2409 = vmatprep.subr.bf16.mxu0 0
    %2410 = vmatpush1.bf16.xpose.msra.mxu0 0
    %2411 = vmatprep.subr.bf16.mxu0 0
    %2412 = vmatpush1.bf16.xpose.msra.mxu0 0
    %2413 = vmatprep.subr.bf16.mxu0 0
    %2414 = vmatpush1.bf16.xpose.msra.mxu0 0
    %2415 = vmatprep.mubr.bf16.mxu0 0
    %2416 = vmatmul.mubr.bf16.gmra.mrb[0].mxu0 %v2378
    %v2417 = vpop.f32.mrb[0].mxu0
    %v2418 = vadd.f32 %v491, %v2417
    %v2419 = vpop.f32.mrb[0].mxu0
    %v2420 = vpop.f32.mrb[0].mxu0
    %v2421 = vadd.f32 %v492, %v2420
    %v2422 = vpop.f32.mrb[0].mxu0
    %2423 = vdwg.mxu0
    %v2424 = vsel %vm493, %v2418, -inf
    %2425 = vmax.xlane.f32.xlu0 %v2424
    %v2426 = vpop.xlane.xlu0 %2425
    %v2427 = vsel %vm493, %v2421, -inf
    %2428 = vmax.xlane.f32.xlu0 %v2427
    %v2429 = vpop.xlane.xlu0 %2428
    %v2430 = vsub.f32 %v2418, %v2426
    %v2431 = vsub.f32 %v2421, %v2429
    %v2432 = vpack.c.bf16 %v2431, %v2430
    %v2434 = vmul.bf16 %v2432, 1069105081
    %v2435 = vpow.bf16.pop %v2434
    %v2436 = vunpack.c.l.bf16 %v2435
    %v2437 = vunpack.c.h.bf16 %v2435
    %v2438 = vsel %vm493, %v2436, 0.0
    %2439 = vadd.xlane.f32.xlu0 %v2438
    %v2440 = vpop.xlane.xlu0 %2439
    %v2441 = vsel %vm493, %v2437, 0.0
    %2442 = vadd.xlane.f32.xlu0 %v2441
    %v2443 = vpop.xlane.xlu0 %2442
    %v2444 = vrcp.pop %v2440
    %v2445 = vrcp.pop %v2443
    %v2446 = vmul.f32 %v2436, %v2444
    %v2447 = vmul.f32 %v2437, %v2445
    %2449 = vrot.lane.b32.xlu0 %v480, 112
    %v2450 = vpop.permute.xlu0 %2449
    %2452 = vrot.lane.b32.xlu0 %v482, 112
    %v2453 = vpop.permute.xlu0 %2452
    %v2455 = vsel %vm493, %v2450, 0
    %v2458 = vsel %vm493, %v2453, 0
    %2460 = vmatprep.subr.bf16.mxu0 0
    %2461 = vmatpush1.bf16.xpose.msra.mxu0 %v2458
    %2462 = vmatprep.subr.bf16.mxu0 0
    %2463 = vmatpush1.bf16.xpose.msra.mxu0 0
    %2464 = vmatprep.subr.bf16.mxu0 0
    %2465 = vmatpush1.bf16.xpose.msra.mxu0 0
    %2466 = vmatprep.subr.bf16.mxu0 0
    %2467 = vmatpush1.bf16.xpose.msra.mxu0 0
    %2468 = vmatprep.subr.bf16.mxu0 0
    %2469 = vmatpush1.bf16.xpose.msra.mxu0 0
    %2470 = vmatprep.subr.bf16.mxu0 0
    %2471 = vmatpush1.bf16.xpose.msra.mxu0 0
    %2472 = vmatprep.subr.bf16.mxu0 0
    %2473 = vmatpush1.bf16.xpose.msra.mxu0 0
    %2474 = vmatprep.subr.bf16.mxu0 0
    %2475 = vmatpush1.bf16.xpose.msra.mxu0 0
    %2476 = vmatprep.subr.bf16.mxu0 0
    %2477 = vmatpush1.bf16.xpose.msra.mxu0 0
    %2478 = vmatprep.subr.bf16.mxu0 0
    %2479 = vmatpush1.bf16.xpose.msra.mxu0 0
    %2480 = vmatprep.subr.bf16.mxu0 0
    %2481 = vmatpush1.bf16.xpose.msra.mxu0 0
    %2482 = vmatprep.subr.bf16.mxu0 0
    %2483 = vmatpush1.bf16.xpose.msra.mxu0 0
    %2484 = vmatprep.subr.bf16.mxu0 0
    %2485 = vmatpush1.bf16.xpose.msra.mxu0 0
    %2486 = vmatprep.subr.bf16.mxu0 0
    %2487 = vmatpush1.bf16.xpose.msra.mxu0 0
    %2488 = vmatprep.subr.bf16.mxu0 0
    %2489 = vmatpush1.bf16.xpose.msra.mxu0 0
    %2490 = vmatprep.subr.bf16.mxu0 0
    %2491 = vmatpush1.bf16.xpose.msra.mxu0 0
    %2492 = vmatprep.mubr.bf16.mxu0 0
    %2493 = vmatmul.mubr.bf16.gmra.mrb[0].mxu0 %v2455
    %v2494 = vpop.f32.mrb[0].mxu0
    %v2495 = vadd.f32 %v491, %v2494
    %v2496 = vpop.f32.mrb[0].mxu0
    %v2497 = vpop.f32.mrb[0].mxu0
    %v2498 = vadd.f32 %v492, %v2497
    %v2499 = vpop.f32.mrb[0].mxu0
    %2500 = vdwg.mxu0
    %v2501 = vsel %vm493, %v2495, -inf
    %2502 = vmax.xlane.f32.xlu0 %v2501
    %v2503 = vpop.xlane.xlu0 %2502
    %v2504 = vsel %vm493, %v2498, -inf
    %2505 = vmax.xlane.f32.xlu0 %v2504
    %v2506 = vpop.xlane.xlu0 %2505
    %v2507 = vsub.f32 %v2495, %v2503
    %v2508 = vsub.f32 %v2498, %v2506
    %v2509 = vpack.c.bf16 %v2508, %v2507
    %v2511 = vmul.bf16 %v2509, 1069105081
    %v2512 = vpow.bf16.pop %v2511
    %v2513 = vunpack.c.l.bf16 %v2512
    %v2514 = vunpack.c.h.bf16 %v2512
    %v2515 = vsel %vm493, %v2513, 0.0
    %2516 = vadd.xlane.f32.xlu0 %v2515
    %v2517 = vpop.xlane.xlu0 %2516
    %v2518 = vsel %vm493, %v2514, 0.0
    %2519 = vadd.xlane.f32.xlu0 %v2518
    %v2520 = vpop.xlane.xlu0 %2519
    %v2521 = vrcp.pop %v2517
    %v2522 = vrcp.pop %v2520
    %v2523 = vmul.f32 %v2521, 0.35550907
    %v2524 = vmul.f32 %v2522, 0.35550907
    %v2525 = vmul.f32 %v2513, %v2523
    %v2526 = vmul.f32 %v2514, %v2524
    %v2527 = vsub.f32 %v2446, %v2525
    %v2528 = vsub.f32 %v2447, %v2526
    %v2529 = vpack.c.bf16 %v2528, %v2527
    %2531 = vrot.lane.b32.xlu0 %v483, 112
    %v2532 = vpop.permute.xlu0 %2531
    %v2535 = vsel %vm493, %v2529, 0
    %2537 = vmatprep.subr.bf16.mxu0 0
    %2538 = vmatpush1.bf16.msra.mxu0 %v2532
    %2539 = vmatprep.subr.bf16.mxu0 0
    %2540 = vmatpush1.bf16.msra.mxu0 0
    %2541 = vmatprep.subr.bf16.mxu0 0
    %2542 = vmatpush1.bf16.msra.mxu0 0
    %2543 = vmatprep.subr.bf16.mxu0 0
    %2544 = vmatpush1.bf16.msra.mxu0 0
    %2545 = vmatprep.subr.bf16.mxu0 0
    %2546 = vmatpush1.bf16.msra.mxu0 0
    %2547 = vmatprep.subr.bf16.mxu0 0
    %2548 = vmatpush1.bf16.msra.mxu0 0
    %2549 = vmatprep.subr.bf16.mxu0 0
    %2550 = vmatpush1.bf16.msra.mxu0 0
    %2551 = vmatprep.subr.bf16.mxu0 0
    %2552 = vmatpush1.bf16.msra.mxu0 0
    %2553 = vmatprep.subr.bf16.mxu0 0
    %2554 = vmatpush1.bf16.msra.mxu0 0
    %2555 = vmatprep.subr.bf16.mxu0 0
    %2556 = vmatpush1.bf16.msra.mxu0 0
    %2557 = vmatprep.subr.bf16.mxu0 0
    %2558 = vmatpush1.bf16.msra.mxu0 0
    %2559 = vmatprep.subr.bf16.mxu0 0
    %2560 = vmatpush1.bf16.msra.mxu0 0
    %2561 = vmatprep.subr.bf16.mxu0 0
    %2562 = vmatpush1.bf16.msra.mxu0 0
    %2563 = vmatprep.subr.bf16.mxu0 0
    %2564 = vmatpush1.bf16.msra.mxu0 0
    %2565 = vmatprep.subr.bf16.mxu0 0
    %2566 = vmatpush1.bf16.msra.mxu0 0
    %2567 = vmatprep.subr.bf16.mxu0 0
    %2568 = vmatpush1.bf16.msra.mxu0 0
    %2569 = vmatprep.mubr.bf16.mxu0 0
    %2570 = vmatmul.mubr.bf16.gmra.mrb[0].mxu0 %v2535
    %v2571 = vpop.f32.mrb[0].mxu0
    %v2572 = vadd.f32 0.0, %v2571
    %v2573 = vpop.f32.mrb[0].mxu0
    %v2574 = vpop.f32.mrb[0].mxu0
    %v2575 = vadd.f32 0.0, %v2574
    %v2576 = vpop.f32.mrb[0].mxu0
    %2577 = vdwg.mxu0
    %2578 = vrot.lane.b32.xlu0 %v479, 96
    %v2579 = vpop.permute.xlu0 %2578
    %2580 = vrot.lane.b32.xlu0 %v481, 96
    %v2581 = vpop.permute.xlu0 %2580
    %v2583 = vsel %vm493, %v2579, 0
    %v2586 = vsel %vm493, %v2581, 0
    %2588 = vmatprep.subr.bf16.mxu0 0
    %2589 = vmatpush1.bf16.xpose.msra.mxu0 %v2586
    %2590 = vmatprep.subr.bf16.mxu0 0
    %2591 = vmatpush1.bf16.xpose.msra.mxu0 0
    %2592 = vmatprep.subr.bf16.mxu0 0
    %2593 = vmatpush1.bf16.xpose.msra.mxu0 0
    %2594 = vmatprep.subr.bf16.mxu0 0
    %2595 = vmatpush1.bf16.xpose.msra.mxu0 0
    %2596 = vmatprep.subr.bf16.mxu0 0
    %2597 = vmatpush1.bf16.xpose.msra.mxu0 0
    %2598 = vmatprep.subr.bf16.mxu0 0
    %2599 = vmatpush1.bf16.xpose.msra.mxu0 0
    %2600 = vmatprep.subr.bf16.mxu0 0
    %2601 = vmatpush1.bf16.xpose.msra.mxu0 0
    %2602 = vmatprep.subr.bf16.mxu0 0
    %2603 = vmatpush1.bf16.xpose.msra.mxu0 0
    %2604 = vmatprep.subr.bf16.mxu0 0
    %2605 = vmatpush1.bf16.xpose.msra.mxu0 0
    %2606 = vmatprep.subr.bf16.mxu0 0
    %2607 = vmatpush1.bf16.xpose.msra.mxu0 0
    %2608 = vmatprep.subr.bf16.mxu0 0
    %2609 = vmatpush1.bf16.xpose.msra.mxu0 0
    %2610 = vmatprep.subr.bf16.mxu0 0
    %2611 = vmatpush1.bf16.xpose.msra.mxu0 0
    %2612 = vmatprep.subr.bf16.mxu0 0
    %2613 = vmatpush1.bf16.xpose.msra.mxu0 0
    %2614 = vmatprep.subr.bf16.mxu0 0
    %2615 = vmatpush1.bf16.xpose.msra.mxu0 0
    %2616 = vmatprep.subr.bf16.mxu0 0
    %2617 = vmatpush1.bf16.xpose.msra.mxu0 0
    %2618 = vmatprep.subr.bf16.mxu0 0
    %2619 = vmatpush1.bf16.xpose.msra.mxu0 0
    %2620 = vmatprep.mubr.bf16.mxu0 0
    %2621 = vmatmul.mubr.bf16.gmra.mrb[0].mxu0 %v2583
    %v2622 = vpop.f32.mrb[0].mxu0
    %v2623 = vadd.f32 %v491, %v2622
    %v2624 = vpop.f32.mrb[0].mxu0
    %v2625 = vpop.f32.mrb[0].mxu0
    %v2626 = vadd.f32 %v492, %v2625
    %v2627 = vpop.f32.mrb[0].mxu0
    %2628 = vdwg.mxu0
    %v2629 = vsel %vm493, %v2623, -inf
    %2630 = vmax.xlane.f32.xlu0 %v2629
    %v2631 = vpop.xlane.xlu0 %2630
    %v2632 = vsel %vm493, %v2626, -inf
    %2633 = vmax.xlane.f32.xlu0 %v2632
    %v2634 = vpop.xlane.xlu0 %2633
    %v2635 = vsub.f32 %v2623, %v2631
    %v2636 = vsub.f32 %v2626, %v2634
    %v2637 = vpack.c.bf16 %v2636, %v2635
    %v2639 = vmul.bf16 %v2637, 1069105081
    %v2640 = vpow.bf16.pop %v2639
    %v2641 = vunpack.c.l.bf16 %v2640
    %v2642 = vunpack.c.h.bf16 %v2640
    %v2643 = vsel %vm493, %v2641, 0.0
    %2644 = vadd.xlane.f32.xlu0 %v2643
    %v2645 = vpop.xlane.xlu0 %2644
    %v2646 = vsel %vm493, %v2642, 0.0
    %2647 = vadd.xlane.f32.xlu0 %v2646
    %v2648 = vpop.xlane.xlu0 %2647
    %v2649 = vrcp.pop %v2645
    %v2650 = vrcp.pop %v2648
    %v2651 = vmul.f32 %v2641, %v2649
    %v2652 = vmul.f32 %v2642, %v2650
    %2653 = vrot.lane.b32.xlu0 %v480, 96
    %v2654 = vpop.permute.xlu0 %2653
    %2655 = vrot.lane.b32.xlu0 %v482, 96
    %v2656 = vpop.permute.xlu0 %2655
    %v2658 = vsel %vm493, %v2654, 0
    %v2661 = vsel %vm493, %v2656, 0
    %2663 = vmatprep.subr.bf16.mxu0 0
    %2664 = vmatpush1.bf16.xpose.msra.mxu0 %v2661
    %2665 = vmatprep.subr.bf16.mxu0 0
    %2666 = vmatpush1.bf16.xpose.msra.mxu0 0
    %2667 = vmatprep.subr.bf16.mxu0 0
    %2668 = vmatpush1.bf16.xpose.msra.mxu0 0
    %2669 = vmatprep.subr.bf16.mxu0 0
    %2670 = vmatpush1.bf16.xpose.msra.mxu0 0
    %2671 = vmatprep.subr.bf16.mxu0 0
    %2672 = vmatpush1.bf16.xpose.msra.mxu0 0
    %2673 = vmatprep.subr.bf16.mxu0 0
    %2674 = vmatpush1.bf16.xpose.msra.mxu0 0
    %2675 = vmatprep.subr.bf16.mxu0 0
    %2676 = vmatpush1.bf16.xpose.msra.mxu0 0
    %2677 = vmatprep.subr.bf16.mxu0 0
    %2678 = vmatpush1.bf16.xpose.msra.mxu0 0
    %2679 = vmatprep.subr.bf16.mxu0 0
    %2680 = vmatpush1.bf16.xpose.msra.mxu0 0
    %2681 = vmatprep.subr.bf16.mxu0 0
    %2682 = vmatpush1.bf16.xpose.msra.mxu0 0
    %2683 = vmatprep.subr.bf16.mxu0 0
    %2684 = vmatpush1.bf16.xpose.msra.mxu0 0
    %2685 = vmatprep.subr.bf16.mxu0 0
    %2686 = vmatpush1.bf16.xpose.msra.mxu0 0
    %2687 = vmatprep.subr.bf16.mxu0 0
    %2688 = vmatpush1.bf16.xpose.msra.mxu0 0
    %2689 = vmatprep.subr.bf16.mxu0 0
    %2690 = vmatpush1.bf16.xpose.msra.mxu0 0
    %2691 = vmatprep.subr.bf16.mxu0 0
    %2692 = vmatpush1.bf16.xpose.msra.mxu0 0
    %2693 = vmatprep.subr.bf16.mxu0 0
    %2694 = vmatpush1.bf16.xpose.msra.mxu0 0
    %2695 = vmatprep.mubr.bf16.mxu0 0
    %2696 = vmatmul.mubr.bf16.gmra.mrb[0].mxu0 %v2658
    %v2697 = vpop.f32.mrb[0].mxu0
    %v2698 = vadd.f32 %v491, %v2697
    %v2699 = vpop.f32.mrb[0].mxu0
    %v2700 = vpop.f32.mrb[0].mxu0
    %v2701 = vadd.f32 %v492, %v2700
    %v2702 = vpop.f32.mrb[0].mxu0
    %2703 = vdwg.mxu0
    %v2704 = vsel %vm493, %v2698, -inf
    %2705 = vmax.xlane.f32.xlu0 %v2704
    %v2706 = vpop.xlane.xlu0 %2705
    %v2707 = vsel %vm493, %v2701, -inf
    %2708 = vmax.xlane.f32.xlu0 %v2707
    %v2709 = vpop.xlane.xlu0 %2708
    %v2710 = vsub.f32 %v2698, %v2706
    %v2711 = vsub.f32 %v2701, %v2709
    %v2712 = vpack.c.bf16 %v2711, %v2710
    %v2714 = vmul.bf16 %v2712, 1069105081
    %v2715 = vpow.bf16.pop %v2714
    %v2716 = vunpack.c.l.bf16 %v2715
    %v2717 = vunpack.c.h.bf16 %v2715
    %v2718 = vsel %vm493, %v2716, 0.0
    %2719 = vadd.xlane.f32.xlu0 %v2718
    %v2720 = vpop.xlane.xlu0 %2719
    %v2721 = vsel %vm493, %v2717, 0.0
    %2722 = vadd.xlane.f32.xlu0 %v2721
    %v2723 = vpop.xlane.xlu0 %2722
    %v2724 = vrcp.pop %v2720
    %v2725 = vrcp.pop %v2723
    %v2726 = vmul.f32 %v2724, 0.35550907
    %v2727 = vmul.f32 %v2725, 0.35550907
    %v2728 = vmul.f32 %v2716, %v2726
    %v2729 = vmul.f32 %v2717, %v2727
    %v2730 = vsub.f32 %v2651, %v2728
    %v2731 = vsub.f32 %v2652, %v2729
    %v2732 = vpack.c.bf16 %v2731, %v2730
    %2733 = vrot.lane.b32.xlu0 %v483, 96
    %v2734 = vpop.permute.xlu0 %2733
    %v2737 = vsel %vm493, %v2732, 0
    %2739 = vmatprep.subr.bf16.mxu0 0
    %2740 = vmatpush1.bf16.msra.mxu0 %v2734
    %2741 = vmatprep.subr.bf16.mxu0 0
    %2742 = vmatpush1.bf16.msra.mxu0 0
    %2743 = vmatprep.subr.bf16.mxu0 0
    %2744 = vmatpush1.bf16.msra.mxu0 0
    %2745 = vmatprep.subr.bf16.mxu0 0
    %2746 = vmatpush1.bf16.msra.mxu0 0
    %2747 = vmatprep.subr.bf16.mxu0 0
    %2748 = vmatpush1.bf16.msra.mxu0 0
    %2749 = vmatprep.subr.bf16.mxu0 0
    %2750 = vmatpush1.bf16.msra.mxu0 0
    %2751 = vmatprep.subr.bf16.mxu0 0
    %2752 = vmatpush1.bf16.msra.mxu0 0
    %2753 = vmatprep.subr.bf16.mxu0 0
    %2754 = vmatpush1.bf16.msra.mxu0 0
    %2755 = vmatprep.subr.bf16.mxu0 0
    %2756 = vmatpush1.bf16.msra.mxu0 0
    %2757 = vmatprep.subr.bf16.mxu0 0
    %2758 = vmatpush1.bf16.msra.mxu0 0
    %2759 = vmatprep.subr.bf16.mxu0 0
    %2760 = vmatpush1.bf16.msra.mxu0 0
    %2761 = vmatprep.subr.bf16.mxu0 0
    %2762 = vmatpush1.bf16.msra.mxu0 0
    %2763 = vmatprep.subr.bf16.mxu0 0
    %2764 = vmatpush1.bf16.msra.mxu0 0
    %2765 = vmatprep.subr.bf16.mxu0 0
    %2766 = vmatpush1.bf16.msra.mxu0 0
    %2767 = vmatprep.subr.bf16.mxu0 0
    %2768 = vmatpush1.bf16.msra.mxu0 0
    %2769 = vmatprep.subr.bf16.mxu0 0
    %2770 = vmatpush1.bf16.msra.mxu0 0
    %2771 = vmatprep.mubr.bf16.mxu0 0
    %2772 = vmatmul.mubr.bf16.gmra.mrb[0].mxu0 %v2737
    %v2773 = vpop.f32.mrb[0].mxu0
    %v2774 = vadd.f32 0.0, %v2773
    %v2775 = vpop.f32.mrb[0].mxu0
    %v2776 = vpop.f32.mrb[0].mxu0
    %v2777 = vadd.f32 0.0, %v2776
    %v2778 = vpop.f32.mrb[0].mxu0
    %2779 = vdwg.mxu0
    %2780 = vrot.lane.b32.xlu0 %v479, 80
    %v2781 = vpop.permute.xlu0 %2780
    %2782 = vrot.lane.b32.xlu0 %v481, 80
    %v2783 = vpop.permute.xlu0 %2782
    %v2785 = vsel %vm493, %v2781, 0
    %v2788 = vsel %vm493, %v2783, 0
    %2790 = vmatprep.subr.bf16.mxu0 0
    %2791 = vmatpush1.bf16.xpose.msra.mxu0 %v2788
    %2792 = vmatprep.subr.bf16.mxu0 0
    %2793 = vmatpush1.bf16.xpose.msra.mxu0 0
    %2794 = vmatprep.subr.bf16.mxu0 0
    %2795 = vmatpush1.bf16.xpose.msra.mxu0 0
    %2796 = vmatprep.subr.bf16.mxu0 0
    %2797 = vmatpush1.bf16.xpose.msra.mxu0 0
    %2798 = vmatprep.subr.bf16.mxu0 0
    %2799 = vmatpush1.bf16.xpose.msra.mxu0 0
    %2800 = vmatprep.subr.bf16.mxu0 0
    %2801 = vmatpush1.bf16.xpose.msra.mxu0 0
    %2802 = vmatprep.subr.bf16.mxu0 0
    %2803 = vmatpush1.bf16.xpose.msra.mxu0 0
    %2804 = vmatprep.subr.bf16.mxu0 0
    %2805 = vmatpush1.bf16.xpose.msra.mxu0 0
    %2806 = vmatprep.subr.bf16.mxu0 0
    %2807 = vmatpush1.bf16.xpose.msra.mxu0 0
    %2808 = vmatprep.subr.bf16.mxu0 0
    %2809 = vmatpush1.bf16.xpose.msra.mxu0 0
    %2810 = vmatprep.subr.bf16.mxu0 0
    %2811 = vmatpush1.bf16.xpose.msra.mxu0 0
    %2812 = vmatprep.subr.bf16.mxu0 0
    %2813 = vmatpush1.bf16.xpose.msra.mxu0 0
    %2814 = vmatprep.subr.bf16.mxu0 0
    %2815 = vmatpush1.bf16.xpose.msra.mxu0 0
    %2816 = vmatprep.subr.bf16.mxu0 0
    %2817 = vmatpush1.bf16.xpose.msra.mxu0 0
    %2818 = vmatprep.subr.bf16.mxu0 0
    %2819 = vmatpush1.bf16.xpose.msra.mxu0 0
    %2820 = vmatprep.subr.bf16.mxu0 0
    %2821 = vmatpush1.bf16.xpose.msra.mxu0 0
    %2822 = vmatprep.mubr.bf16.mxu0 0
    %2823 = vmatmul.mubr.bf16.gmra.mrb[0].mxu0 %v2785
    %v2824 = vpop.f32.mrb[0].mxu0
    %v2825 = vadd.f32 %v491, %v2824
    %v2826 = vpop.f32.mrb[0].mxu0
    %v2827 = vpop.f32.mrb[0].mxu0
    %v2828 = vadd.f32 %v492, %v2827
    %v2829 = vpop.f32.mrb[0].mxu0
    %2830 = vdwg.mxu0
    %v2831 = vsel %vm493, %v2825, -inf
    %2832 = vmax.xlane.f32.xlu0 %v2831
    %v2833 = vpop.xlane.xlu0 %2832
    %v2834 = vsel %vm493, %v2828, -inf
    %2835 = vmax.xlane.f32.xlu0 %v2834
    %v2836 = vpop.xlane.xlu0 %2835
    %v2837 = vsub.f32 %v2825, %v2833
    %v2838 = vsub.f32 %v2828, %v2836
    %v2839 = vpack.c.bf16 %v2838, %v2837
    %v2841 = vmul.bf16 %v2839, 1069105081
    %v2842 = vpow.bf16.pop %v2841
    %v2843 = vunpack.c.l.bf16 %v2842
    %v2844 = vunpack.c.h.bf16 %v2842
    %v2845 = vsel %vm493, %v2843, 0.0
    %2846 = vadd.xlane.f32.xlu0 %v2845
    %v2847 = vpop.xlane.xlu0 %2846
    %v2848 = vsel %vm493, %v2844, 0.0
    %2849 = vadd.xlane.f32.xlu0 %v2848
    %v2850 = vpop.xlane.xlu0 %2849
    %v2851 = vrcp.pop %v2847
    %v2852 = vrcp.pop %v2850
    %v2853 = vmul.f32 %v2843, %v2851
    %v2854 = vmul.f32 %v2844, %v2852
    %2855 = vrot.lane.b32.xlu0 %v480, 80
    %v2856 = vpop.permute.xlu0 %2855
    %2857 = vrot.lane.b32.xlu0 %v482, 80
    %v2858 = vpop.permute.xlu0 %2857
    %v2860 = vsel %vm493, %v2856, 0
    %v2863 = vsel %vm493, %v2858, 0
    %2865 = vmatprep.subr.bf16.mxu0 0
    %2866 = vmatpush1.bf16.xpose.msra.mxu0 %v2863
    %2867 = vmatprep.subr.bf16.mxu0 0
    %2868 = vmatpush1.bf16.xpose.msra.mxu0 0
    %2869 = vmatprep.subr.bf16.mxu0 0
    %2870 = vmatpush1.bf16.xpose.msra.mxu0 0
    %2871 = vmatprep.subr.bf16.mxu0 0
    %2872 = vmatpush1.bf16.xpose.msra.mxu0 0
    %2873 = vmatprep.subr.bf16.mxu0 0
    %2874 = vmatpush1.bf16.xpose.msra.mxu0 0
    %2875 = vmatprep.subr.bf16.mxu0 0
    %2876 = vmatpush1.bf16.xpose.msra.mxu0 0
    %2877 = vmatprep.subr.bf16.mxu0 0
    %2878 = vmatpush1.bf16.xpose.msra.mxu0 0
    %2879 = vmatprep.subr.bf16.mxu0 0
    %2880 = vmatpush1.bf16.xpose.msra.mxu0 0
    %2881 = vmatprep.subr.bf16.mxu0 0
    %2882 = vmatpush1.bf16.xpose.msra.mxu0 0
    %2883 = vmatprep.subr.bf16.mxu0 0
    %2884 = vmatpush1.bf16.xpose.msra.mxu0 0
    %2885 = vmatprep.subr.bf16.mxu0 0
    %2886 = vmatpush1.bf16.xpose.msra.mxu0 0
    %2887 = vmatprep.subr.bf16.mxu0 0
    %2888 = vmatpush1.bf16.xpose.msra.mxu0 0
    %2889 = vmatprep.subr.bf16.mxu0 0
    %2890 = vmatpush1.bf16.xpose.msra.mxu0 0
    %2891 = vmatprep.subr.bf16.mxu0 0
    %2892 = vmatpush1.bf16.xpose.msra.mxu0 0
    %2893 = vmatprep.subr.bf16.mxu0 0
    %2894 = vmatpush1.bf16.xpose.msra.mxu0 0
    %2895 = vmatprep.subr.bf16.mxu0 0
    %2896 = vmatpush1.bf16.xpose.msra.mxu0 0
    %2897 = vmatprep.mubr.bf16.mxu0 0
    %2898 = vmatmul.mubr.bf16.gmra.mrb[0].mxu0 %v2860
    %v2899 = vpop.f32.mrb[0].mxu0
    %v2900 = vadd.f32 %v491, %v2899
    %v2901 = vpop.f32.mrb[0].mxu0
    %v2902 = vpop.f32.mrb[0].mxu0
    %v2903 = vadd.f32 %v492, %v2902
    %v2904 = vpop.f32.mrb[0].mxu0
    %2905 = vdwg.mxu0
    %v2906 = vsel %vm493, %v2900, -inf
    %2907 = vmax.xlane.f32.xlu0 %v2906
    %v2908 = vpop.xlane.xlu0 %2907
    %v2909 = vsel %vm493, %v2903, -inf
    %2910 = vmax.xlane.f32.xlu0 %v2909
    %v2911 = vpop.xlane.xlu0 %2910
    %v2912 = vsub.f32 %v2900, %v2908
    %v2913 = vsub.f32 %v2903, %v2911
    %v2914 = vpack.c.bf16 %v2913, %v2912
    %v2916 = vmul.bf16 %v2914, 1069105081
    %v2917 = vpow.bf16.pop %v2916
    %v2918 = vunpack.c.l.bf16 %v2917
    %v2919 = vunpack.c.h.bf16 %v2917
    %v2920 = vsel %vm493, %v2918, 0.0
    %2921 = vadd.xlane.f32.xlu0 %v2920
    %v2922 = vpop.xlane.xlu0 %2921
    %v2923 = vsel %vm493, %v2919, 0.0
    %2924 = vadd.xlane.f32.xlu0 %v2923
    %v2925 = vpop.xlane.xlu0 %2924
    %v2926 = vrcp.pop %v2922
    %v2927 = vrcp.pop %v2925
    %v2928 = vmul.f32 %v2926, 0.35550907
    %v2929 = vmul.f32 %v2927, 0.35550907
    %v2930 = vmul.f32 %v2918, %v2928
    %v2931 = vmul.f32 %v2919, %v2929
    %v2932 = vsub.f32 %v2853, %v2930
    %v2933 = vsub.f32 %v2854, %v2931
    %v2934 = vpack.c.bf16 %v2933, %v2932
    %2935 = vrot.lane.b32.xlu0 %v483, 80
    %v2936 = vpop.permute.xlu0 %2935
    %v2939 = vsel %vm493, %v2934, 0
    %2941 = vmatprep.subr.bf16.mxu0 0
    %2942 = vmatpush1.bf16.msra.mxu0 %v2936
    %2943 = vmatprep.subr.bf16.mxu0 0
    %2944 = vmatpush1.bf16.msra.mxu0 0
    %2945 = vmatprep.subr.bf16.mxu0 0
    %2946 = vmatpush1.bf16.msra.mxu0 0
    %2947 = vmatprep.subr.bf16.mxu0 0
    %2948 = vmatpush1.bf16.msra.mxu0 0
    %2949 = vmatprep.subr.bf16.mxu0 0
    %2950 = vmatpush1.bf16.msra.mxu0 0
    %2951 = vmatprep.subr.bf16.mxu0 0
    %2952 = vmatpush1.bf16.msra.mxu0 0
    %2953 = vmatprep.subr.bf16.mxu0 0
    %2954 = vmatpush1.bf16.msra.mxu0 0
    %2955 = vmatprep.subr.bf16.mxu0 0
    %2956 = vmatpush1.bf16.msra.mxu0 0
    %2957 = vmatprep.subr.bf16.mxu0 0
    %2958 = vmatpush1.bf16.msra.mxu0 0
    %2959 = vmatprep.subr.bf16.mxu0 0
    %2960 = vmatpush1.bf16.msra.mxu0 0
    %2961 = vmatprep.subr.bf16.mxu0 0
    %2962 = vmatpush1.bf16.msra.mxu0 0
    %2963 = vmatprep.subr.bf16.mxu0 0
    %2964 = vmatpush1.bf16.msra.mxu0 0
    %2965 = vmatprep.subr.bf16.mxu0 0
    %2966 = vmatpush1.bf16.msra.mxu0 0
    %2967 = vmatprep.subr.bf16.mxu0 0
    %2968 = vmatpush1.bf16.msra.mxu0 0
    %2969 = vmatprep.subr.bf16.mxu0 0
    %2970 = vmatpush1.bf16.msra.mxu0 0
    %2971 = vmatprep.subr.bf16.mxu0 0
    %2972 = vmatpush1.bf16.msra.mxu0 0
    %2973 = vmatprep.mubr.bf16.mxu0 0
    %2974 = vmatmul.mubr.bf16.gmra.mrb[0].mxu0 %v2939
    %v2975 = vpop.f32.mrb[0].mxu0
    %v2976 = vadd.f32 0.0, %v2975
    %v2977 = vpop.f32.mrb[0].mxu0
    %v2978 = vpop.f32.mrb[0].mxu0
    %v2979 = vadd.f32 0.0, %v2978
    %v2980 = vpop.f32.mrb[0].mxu0
    %2981 = vdwg.mxu0
    %2982 = vrot.lane.b32.xlu0 %v479, 64
    %v2983 = vpop.permute.xlu0 %2982
    %2984 = vrot.lane.b32.xlu0 %v481, 64
    %v2985 = vpop.permute.xlu0 %2984
    %v2987 = vsel %vm493, %v2983, 0
    %v2990 = vsel %vm493, %v2985, 0
    %2992 = vmatprep.subr.bf16.mxu0 0
    %2993 = vmatpush1.bf16.xpose.msra.mxu0 %v2990
    %2994 = vmatprep.subr.bf16.mxu0 0
    %2995 = vmatpush1.bf16.xpose.msra.mxu0 0
    %2996 = vmatprep.subr.bf16.mxu0 0
    %2997 = vmatpush1.bf16.xpose.msra.mxu0 0
    %2998 = vmatprep.subr.bf16.mxu0 0
    %2999 = vmatpush1.bf16.xpose.msra.mxu0 0
    %3000 = vmatprep.subr.bf16.mxu0 0
    %3001 = vmatpush1.bf16.xpose.msra.mxu0 0
    %3002 = vmatprep.subr.bf16.mxu0 0
    %3003 = vmatpush1.bf16.xpose.msra.mxu0 0
    %3004 = vmatprep.subr.bf16.mxu0 0
    %3005 = vmatpush1.bf16.xpose.msra.mxu0 0
    %3006 = vmatprep.subr.bf16.mxu0 0
    %3007 = vmatpush1.bf16.xpose.msra.mxu0 0
    %3008 = vmatprep.subr.bf16.mxu0 0
    %3009 = vmatpush1.bf16.xpose.msra.mxu0 0
    %3010 = vmatprep.subr.bf16.mxu0 0
    %3011 = vmatpush1.bf16.xpose.msra.mxu0 0
    %3012 = vmatprep.subr.bf16.mxu0 0
    %3013 = vmatpush1.bf16.xpose.msra.mxu0 0
    %3014 = vmatprep.subr.bf16.mxu0 0
    %3015 = vmatpush1.bf16.xpose.msra.mxu0 0
    %3016 = vmatprep.subr.bf16.mxu0 0
    %3017 = vmatpush1.bf16.xpose.msra.mxu0 0
    %3018 = vmatprep.subr.bf16.mxu0 0
    %3019 = vmatpush1.bf16.xpose.msra.mxu0 0
    %3020 = vmatprep.subr.bf16.mxu0 0
    %3021 = vmatpush1.bf16.xpose.msra.mxu0 0
    %3022 = vmatprep.subr.bf16.mxu0 0
    %3023 = vmatpush1.bf16.xpose.msra.mxu0 0
    %3024 = vmatprep.mubr.bf16.mxu0 0
    %3025 = vmatmul.mubr.bf16.gmra.mrb[0].mxu0 %v2987
    %v3026 = vpop.f32.mrb[0].mxu0
    %v3027 = vadd.f32 %v491, %v3026
    %v3028 = vpop.f32.mrb[0].mxu0
    %v3029 = vpop.f32.mrb[0].mxu0
    %v3030 = vadd.f32 %v492, %v3029
    %v3031 = vpop.f32.mrb[0].mxu0
    %3032 = vdwg.mxu0
    %v3033 = vsel %vm493, %v3027, -inf
    %3034 = vmax.xlane.f32.xlu0 %v3033
    %v3035 = vpop.xlane.xlu0 %3034
    %v3036 = vsel %vm493, %v3030, -inf
    %3037 = vmax.xlane.f32.xlu0 %v3036
    %v3038 = vpop.xlane.xlu0 %3037
    %v3039 = vsub.f32 %v3027, %v3035
    %v3040 = vsub.f32 %v3030, %v3038
    %v3041 = vpack.c.bf16 %v3040, %v3039
    %v3043 = vmul.bf16 %v3041, 1069105081
    %v3044 = vpow.bf16.pop %v3043
    %v3045 = vunpack.c.l.bf16 %v3044
    %v3046 = vunpack.c.h.bf16 %v3044
    %v3047 = vsel %vm493, %v3045, 0.0
    %3048 = vadd.xlane.f32.xlu0 %v3047
    %v3049 = vpop.xlane.xlu0 %3048
    %v3050 = vsel %vm493, %v3046, 0.0
    %3051 = vadd.xlane.f32.xlu0 %v3050
    %v3052 = vpop.xlane.xlu0 %3051
    %v3053 = vrcp.pop %v3049
    %v3054 = vrcp.pop %v3052
    %v3055 = vmul.f32 %v3045, %v3053
    %v3056 = vmul.f32 %v3046, %v3054
    %3057 = vrot.lane.b32.xlu0 %v480, 64
    %v3058 = vpop.permute.xlu0 %3057
    %3059 = vrot.lane.b32.xlu0 %v482, 64
    %v3060 = vpop.permute.xlu0 %3059
    %v3062 = vsel %vm493, %v3058, 0
    %v3065 = vsel %vm493, %v3060, 0
    %3067 = vmatprep.subr.bf16.mxu0 0
    %3068 = vmatpush1.bf16.xpose.msra.mxu0 %v3065
    %3069 = vmatprep.subr.bf16.mxu0 0
    %3070 = vmatpush1.bf16.xpose.msra.mxu0 0
    %3071 = vmatprep.subr.bf16.mxu0 0
    %3072 = vmatpush1.bf16.xpose.msra.mxu0 0
    %3073 = vmatprep.subr.bf16.mxu0 0
    %3074 = vmatpush1.bf16.xpose.msra.mxu0 0
    %3075 = vmatprep.subr.bf16.mxu0 0
    %3076 = vmatpush1.bf16.xpose.msra.mxu0 0
    %3077 = vmatprep.subr.bf16.mxu0 0
    %3078 = vmatpush1.bf16.xpose.msra.mxu0 0
    %3079 = vmatprep.subr.bf16.mxu0 0
    %3080 = vmatpush1.bf16.xpose.msra.mxu0 0
    %3081 = vmatprep.subr.bf16.mxu0 0
    %3082 = vmatpush1.bf16.xpose.msra.mxu0 0
    %3083 = vmatprep.subr.bf16.mxu0 0
    %3084 = vmatpush1.bf16.xpose.msra.mxu0 0
    %3085 = vmatprep.subr.bf16.mxu0 0
    %3086 = vmatpush1.bf16.xpose.msra.mxu0 0
    %3087 = vmatprep.subr.bf16.mxu0 0
    %3088 = vmatpush1.bf16.xpose.msra.mxu0 0
    %3089 = vmatprep.subr.bf16.mxu0 0
    %3090 = vmatpush1.bf16.xpose.msra.mxu0 0
    %3091 = vmatprep.subr.bf16.mxu0 0
    %3092 = vmatpush1.bf16.xpose.msra.mxu0 0
    %3093 = vmatprep.subr.bf16.mxu0 0
    %3094 = vmatpush1.bf16.xpose.msra.mxu0 0
    %3095 = vmatprep.subr.bf16.mxu0 0
    %3096 = vmatpush1.bf16.xpose.msra.mxu0 0
    %3097 = vmatprep.subr.bf16.mxu0 0
    %3098 = vmatpush1.bf16.xpose.msra.mxu0 0
    %3099 = vmatprep.mubr.bf16.mxu0 0
    %3100 = vmatmul.mubr.bf16.gmra.mrb[0].mxu0 %v3062
    %v3101 = vpop.f32.mrb[0].mxu0
    %v3102 = vadd.f32 %v491, %v3101
    %v3103 = vpop.f32.mrb[0].mxu0
    %v3104 = vpop.f32.mrb[0].mxu0
    %v3105 = vadd.f32 %v492, %v3104
    %v3106 = vpop.f32.mrb[0].mxu0
    %3107 = vdwg.mxu0
    %v3108 = vsel %vm493, %v3102, -inf
    %3109 = vmax.xlane.f32.xlu0 %v3108
    %v3110 = vpop.xlane.xlu0 %3109
    %v3111 = vsel %vm493, %v3105, -inf
    %3112 = vmax.xlane.f32.xlu0 %v3111
    %v3113 = vpop.xlane.xlu0 %3112
    %v3114 = vsub.f32 %v3102, %v3110
    %v3115 = vsub.f32 %v3105, %v3113
    %v3116 = vpack.c.bf16 %v3115, %v3114
    %v3118 = vmul.bf16 %v3116, 1069105081
    %v3119 = vpow.bf16.pop %v3118
    %v3120 = vunpack.c.l.bf16 %v3119
    %v3121 = vunpack.c.h.bf16 %v3119
    %v3122 = vsel %vm493, %v3120, 0.0
    %3123 = vadd.xlane.f32.xlu0 %v3122
    %v3124 = vpop.xlane.xlu0 %3123
    %v3125 = vsel %vm493, %v3121, 0.0
    %3126 = vadd.xlane.f32.xlu0 %v3125
    %v3127 = vpop.xlane.xlu0 %3126
    %v3128 = vrcp.pop %v3124
    %v3129 = vrcp.pop %v3127
    %v3130 = vmul.f32 %v3128, 0.35550907
    %v3131 = vmul.f32 %v3129, 0.35550907
    %v3132 = vmul.f32 %v3120, %v3130
    %v3133 = vmul.f32 %v3121, %v3131
    %v3134 = vsub.f32 %v3055, %v3132
    %v3135 = vsub.f32 %v3056, %v3133
    %v3136 = vpack.c.bf16 %v3135, %v3134
    %3137 = vrot.lane.b32.xlu0 %v483, 64
    %v3138 = vpop.permute.xlu0 %3137
    %v3141 = vsel %vm493, %v3136, 0
    %3143 = vmatprep.subr.bf16.mxu0 0
    %3144 = vmatpush1.bf16.msra.mxu0 %v3138
    %3145 = vmatprep.subr.bf16.mxu0 0
    %3146 = vmatpush1.bf16.msra.mxu0 0
    %3147 = vmatprep.subr.bf16.mxu0 0
    %3148 = vmatpush1.bf16.msra.mxu0 0
    %3149 = vmatprep.subr.bf16.mxu0 0
    %3150 = vmatpush1.bf16.msra.mxu0 0
    %3151 = vmatprep.subr.bf16.mxu0 0
    %3152 = vmatpush1.bf16.msra.mxu0 0
    %3153 = vmatprep.subr.bf16.mxu0 0
    %3154 = vmatpush1.bf16.msra.mxu0 0
    %3155 = vmatprep.subr.bf16.mxu0 0
    %3156 = vmatpush1.bf16.msra.mxu0 0
    %3157 = vmatprep.subr.bf16.mxu0 0
    %3158 = vmatpush1.bf16.msra.mxu0 0
    %3159 = vmatprep.subr.bf16.mxu0 0
    %3160 = vmatpush1.bf16.msra.mxu0 0
    %3161 = vmatprep.subr.bf16.mxu0 0
    %3162 = vmatpush1.bf16.msra.mxu0 0
    %3163 = vmatprep.subr.bf16.mxu0 0
    %3164 = vmatpush1.bf16.msra.mxu0 0
    %3165 = vmatprep.subr.bf16.mxu0 0
    %3166 = vmatpush1.bf16.msra.mxu0 0
    %3167 = vmatprep.subr.bf16.mxu0 0
    %3168 = vmatpush1.bf16.msra.mxu0 0
    %3169 = vmatprep.subr.bf16.mxu0 0
    %3170 = vmatpush1.bf16.msra.mxu0 0
    %3171 = vmatprep.subr.bf16.mxu0 0
    %3172 = vmatpush1.bf16.msra.mxu0 0
    %3173 = vmatprep.subr.bf16.mxu0 0
    %3174 = vmatpush1.bf16.msra.mxu0 0
    %3175 = vmatprep.mubr.bf16.mxu0 0
    %3176 = vmatmul.mubr.bf16.gmra.mrb[0].mxu0 %v3141
    %v3177 = vpop.f32.mrb[0].mxu0
    %v3178 = vadd.f32 0.0, %v3177
    %v3179 = vpop.f32.mrb[0].mxu0
    %v3180 = vpop.f32.mrb[0].mxu0
    %v3181 = vadd.f32 0.0, %v3180
    %v3182 = vpop.f32.mrb[0].mxu0
    %3183 = vdwg.mxu0
    %3184 = vrot.lane.b32.xlu0 %v479, 48
    %v3185 = vpop.permute.xlu0 %3184
    %3186 = vrot.lane.b32.xlu0 %v481, 48
    %v3187 = vpop.permute.xlu0 %3186
    %v3189 = vsel %vm493, %v3185, 0
    %v3192 = vsel %vm493, %v3187, 0
    %3194 = vmatprep.subr.bf16.mxu0 0
    %3195 = vmatpush1.bf16.xpose.msra.mxu0 %v3192
    %3196 = vmatprep.subr.bf16.mxu0 0
    %3197 = vmatpush1.bf16.xpose.msra.mxu0 0
    %3198 = vmatprep.subr.bf16.mxu0 0
    %3199 = vmatpush1.bf16.xpose.msra.mxu0 0
    %3200 = vmatprep.subr.bf16.mxu0 0
    %3201 = vmatpush1.bf16.xpose.msra.mxu0 0
    %3202 = vmatprep.subr.bf16.mxu0 0
    %3203 = vmatpush1.bf16.xpose.msra.mxu0 0
    %3204 = vmatprep.subr.bf16.mxu0 0
    %3205 = vmatpush1.bf16.xpose.msra.mxu0 0
    %3206 = vmatprep.subr.bf16.mxu0 0
    %3207 = vmatpush1.bf16.xpose.msra.mxu0 0
    %3208 = vmatprep.subr.bf16.mxu0 0
    %3209 = vmatpush1.bf16.xpose.msra.mxu0 0
    %3210 = vmatprep.subr.bf16.mxu0 0
    %3211 = vmatpush1.bf16.xpose.msra.mxu0 0
    %3212 = vmatprep.subr.bf16.mxu0 0
    %3213 = vmatpush1.bf16.xpose.msra.mxu0 0
    %3214 = vmatprep.subr.bf16.mxu0 0
    %3215 = vmatpush1.bf16.xpose.msra.mxu0 0
    %3216 = vmatprep.subr.bf16.mxu0 0
    %3217 = vmatpush1.bf16.xpose.msra.mxu0 0
    %3218 = vmatprep.subr.bf16.mxu0 0
    %3219 = vmatpush1.bf16.xpose.msra.mxu0 0
    %3220 = vmatprep.subr.bf16.mxu0 0
    %3221 = vmatpush1.bf16.xpose.msra.mxu0 0
    %3222 = vmatprep.subr.bf16.mxu0 0
    %3223 = vmatpush1.bf16.xpose.msra.mxu0 0
    %3224 = vmatprep.subr.bf16.mxu0 0
    %3225 = vmatpush1.bf16.xpose.msra.mxu0 0
    %3226 = vmatprep.mubr.bf16.mxu0 0
    %3227 = vmatmul.mubr.bf16.gmra.mrb[0].mxu0 %v3189
    %v3228 = vpop.f32.mrb[0].mxu0
    %v3229 = vadd.f32 %v491, %v3228
    %v3230 = vpop.f32.mrb[0].mxu0
    %v3231 = vpop.f32.mrb[0].mxu0
    %v3232 = vadd.f32 %v492, %v3231
    %v3233 = vpop.f32.mrb[0].mxu0
    %3234 = vdwg.mxu0
    %v3235 = vsel %vm493, %v3229, -inf
    %3236 = vmax.xlane.f32.xlu0 %v3235
    %v3237 = vpop.xlane.xlu0 %3236
    %v3238 = vsel %vm493, %v3232, -inf
    %3239 = vmax.xlane.f32.xlu0 %v3238
    %v3240 = vpop.xlane.xlu0 %3239
    %v3241 = vsub.f32 %v3229, %v3237
    %v3242 = vsub.f32 %v3232, %v3240
    %v3243 = vpack.c.bf16 %v3242, %v3241
    %v3245 = vmul.bf16 %v3243, 1069105081
    %v3246 = vpow.bf16.pop %v3245
    %v3247 = vunpack.c.l.bf16 %v3246
    %v3248 = vunpack.c.h.bf16 %v3246
    %v3249 = vsel %vm493, %v3247, 0.0
    %3250 = vadd.xlane.f32.xlu0 %v3249
    %v3251 = vpop.xlane.xlu0 %3250
    %v3252 = vsel %vm493, %v3248, 0.0
    %3253 = vadd.xlane.f32.xlu0 %v3252
    %v3254 = vpop.xlane.xlu0 %3253
    %v3255 = vrcp.pop %v3251
    %v3256 = vrcp.pop %v3254
    %v3257 = vmul.f32 %v3247, %v3255
    %v3258 = vmul.f32 %v3248, %v3256
    %3259 = vrot.lane.b32.xlu0 %v480, 48
    %v3260 = vpop.permute.xlu0 %3259
    %3261 = vrot.lane.b32.xlu0 %v482, 48
    %v3262 = vpop.permute.xlu0 %3261
    %v3264 = vsel %vm493, %v3260, 0
    %v3267 = vsel %vm493, %v3262, 0
    %3269 = vmatprep.subr.bf16.mxu0 0
    %3270 = vmatpush1.bf16.xpose.msra.mxu0 %v3267
    %3271 = vmatprep.subr.bf16.mxu0 0
    %3272 = vmatpush1.bf16.xpose.msra.mxu0 0
    %3273 = vmatprep.subr.bf16.mxu0 0
    %3274 = vmatpush1.bf16.xpose.msra.mxu0 0
    %3275 = vmatprep.subr.bf16.mxu0 0
    %3276 = vmatpush1.bf16.xpose.msra.mxu0 0
    %3277 = vmatprep.subr.bf16.mxu0 0
    %3278 = vmatpush1.bf16.xpose.msra.mxu0 0
    %3279 = vmatprep.subr.bf16.mxu0 0
    %3280 = vmatpush1.bf16.xpose.msra.mxu0 0
    %3281 = vmatprep.subr.bf16.mxu0 0
    %3282 = vmatpush1.bf16.xpose.msra.mxu0 0
    %3283 = vmatprep.subr.bf16.mxu0 0
    %3284 = vmatpush1.bf16.xpose.msra.mxu0 0
    %3285 = vmatprep.subr.bf16.mxu0 0
    %3286 = vmatpush1.bf16.xpose.msra.mxu0 0
    %3287 = vmatprep.subr.bf16.mxu0 0
    %3288 = vmatpush1.bf16.xpose.msra.mxu0 0
    %3289 = vmatprep.subr.bf16.mxu0 0
    %3290 = vmatpush1.bf16.xpose.msra.mxu0 0
    %3291 = vmatprep.subr.bf16.mxu0 0
    %3292 = vmatpush1.bf16.xpose.msra.mxu0 0
    %3293 = vmatprep.subr.bf16.mxu0 0
    %3294 = vmatpush1.bf16.xpose.msra.mxu0 0
    %3295 = vmatprep.subr.bf16.mxu0 0
    %3296 = vmatpush1.bf16.xpose.msra.mxu0 0
    %3297 = vmatprep.subr.bf16.mxu0 0
    %3298 = vmatpush1.bf16.xpose.msra.mxu0 0
    %3299 = vmatprep.subr.bf16.mxu0 0
    %3300 = vmatpush1.bf16.xpose.msra.mxu0 0
    %3301 = vmatprep.mubr.bf16.mxu0 0
    %3302 = vmatmul.mubr.bf16.gmra.mrb[0].mxu0 %v3264
    %v3303 = vpop.f32.mrb[0].mxu0
    %v3304 = vadd.f32 %v491, %v3303
    %v3305 = vpop.f32.mrb[0].mxu0
    %v3306 = vpop.f32.mrb[0].mxu0
    %v3307 = vadd.f32 %v492, %v3306
    %v3308 = vpop.f32.mrb[0].mxu0
    %3309 = vdwg.mxu0
    %v3310 = vsel %vm493, %v3304, -inf
    %3311 = vmax.xlane.f32.xlu0 %v3310
    %v3312 = vpop.xlane.xlu0 %3311
    %v3313 = vsel %vm493, %v3307, -inf
    %3314 = vmax.xlane.f32.xlu0 %v3313
    %v3315 = vpop.xlane.xlu0 %3314
    %v3316 = vsub.f32 %v3304, %v3312
    %v3317 = vsub.f32 %v3307, %v3315
    %v3318 = vpack.c.bf16 %v3317, %v3316
    %v3320 = vmul.bf16 %v3318, 1069105081
    %v3321 = vpow.bf16.pop %v3320
    %v3322 = vunpack.c.l.bf16 %v3321
    %v3323 = vunpack.c.h.bf16 %v3321
    %v3324 = vsel %vm493, %v3322, 0.0
    %3325 = vadd.xlane.f32.xlu0 %v3324
    %v3326 = vpop.xlane.xlu0 %3325
    %v3327 = vsel %vm493, %v3323, 0.0
    %3328 = vadd.xlane.f32.xlu0 %v3327
    %v3329 = vpop.xlane.xlu0 %3328
    %v3330 = vrcp.pop %v3326
    %v3331 = vrcp.pop %v3329
    %v3332 = vmul.f32 %v3330, 0.35550907
    %v3333 = vmul.f32 %v3331, 0.35550907
    %v3334 = vmul.f32 %v3322, %v3332
    %v3335 = vmul.f32 %v3323, %v3333
    %v3336 = vsub.f32 %v3257, %v3334
    %v3337 = vsub.f32 %v3258, %v3335
    %v3338 = vpack.c.bf16 %v3337, %v3336
    %3339 = vrot.lane.b32.xlu0 %v483, 48
    %v3340 = vpop.permute.xlu0 %3339
    %v3343 = vsel %vm493, %v3338, 0
    %3345 = vmatprep.subr.bf16.mxu0 0
    %3346 = vmatpush1.bf16.msra.mxu0 %v3340
    %3347 = vmatprep.subr.bf16.mxu0 0
    %3348 = vmatpush1.bf16.msra.mxu0 0
    %3349 = vmatprep.subr.bf16.mxu0 0
    %3350 = vmatpush1.bf16.msra.mxu0 0
    %3351 = vmatprep.subr.bf16.mxu0 0
    %3352 = vmatpush1.bf16.msra.mxu0 0
    %3353 = vmatprep.subr.bf16.mxu0 0
    %3354 = vmatpush1.bf16.msra.mxu0 0
    %3355 = vmatprep.subr.bf16.mxu0 0
    %3356 = vmatpush1.bf16.msra.mxu0 0
    %3357 = vmatprep.subr.bf16.mxu0 0
    %3358 = vmatpush1.bf16.msra.mxu0 0
    %3359 = vmatprep.subr.bf16.mxu0 0
    %3360 = vmatpush1.bf16.msra.mxu0 0
    %3361 = vmatprep.subr.bf16.mxu0 0
    %3362 = vmatpush1.bf16.msra.mxu0 0
    %3363 = vmatprep.subr.bf16.mxu0 0
    %3364 = vmatpush1.bf16.msra.mxu0 0
    %3365 = vmatprep.subr.bf16.mxu0 0
    %3366 = vmatpush1.bf16.msra.mxu0 0
    %3367 = vmatprep.subr.bf16.mxu0 0
    %3368 = vmatpush1.bf16.msra.mxu0 0
    %3369 = vmatprep.subr.bf16.mxu0 0
    %3370 = vmatpush1.bf16.msra.mxu0 0
    %3371 = vmatprep.subr.bf16.mxu0 0
    %3372 = vmatpush1.bf16.msra.mxu0 0
    %3373 = vmatprep.subr.bf16.mxu0 0
    %3374 = vmatpush1.bf16.msra.mxu0 0
    %3375 = vmatprep.subr.bf16.mxu0 0
    %3376 = vmatpush1.bf16.msra.mxu0 0
    %3377 = vmatprep.mubr.bf16.mxu0 0
    %3378 = vmatmul.mubr.bf16.gmra.mrb[0].mxu0 %v3343
    %v3379 = vpop.f32.mrb[0].mxu0
    %v3380 = vadd.f32 0.0, %v3379
    %v3381 = vpop.f32.mrb[0].mxu0
    %v3382 = vpop.f32.mrb[0].mxu0
    %v3383 = vadd.f32 0.0, %v3382
    %v3384 = vpop.f32.mrb[0].mxu0
    %3385 = vdwg.mxu0
    %3386 = vrot.lane.b32.xlu0 %v479, 32
    %v3387 = vpop.permute.xlu0 %3386
    %3388 = vrot.lane.b32.xlu0 %v481, 32
    %v3389 = vpop.permute.xlu0 %3388
    %v3391 = vsel %vm493, %v3387, 0
    %v3394 = vsel %vm493, %v3389, 0
    %3396 = vmatprep.subr.bf16.mxu0 0
    %3397 = vmatpush1.bf16.xpose.msra.mxu0 %v3394
    %3398 = vmatprep.subr.bf16.mxu0 0
    %3399 = vmatpush1.bf16.xpose.msra.mxu0 0
    %3400 = vmatprep.subr.bf16.mxu0 0
    %3401 = vmatpush1.bf16.xpose.msra.mxu0 0
    %3402 = vmatprep.subr.bf16.mxu0 0
    %3403 = vmatpush1.bf16.xpose.msra.mxu0 0
    %3404 = vmatprep.subr.bf16.mxu0 0
    %3405 = vmatpush1.bf16.xpose.msra.mxu0 0
    %3406 = vmatprep.subr.bf16.mxu0 0
    %3407 = vmatpush1.bf16.xpose.msra.mxu0 0
    %3408 = vmatprep.subr.bf16.mxu0 0
    %3409 = vmatpush1.bf16.xpose.msra.mxu0 0
    %3410 = vmatprep.subr.bf16.mxu0 0
    %3411 = vmatpush1.bf16.xpose.msra.mxu0 0
    %3412 = vmatprep.subr.bf16.mxu0 0
    %3413 = vmatpush1.bf16.xpose.msra.mxu0 0
    %3414 = vmatprep.subr.bf16.mxu0 0
    %3415 = vmatpush1.bf16.xpose.msra.mxu0 0
    %3416 = vmatprep.subr.bf16.mxu0 0
    %3417 = vmatpush1.bf16.xpose.msra.mxu0 0
    %3418 = vmatprep.subr.bf16.mxu0 0
    %3419 = vmatpush1.bf16.xpose.msra.mxu0 0
    %3420 = vmatprep.subr.bf16.mxu0 0
    %3421 = vmatpush1.bf16.xpose.msra.mxu0 0
    %3422 = vmatprep.subr.bf16.mxu0 0
    %3423 = vmatpush1.bf16.xpose.msra.mxu0 0
    %3424 = vmatprep.subr.bf16.mxu0 0
    %3425 = vmatpush1.bf16.xpose.msra.mxu0 0
    %3426 = vmatprep.subr.bf16.mxu0 0
    %3427 = vmatpush1.bf16.xpose.msra.mxu0 0
    %3428 = vmatprep.mubr.bf16.mxu0 0
    %3429 = vmatmul.mubr.bf16.gmra.mrb[0].mxu0 %v3391
    %v3430 = vpop.f32.mrb[0].mxu0
    %v3431 = vadd.f32 %v491, %v3430
    %v3432 = vpop.f32.mrb[0].mxu0
    %v3433 = vpop.f32.mrb[0].mxu0
    %v3434 = vadd.f32 %v492, %v3433
    %v3435 = vpop.f32.mrb[0].mxu0
    %3436 = vdwg.mxu0
    %v3437 = vsel %vm493, %v3431, -inf
    %3438 = vmax.xlane.f32.xlu0 %v3437
    %v3439 = vpop.xlane.xlu0 %3438
    %v3440 = vsel %vm493, %v3434, -inf
    %3441 = vmax.xlane.f32.xlu0 %v3440
    %v3442 = vpop.xlane.xlu0 %3441
    %v3443 = vsub.f32 %v3431, %v3439
    %v3444 = vsub.f32 %v3434, %v3442
    %v3445 = vpack.c.bf16 %v3444, %v3443
    %v3447 = vmul.bf16 %v3445, 1069105081
    %v3448 = vpow.bf16.pop %v3447
    %v3449 = vunpack.c.l.bf16 %v3448
    %v3450 = vunpack.c.h.bf16 %v3448
    %v3451 = vsel %vm493, %v3449, 0.0
    %3452 = vadd.xlane.f32.xlu0 %v3451
    %v3453 = vpop.xlane.xlu0 %3452
    %v3454 = vsel %vm493, %v3450, 0.0
    %3455 = vadd.xlane.f32.xlu0 %v3454
    %v3456 = vpop.xlane.xlu0 %3455
    %v3457 = vrcp.pop %v3453
    %v3458 = vrcp.pop %v3456
    %v3459 = vmul.f32 %v3449, %v3457
    %v3460 = vmul.f32 %v3450, %v3458
    %3461 = vrot.lane.b32.xlu0 %v480, 32
    %v3462 = vpop.permute.xlu0 %3461
    %3463 = vrot.lane.b32.xlu0 %v482, 32
    %v3464 = vpop.permute.xlu0 %3463
    %v3466 = vsel %vm493, %v3462, 0
    %v3469 = vsel %vm493, %v3464, 0
    %3471 = vmatprep.subr.bf16.mxu0 0
    %3472 = vmatpush1.bf16.xpose.msra.mxu0 %v3469
    %3473 = vmatprep.subr.bf16.mxu0 0
    %3474 = vmatpush1.bf16.xpose.msra.mxu0 0
    %3475 = vmatprep.subr.bf16.mxu0 0
    %3476 = vmatpush1.bf16.xpose.msra.mxu0 0
    %3477 = vmatprep.subr.bf16.mxu0 0
    %3478 = vmatpush1.bf16.xpose.msra.mxu0 0
    %3479 = vmatprep.subr.bf16.mxu0 0
    %3480 = vmatpush1.bf16.xpose.msra.mxu0 0
    %3481 = vmatprep.subr.bf16.mxu0 0
    %3482 = vmatpush1.bf16.xpose.msra.mxu0 0
    %3483 = vmatprep.subr.bf16.mxu0 0
    %3484 = vmatpush1.bf16.xpose.msra.mxu0 0
    %3485 = vmatprep.subr.bf16.mxu0 0
    %3486 = vmatpush1.bf16.xpose.msra.mxu0 0
    %3487 = vmatprep.subr.bf16.mxu0 0
    %3488 = vmatpush1.bf16.xpose.msra.mxu0 0
    %3489 = vmatprep.subr.bf16.mxu0 0
    %3490 = vmatpush1.bf16.xpose.msra.mxu0 0
    %3491 = vmatprep.subr.bf16.mxu0 0
    %3492 = vmatpush1.bf16.xpose.msra.mxu0 0
    %3493 = vmatprep.subr.bf16.mxu0 0
    %3494 = vmatpush1.bf16.xpose.msra.mxu0 0
    %3495 = vmatprep.subr.bf16.mxu0 0
    %3496 = vmatpush1.bf16.xpose.msra.mxu0 0
    %3497 = vmatprep.subr.bf16.mxu0 0
    %3498 = vmatpush1.bf16.xpose.msra.mxu0 0
    %3499 = vmatprep.subr.bf16.mxu0 0
    %3500 = vmatpush1.bf16.xpose.msra.mxu0 0
    %3501 = vmatprep.subr.bf16.mxu0 0
    %3502 = vmatpush1.bf16.xpose.msra.mxu0 0
    %3503 = vmatprep.mubr.bf16.mxu0 0
    %3504 = vmatmul.mubr.bf16.gmra.mrb[0].mxu0 %v3466
    %v3505 = vpop.f32.mrb[0].mxu0
    %v3506 = vadd.f32 %v491, %v3505
    %v3507 = vpop.f32.mrb[0].mxu0
    %v3508 = vpop.f32.mrb[0].mxu0
    %v3509 = vadd.f32 %v492, %v3508
    %v3510 = vpop.f32.mrb[0].mxu0
    %3511 = vdwg.mxu0
    %v3512 = vsel %vm493, %v3506, -inf
    %3513 = vmax.xlane.f32.xlu0 %v3512
    %v3514 = vpop.xlane.xlu0 %3513
    %v3515 = vsel %vm493, %v3509, -inf
    %3516 = vmax.xlane.f32.xlu0 %v3515
    %v3517 = vpop.xlane.xlu0 %3516
    %v3518 = vsub.f32 %v3506, %v3514
    %v3519 = vsub.f32 %v3509, %v3517
    %v3520 = vpack.c.bf16 %v3519, %v3518
    %v3522 = vmul.bf16 %v3520, 1069105081
    %v3523 = vpow.bf16.pop %v3522
    %v3524 = vunpack.c.l.bf16 %v3523
    %v3525 = vunpack.c.h.bf16 %v3523
    %v3526 = vsel %vm493, %v3524, 0.0
    %3527 = vadd.xlane.f32.xlu0 %v3526
    %v3528 = vpop.xlane.xlu0 %3527
    %v3529 = vsel %vm493, %v3525, 0.0
    %3530 = vadd.xlane.f32.xlu0 %v3529
    %v3531 = vpop.xlane.xlu0 %3530
    %v3532 = vrcp.pop %v3528
    %v3533 = vrcp.pop %v3531
    %v3534 = vmul.f32 %v3532, 0.35550907
    %v3535 = vmul.f32 %v3533, 0.35550907
    %v3536 = vmul.f32 %v3524, %v3534
    %v3537 = vmul.f32 %v3525, %v3535
    %v3538 = vsub.f32 %v3459, %v3536
    %v3539 = vsub.f32 %v3460, %v3537
    %v3540 = vpack.c.bf16 %v3539, %v3538
    %3541 = vrot.lane.b32.xlu0 %v483, 32
    %v3542 = vpop.permute.xlu0 %3541
    %v3545 = vsel %vm493, %v3540, 0
    %3547 = vmatprep.subr.bf16.mxu0 0
    %3548 = vmatpush1.bf16.msra.mxu0 %v3542
    %3549 = vmatprep.subr.bf16.mxu0 0
    %3550 = vmatpush1.bf16.msra.mxu0 0
    %3551 = vmatprep.subr.bf16.mxu0 0
    %3552 = vmatpush1.bf16.msra.mxu0 0
    %3553 = vmatprep.subr.bf16.mxu0 0
    %3554 = vmatpush1.bf16.msra.mxu0 0
    %3555 = vmatprep.subr.bf16.mxu0 0
    %3556 = vmatpush1.bf16.msra.mxu0 0
    %3557 = vmatprep.subr.bf16.mxu0 0
    %3558 = vmatpush1.bf16.msra.mxu0 0
    %3559 = vmatprep.subr.bf16.mxu0 0
    %3560 = vmatpush1.bf16.msra.mxu0 0
    %3561 = vmatprep.subr.bf16.mxu0 0
    %3562 = vmatpush1.bf16.msra.mxu0 0
    %3563 = vmatprep.subr.bf16.mxu0 0
    %3564 = vmatpush1.bf16.msra.mxu0 0
    %3565 = vmatprep.subr.bf16.mxu0 0
    %3566 = vmatpush1.bf16.msra.mxu0 0
    %3567 = vmatprep.subr.bf16.mxu0 0
    %3568 = vmatpush1.bf16.msra.mxu0 0
    %3569 = vmatprep.subr.bf16.mxu0 0
    %3570 = vmatpush1.bf16.msra.mxu0 0
    %3571 = vmatprep.subr.bf16.mxu0 0
    %3572 = vmatpush1.bf16.msra.mxu0 0
    %3573 = vmatprep.subr.bf16.mxu0 0
    %3574 = vmatpush1.bf16.msra.mxu0 0
    %3575 = vmatprep.subr.bf16.mxu0 0
    %3576 = vmatpush1.bf16.msra.mxu0 0
    %3577 = vmatprep.subr.bf16.mxu0 0
    %3578 = vmatpush1.bf16.msra.mxu0 0
    %3579 = vmatprep.mubr.bf16.mxu0 0
    %3580 = vmatmul.mubr.bf16.gmra.mrb[0].mxu0 %v3545
    %v3581 = vpop.f32.mrb[0].mxu0
    %v3582 = vadd.f32 0.0, %v3581
    %v3583 = vpop.f32.mrb[0].mxu0
    %v3584 = vpop.f32.mrb[0].mxu0
    %v3585 = vadd.f32 0.0, %v3584
    %v3586 = vpop.f32.mrb[0].mxu0
    %3587 = vdwg.mxu0
    %3588 = vrot.lane.b32.xlu0 %v479, 16
    %v3589 = vpop.permute.xlu0 %3588
    %3590 = vrot.lane.b32.xlu0 %v481, 16
    %v3591 = vpop.permute.xlu0 %3590
    %v3593 = vsel %vm493, %v3589, 0
    %v3596 = vsel %vm493, %v3591, 0
    %3598 = vmatprep.subr.bf16.mxu0 0
    %3599 = vmatpush1.bf16.xpose.msra.mxu0 %v3596
    %3600 = vmatprep.subr.bf16.mxu0 0
    %3601 = vmatpush1.bf16.xpose.msra.mxu0 0
    %3602 = vmatprep.subr.bf16.mxu0 0
    %3603 = vmatpush1.bf16.xpose.msra.mxu0 0
    %3604 = vmatprep.subr.bf16.mxu0 0
    %3605 = vmatpush1.bf16.xpose.msra.mxu0 0
    %3606 = vmatprep.subr.bf16.mxu0 0
    %3607 = vmatpush1.bf16.xpose.msra.mxu0 0
    %3608 = vmatprep.subr.bf16.mxu0 0
    %3609 = vmatpush1.bf16.xpose.msra.mxu0 0
    %3610 = vmatprep.subr.bf16.mxu0 0
    %3611 = vmatpush1.bf16.xpose.msra.mxu0 0
    %3612 = vmatprep.subr.bf16.mxu0 0
    %3613 = vmatpush1.bf16.xpose.msra.mxu0 0
    %3614 = vmatprep.subr.bf16.mxu0 0
    %3615 = vmatpush1.bf16.xpose.msra.mxu0 0
    %3616 = vmatprep.subr.bf16.mxu0 0
    %3617 = vmatpush1.bf16.xpose.msra.mxu0 0
    %3618 = vmatprep.subr.bf16.mxu0 0
    %3619 = vmatpush1.bf16.xpose.msra.mxu0 0
    %3620 = vmatprep.subr.bf16.mxu0 0
    %3621 = vmatpush1.bf16.xpose.msra.mxu0 0
    %3622 = vmatprep.subr.bf16.mxu0 0
    %3623 = vmatpush1.bf16.xpose.msra.mxu0 0
    %3624 = vmatprep.subr.bf16.mxu0 0
    %3625 = vmatpush1.bf16.xpose.msra.mxu0 0
    %3626 = vmatprep.subr.bf16.mxu0 0
    %3627 = vmatpush1.bf16.xpose.msra.mxu0 0
    %3628 = vmatprep.subr.bf16.mxu0 0
    %3629 = vmatpush1.bf16.xpose.msra.mxu0 0
    %3630 = vmatprep.mubr.bf16.mxu0 0
    %3631 = vmatmul.mubr.bf16.gmra.mrb[0].mxu0 %v3593
    %v3632 = vpop.f32.mrb[0].mxu0
    %v3633 = vadd.f32 %v491, %v3632
    %v3634 = vpop.f32.mrb[0].mxu0
    %v3635 = vpop.f32.mrb[0].mxu0
    %v3636 = vadd.f32 %v492, %v3635
    %v3637 = vpop.f32.mrb[0].mxu0
    %3638 = vdwg.mxu0
    %v3639 = vsel %vm493, %v3633, -inf
    %3640 = vmax.xlane.f32.xlu0 %v3639
    %v3641 = vpop.xlane.xlu0 %3640
    %v3642 = vsel %vm493, %v3636, -inf
    %3643 = vmax.xlane.f32.xlu0 %v3642
    %v3644 = vpop.xlane.xlu0 %3643
    %v3645 = vsub.f32 %v3633, %v3641
    %v3646 = vsub.f32 %v3636, %v3644
    %v3647 = vpack.c.bf16 %v3646, %v3645
    %v3649 = vmul.bf16 %v3647, 1069105081
    %v3650 = vpow.bf16.pop %v3649
    %v3651 = vunpack.c.l.bf16 %v3650
    %v3652 = vunpack.c.h.bf16 %v3650
    %v3653 = vsel %vm493, %v3651, 0.0
    %3654 = vadd.xlane.f32.xlu0 %v3653
    %v3655 = vpop.xlane.xlu0 %3654
    %v3656 = vsel %vm493, %v3652, 0.0
    %3657 = vadd.xlane.f32.xlu0 %v3656
    %v3658 = vpop.xlane.xlu0 %3657
    %v3659 = vrcp.pop %v3655
    %v3660 = vrcp.pop %v3658
    %v3661 = vmul.f32 %v3651, %v3659
    %v3662 = vmul.f32 %v3652, %v3660
    %3663 = vrot.lane.b32.xlu0 %v480, 16
    %v3664 = vpop.permute.xlu0 %3663
    %3665 = vrot.lane.b32.xlu0 %v482, 16
    %v3666 = vpop.permute.xlu0 %3665
    %v3668 = vsel %vm493, %v3664, 0
    %v3671 = vsel %vm493, %v3666, 0
    %3673 = vmatprep.subr.bf16.mxu0 0
    %3674 = vmatpush1.bf16.xpose.msra.mxu0 %v3671
    %3675 = vmatprep.subr.bf16.mxu0 0
    %3676 = vmatpush1.bf16.xpose.msra.mxu0 0
    %3677 = vmatprep.subr.bf16.mxu0 0
    %3678 = vmatpush1.bf16.xpose.msra.mxu0 0
    %3679 = vmatprep.subr.bf16.mxu0 0
    %3680 = vmatpush1.bf16.xpose.msra.mxu0 0
    %3681 = vmatprep.subr.bf16.mxu0 0
    %3682 = vmatpush1.bf16.xpose.msra.mxu0 0
    %3683 = vmatprep.subr.bf16.mxu0 0
    %3684 = vmatpush1.bf16.xpose.msra.mxu0 0
    %3685 = vmatprep.subr.bf16.mxu0 0
    %3686 = vmatpush1.bf16.xpose.msra.mxu0 0
    %3687 = vmatprep.subr.bf16.mxu0 0
    %3688 = vmatpush1.bf16.xpose.msra.mxu0 0
    %3689 = vmatprep.subr.bf16.mxu0 0
    %3690 = vmatpush1.bf16.xpose.msra.mxu0 0
    %3691 = vmatprep.subr.bf16.mxu0 0
    %3692 = vmatpush1.bf16.xpose.msra.mxu0 0
    %3693 = vmatprep.subr.bf16.mxu0 0
    %3694 = vmatpush1.bf16.xpose.msra.mxu0 0
    %3695 = vmatprep.subr.bf16.mxu0 0
    %3696 = vmatpush1.bf16.xpose.msra.mxu0 0
    %3697 = vmatprep.subr.bf16.mxu0 0
    %3698 = vmatpush1.bf16.xpose.msra.mxu0 0
    %3699 = vmatprep.subr.bf16.mxu0 0
    %3700 = vmatpush1.bf16.xpose.msra.mxu0 0
    %3701 = vmatprep.subr.bf16.mxu0 0
    %3702 = vmatpush1.bf16.xpose.msra.mxu0 0
    %3703 = vmatprep.subr.bf16.mxu0 0
    %3704 = vmatpush1.bf16.xpose.msra.mxu0 0
    %3705 = vmatprep.mubr.bf16.mxu0 0
    %3706 = vmatmul.mubr.bf16.gmra.mrb[0].mxu0 %v3668
    %v3707 = vpop.f32.mrb[0].mxu0
    %v3708 = vadd.f32 %v491, %v3707
    %v3709 = vpop.f32.mrb[0].mxu0
    %v3710 = vpop.f32.mrb[0].mxu0
    %v3711 = vadd.f32 %v492, %v3710
    %v3712 = vpop.f32.mrb[0].mxu0
    %3713 = vdwg.mxu0
    %v3714 = vsel %vm493, %v3708, -inf
    %3715 = vmax.xlane.f32.xlu0 %v3714
    %v3716 = vpop.xlane.xlu0 %3715
    %v3717 = vsel %vm493, %v3711, -inf
    %3718 = vmax.xlane.f32.xlu0 %v3717
    %v3719 = vpop.xlane.xlu0 %3718
    %v3720 = vsub.f32 %v3708, %v3716
    %v3721 = vsub.f32 %v3711, %v3719
    %v3722 = vpack.c.bf16 %v3721, %v3720
    %v3724 = vmul.bf16 %v3722, 1069105081
    %v3725 = vpow.bf16.pop %v3724
    %v3726 = vunpack.c.l.bf16 %v3725
    %v3727 = vunpack.c.h.bf16 %v3725
    %v3728 = vsel %vm493, %v3726, 0.0
    %3729 = vadd.xlane.f32.xlu0 %v3728
    %v3730 = vpop.xlane.xlu0 %3729
    %v3731 = vsel %vm493, %v3727, 0.0
    %3732 = vadd.xlane.f32.xlu0 %v3731
    %v3733 = vpop.xlane.xlu0 %3732
    %v3734 = vrcp.pop %v3730
    %v3735 = vrcp.pop %v3733
    %v3736 = vmul.f32 %v3734, 0.35550907
    %v3737 = vmul.f32 %v3735, 0.35550907
    %v3738 = vmul.f32 %v3726, %v3736
    %v3739 = vmul.f32 %v3727, %v3737
    %v3740 = vsub.f32 %v3661, %v3738
    %v3741 = vsub.f32 %v3662, %v3739
    %v3742 = vpack.c.bf16 %v3741, %v3740
    %3743 = vrot.lane.b32.xlu0 %v483, 16
    %v3744 = vpop.permute.xlu0 %3743
    %v3747 = vsel %vm493, %v3742, 0
    %3749 = vmatprep.subr.bf16.mxu0 0
    %3750 = vmatpush1.bf16.msra.mxu0 %v3744
    %3751 = vmatprep.subr.bf16.mxu0 0
    %3752 = vmatpush1.bf16.msra.mxu0 0
    %3753 = vmatprep.subr.bf16.mxu0 0
    %3754 = vmatpush1.bf16.msra.mxu0 0
    %3755 = vmatprep.subr.bf16.mxu0 0
    %3756 = vmatpush1.bf16.msra.mxu0 0
    %3757 = vmatprep.subr.bf16.mxu0 0
    %3758 = vmatpush1.bf16.msra.mxu0 0
    %3759 = vmatprep.subr.bf16.mxu0 0
    %3760 = vmatpush1.bf16.msra.mxu0 0
    %3761 = vmatprep.subr.bf16.mxu0 0
    %3762 = vmatpush1.bf16.msra.mxu0 0
    %3763 = vmatprep.subr.bf16.mxu0 0
    %3764 = vmatpush1.bf16.msra.mxu0 0
    %3765 = vmatprep.subr.bf16.mxu0 0
    %3766 = vmatpush1.bf16.msra.mxu0 0
    %3767 = vmatprep.subr.bf16.mxu0 0
    %3768 = vmatpush1.bf16.msra.mxu0 0
    %3769 = vmatprep.subr.bf16.mxu0 0
    %3770 = vmatpush1.bf16.msra.mxu0 0
    %3771 = vmatprep.subr.bf16.mxu0 0
    %3772 = vmatpush1.bf16.msra.mxu0 0
    %3773 = vmatprep.subr.bf16.mxu0 0
    %3774 = vmatpush1.bf16.msra.mxu0 0
    %3775 = vmatprep.subr.bf16.mxu0 0
    %3776 = vmatpush1.bf16.msra.mxu0 0
    %3777 = vmatprep.subr.bf16.mxu0 0
    %3778 = vmatpush1.bf16.msra.mxu0 0
    %3779 = vmatprep.subr.bf16.mxu0 0
    %3780 = vmatpush1.bf16.msra.mxu0 0
    %3781 = vmatprep.mubr.bf16.mxu0 0
    %3782 = vmatmul.mubr.bf16.gmra.mrb[0].mxu0 %v3747
    %v3783 = vpop.f32.mrb[0].mxu0
    %v3784 = vadd.f32 0.0, %v3783
    %v3785 = vpop.f32.mrb[0].mxu0
    %v3786 = vpop.f32.mrb[0].mxu0
    %v3787 = vadd.f32 0.0, %v3786
    %v3788 = vpop.f32.mrb[0].mxu0
    %3789 = vdwg.mxu0
    %3792 = vrot.lane.b32.xlu0 %v2572, 16
    %v3793 = vpop.permute.xlu0 %3792
    %3794 = vrot.lane.b32.xlu0 %v2575, 16
    %v3795 = vpop.permute.xlu0 %3794
    %3800 = vrot.lane.b32.xlu0 %v2774, 32
    %v3801 = vpop.permute.xlu0 %3800
    %3802 = vrot.lane.b32.xlu0 %v2777, 32
    %v3803 = vpop.permute.xlu0 %3802
    %3808 = vrot.lane.b32.xlu0 %v2976, 48
    %v3809 = vpop.permute.xlu0 %3808
    %3810 = vrot.lane.b32.xlu0 %v2979, 48
    %v3811 = vpop.permute.xlu0 %3810
    %3816 = vrot.lane.b32.xlu0 %v3178, 64
    %v3817 = vpop.permute.xlu0 %3816
    %3818 = vrot.lane.b32.xlu0 %v3181, 64
    %v3819 = vpop.permute.xlu0 %3818
    %3824 = vrot.lane.b32.xlu0 %v3380, 80
    %v3825 = vpop.permute.xlu0 %3824
    %3826 = vrot.lane.b32.xlu0 %v3383, 80
    %v3827 = vpop.permute.xlu0 %3826
    %3832 = vrot.lane.b32.xlu0 %v3582, 96
    %v3833 = vpop.permute.xlu0 %3832
    %3834 = vrot.lane.b32.xlu0 %v3585, 96
    %v3835 = vpop.permute.xlu0 %3834
    %3840 = vrot.lane.b32.xlu0 %v3784, 112
    %v3841 = vpop.permute.xlu0 %3840
    %3842 = vrot.lane.b32.xlu0 %v3787, 112
    %v3843 = vpop.permute.xlu0 %3842
    %v3846 = vsel %vm493, %v2365, %v3793
    %v3847 = vsel %vm493, %v2368, %v3795
    %v3848 = vsel %vm2162, %v3846, %v3801
    %v3849 = vsel %vm2162, %v3847, %v3803
    %v3850 = vsel %vm2165, %v3848, %v3809
    %v3851 = vsel %vm2165, %v3849, %v3811
    %v3852 = vsel %vm2168, %v3850, %v3817
    %v3853 = vsel %vm2168, %v3851, %v3819
    %v3854 = vsel %vm2171, %v3852, %v3825
    %v3855 = vsel %vm2171, %v3853, %v3827
    %v3856 = vsel %vm2174, %v3854, %v3833
    %v3857 = vsel %vm2174, %v3855, %v3835
    %v3858 = vsel %vm2177, %v3856, %v3841
    %v3859 = vsel %vm2177, %v3857, %v3843
    %v3860 = vmul.f32 %v2178, %v2178
    %v3861 = vmul.f32 %v2179, %v2179
    %v3862 = vmul.f32 %v3858, %v3858
    %v3863 = vmul.f32 %v3859, %v3859
    %3864 = vrot.lane.b32.xlu0 %v3860, 127
    %v3865 = vpop.permute.xlu0 %3864
    %3866 = vrot.lane.b32.xlu0 %v3861, 127
    %v3867 = vpop.permute.xlu0 %3866
    %3868 = vrot.lane.b32.xlu0 %v3862, 127
    %v3869 = vpop.permute.xlu0 %3868
    %3870 = vrot.lane.b32.xlu0 %v3863, 127
    %v3871 = vpop.permute.xlu0 %3870
    %3872 = vrot.lane.b32.xlu0 %v3860, 1
    %v3873 = vpop.permute.xlu0 %3872
    %3874 = vrot.lane.b32.xlu0 %v3861, 1
    %v3875 = vpop.permute.xlu0 %3874
    %3876 = vrot.lane.b32.xlu0 %v3862, 1
    %v3877 = vpop.permute.xlu0 %3876
    %3878 = vrot.lane.b32.xlu0 %v3863, 1
    %v3879 = vpop.permute.xlu0 %3878
    %vm3880 = vcmp.lt.s32.totalorder %v488, 0
    %v3881 = vsub.s32 0, %v488
    %v3882 = vsel %vm3880, %v3881, %v488
    %v3883 = vshrl.u32 %v3882, 1
    %v3884 = vand.u32 %v3882, 1
    %v3885 = vsub.s32 0, %v3884
    %v3886 = vsel %vm3880, %v3885, %v3884
    %vm3887 = vcmp.ne.s32.totalorder %v3886, 0
    %vm3888 = vcmp.lt.s32.totalorder %v3886, 0
    %vm3889 = vmand %vm3888, %vm3887
    %v3890 = vadd.s32 %v3886, 2
    %v3891 = vsel %vm3889, %v3890, %v3886
    %vm3892 = vcmp.lt.s32.totalorder %v3891, 1
    %v3893 = vsel %vm3892, %v3865, %v3873
    %v3894 = vsel %vm3892, %v3867, %v3875
    %v3895 = vsel %vm3892, %v3869, %v3877
    %v3896 = vsel %vm3892, %v3871, %v3879
    %v3897 = vadd.f32 %v3860, %v3893
    %v3898 = vadd.f32 %v3861, %v3894
    %v3899 = vadd.f32 %v3862, %v3895
    %v3900 = vadd.f32 %v3863, %v3896
    %v3901 = vmul.f32 %v3897, 0.5
    %v3902 = vmul.f32 %v3898, 0.5
    %v3903 = vmul.f32 %v3899, 0.5
    %v3904 = vmul.f32 %v3900, 0.5
    %v3905 = vadd.f32 %v3901, 1e-06
    %v3906 = vadd.f32 %v3902, 1e-06
    %v3907 = vadd.f32 %v3903, 1e-06
    %v3908 = vadd.f32 %v3904, 1e-06
    %v3909 = vrsqrt.pop %v3905
    %v3910 = vrsqrt.pop %v3906
    %v3911 = vrsqrt.pop %v3907
    %v3912 = vrsqrt.pop %v3908
    %v3913 = vmul.f32 %v2178, %v3909
    %v3914 = vmul.f32 %v2179, %v3910
    %v3915 = vmul.f32 %v3858, %v3911
    %v3916 = vmul.f32 %v3859, %v3912
    %v3917 = vpack.c.bf16 %v3914, %v3913
    %v3918 = vpack.c.bf16 %v3916, %v3915
    %v3919 = vld [vmem:[#allocation7] sm:$0xf]
    %v3920 = vld [vmem:[#allocation7 + $0x4] sm:$0xf]
    %v3921 = vld [vmem:[#allocation7 + $0x8] sm:$0xf]
    %v3922 = vld [vmem:[#allocation7 + $0xc] sm:$0xf]
    %v3923 = vld [vmem:[#allocation7 + $0x10] sm:$0xf]
    %v3924 = vld [vmem:[#allocation7 + $0x14] sm:$0xf]
    %v3925 = vld [vmem:[#allocation7 + $0x18] sm:$0xf]
    %v3926 = vld [vmem:[#allocation7 + $0x1c] sm:$0xf]
    %v3927 = vld [vmem:[#allocation7 + $0x20] sm:$0xf]
    %v3928 = vld [vmem:[#allocation7 + $0x24] sm:$0xf]
    %v3929 = vld [vmem:[#allocation7 + $0x28] sm:$0xf]
    %v3930 = vld [vmem:[#allocation7 + $0x2c] sm:$0xf]
    %v3931 = vld [vmem:[#allocation7 + $0x30] sm:$0xf]
    %v3932 = vld [vmem:[#allocation7 + $0x34] sm:$0xf]
    %v3933 = vld [vmem:[#allocation7 + $0x38] sm:$0xf]
    %v3934 = vld [vmem:[#allocation7 + $0x3c] sm:$0xf]
    %v3951 = vunpack.c.l.b16 %v3919
    %v3952 = vunpack.c.l.b16 %v3920
    %v3953 = vunpack.c.l.b16 %v3921
    %v3954 = vunpack.c.l.b16 %v3922
    %v3955 = vunpack.c.l.b16 %v3923
    %v3956 = vunpack.c.l.b16 %v3924
    %v3957 = vunpack.c.l.b16 %v3925
    %v3958 = vunpack.c.l.b16 %v3926
    %v3959 = vunpack.c.l.b16 %v3927
    %v3960 = vunpack.c.l.b16 %v3928
    %v3961 = vunpack.c.l.b16 %v3929
    %v3962 = vunpack.c.l.b16 %v3930
    %v3963 = vunpack.c.l.b16 %v3931
    %v3964 = vunpack.c.l.b16 %v3932
    %v3965 = vunpack.c.l.b16 %v3933
    %v3966 = vunpack.c.l.b16 %v3934
    %v3967 = vpack.c.b16 %v3952, %v3951
    %v3968 = vpack.c.b16 %v3954, %v3953
    %v3969 = vpack.c.b16 %v3956, %v3955
    %v3970 = vpack.c.b16 %v3958, %v3957
    %v3971 = vpack.c.b16 %v3960, %v3959
    %v3972 = vpack.c.b16 %v3962, %v3961
    %v3973 = vpack.c.b16 %v3964, %v3963
    %v3974 = vpack.c.b16 %v3966, %v3965
    %3983 = vmatprep.subr.bf16.mxu0 0
    %3984 = vmatpush1.bf16.msra.mxu0 %v3967
    %3985 = vmatprep.subr.bf16.mxu0 0
    %3986 = vmatpush1.bf16.msra.mxu0 %v3968
    %3987 = vmatprep.subr.bf16.mxu0 0
    %3988 = vmatpush1.bf16.msra.mxu0 %v3969
    %3989 = vmatprep.subr.bf16.mxu0 0
    %3990 = vmatpush1.bf16.msra.mxu0 %v3970
    %3991 = vmatprep.subr.bf16.mxu0 0
    %3992 = vmatpush1.bf16.msra.mxu0 %v3971
    %3993 = vmatprep.subr.bf16.mxu0 0
    %3994 = vmatpush1.bf16.msra.mxu0 %v3972
    %3995 = vmatprep.subr.bf16.mxu0 0
    %3996 = vmatpush1.bf16.msra.mxu0 %v3973
    %3997 = vmatprep.subr.bf16.mxu0 0
    %3998 = vmatpush1.bf16.msra.mxu0 %v3974
    %3999 = vmatprep.subr.bf16.mxu0 0
    %4000 = vmatpush1.bf16.msra.mxu0 0
    %4001 = vmatprep.subr.bf16.mxu0 0
    %4002 = vmatpush1.bf16.msra.mxu0 0
    %4003 = vmatprep.subr.bf16.mxu0 0
    %4004 = vmatpush1.bf16.msra.mxu0 0
    %4005 = vmatprep.subr.bf16.mxu0 0
    %4006 = vmatpush1.bf16.msra.mxu0 0
    %4007 = vmatprep.subr.bf16.mxu0 0
    %4008 = vmatpush1.bf16.msra.mxu0 0
    %4009 = vmatprep.subr.bf16.mxu0 0
    %4010 = vmatpush1.bf16.msra.mxu0 0
    %4011 = vmatprep.subr.bf16.mxu0 0
    %4012 = vmatpush1.bf16.msra.mxu0 0
    %4013 = vmatprep.subr.bf16.mxu0 0
    %4014 = vmatpush1.bf16.msra.mxu0 0
    %4015 = vmatprep.mubr.bf16.mxu0 0
    %4016 = vmatmul.mubr.bf16.gmra.mrb[0].mxu0 %v3917
    %v4017 = vpop.f32.mrb[0].mxu0
    %v4018 = vadd.f32 0.0, %v4017
    %v4019 = vpop.f32.mrb[0].mxu0
    %v4020 = vpop.f32.mrb[0].mxu0
    %v4021 = vadd.f32 0.0, %v4020
    %v4022 = vpop.f32.mrb[0].mxu0
    %4023 = vmatprep.mubr.bf16.mxu0 0
    %4024 = vmatmul.mubr.bf16.gmra.mrb[0].mxu0 %v3918
    %v4025 = vpop.f32.mrb[0].mxu0
    %v4026 = vadd.f32 0.0, %v4025
    %v4027 = vpop.f32.mrb[0].mxu0
    %v4028 = vpop.f32.mrb[0].mxu0
    %v4029 = vadd.f32 0.0, %v4028
    %v4030 = vpop.f32.mrb[0].mxu0
    %4031 = vdwg.mxu0
    %4032 = vst [vmem:[#allocation8] sm:$0xff] %v4018
    %4033 = vst [vmem:[#allocation8 + $0x8] sm:$0xff] %v4021
    %4034 = vst [vmem:[#allocation8 + $0x10] sm:$0xff] %v4026
    %4035 = vst [vmem:[#allocation8 + $0x18] sm:$0xff] %v4029
    // Predicated region
    $region26: #{diff_attention_forward.1} parent=1 // pred_check
      _
    $region27: #{diff_attention_forward.1} parent=1 // pred_check_branch
      %4037 = sbr.rel (0) target = $region29
    $region28: #{diff_attention_forward.1} parent=1 // pred_region
      %s4039 = ssub.s32 512, 512
      %4040 = vsyncadd [#allocation4], %s4039
      %s4041 = sshll.u32 [#allocation8], 4
      %s4042 = int_to_ptr.vmem [resolvable:$true] %s4041
      %4047 = dma.vmem_to_hbm [thread:$0]  %s4042, 512, %s3, [#allocation4], 128, 128, 8
    $region29: #{diff_attention_forward.1} parent=1 // pred_fallthru
      _
    // Predicated region
    $region30: #{diff_attention_forward.1} parent=1 // pred_check
      _
    $region31: #{diff_attention_forward.1} parent=1 // pred_check_branch
      %4049 = sbr.rel (0) target = $region33
    $region32: #{diff_attention_forward.1} parent=1 // pred_region
      %4050 = dma.done [#allocation4], 512
    $region33: #{diff_attention_forward.1} parent=1 // pred_fallthru
      _
    %4051 = vsyncpa [#allocation3], 1
    %4052 = vsyncpa [#allocation6], 1
    %4053 = vsyncpa [#allocation4], 1

</llo_original>
